<compile_context>
chip_gen: v6e
topology: v6e:2x2x1
jax: 0.10.0
libtpu: 0.0.40
codegen_flags: <defaults>
</compile_context>

<pallas_src>
import functools

import jax
import jax.numpy as jnp
import numpy as np
from jax.experimental import pallas as pl
from jax.experimental.pallas import tpu as pltpu

NUM_POINTS = 200
RECURRENT_INPUT_SIZE = 200
D_TYPE = jnp.float32

# Padded (lane-aligned) widths.
P4 = 128    # RECURRENT_INPUT_SIZE // 4 == 50  -> 128
P2 = 128    # RECURRENT_INPUT_SIZE // 2 == 100 -> 128
PH = 256    # RECURRENT_INPUT_SIZE / NUM_POINTS == 200 -> 256
PR1 = 384   # rl1 fan-out 350 -> 384
PR2 = 384   # rl2 fan-out 300 -> 384

VMEM_LIMIT = 32 * 1024 * 1024


def is_start(x):
    values = [13, 26, 29, 34, 50, 53, 91, 94, 103, 112, 117, 132, 138, 141,
              155, 174, 197, 198]
    return x in values


# ----------------------------------------------------------------------------
# Parameter initialization (deterministic, PyTorch-style uniform bounds)
# ----------------------------------------------------------------------------
def _init_linear(key, fan_in, fan_out):
    kw, kb = jax.random.split(key)
    bound = 1.0 / np.sqrt(fan_in)
    w = jax.random.uniform(kw, (fan_in, fan_out), D_TYPE, -bound, bound)
    b = jax.random.uniform(kb, (1, fan_out), D_TYPE, -bound, bound)
    return w, b


def init_params(input_size, key):
    keys = jax.random.split(key, 12)
    p = {}
    h = RECURRENT_INPUT_SIZE
    p["l1"] = _init_linear(keys[0], input_size, h // 4)
    p["rb1a"] = _init_linear(keys[1], h // 4, h // 4)
    p["rb1b"] = _init_linear(keys[2], h // 4, h // 4)
    p["rb1c"] = _init_linear(keys[3], h // 4, h // 4)
    p["l2"] = _init_linear(keys[4], h // 4, h // 2)
    p["rb2a"] = _init_linear(keys[5], h // 2, h // 2)
    p["rb2b"] = _init_linear(keys[6], h // 2, h // 2)
    p["rb2c"] = _init_linear(keys[7], h // 2, h // 2)
    p["l3"] = _init_linear(keys[8], h // 2, h)
    p["rl1"] = _init_linear(keys[9], h + NUM_POINTS, h * 3 // 4 + NUM_POINTS)
    p["rl2"] = _init_linear(keys[10], h * 3 // 4 + NUM_POINTS, h // 2 + NUM_POINTS)
    p["rl3"] = _init_linear(keys[11], h // 2 + NUM_POINTS, NUM_POINTS)
    p["h0"] = jnp.asarray([10.0 if is_start(i) else -10.0 for i in range(NUM_POINTS)],
                          dtype=D_TYPE)
    return p


# ----------------------------------------------------------------------------
# One-time parameter preparation: zero-pad to lane-aligned widths and split the
# recurrent W1 into its x- and h- halves (concat is replaced by a sum of matmuls).
# ----------------------------------------------------------------------------
def _pad_w(w, rows, cols):
    return jnp.zeros((rows, cols), D_TYPE).at[: w.shape[0], : w.shape[1]].set(w)


def _pad_b(b, cols):
    return jnp.zeros((1, cols), D_TYPE).at[:, : b.shape[1]].set(b)


def prepare_params(params):
    h = RECURRENT_INPUT_SIZE
    input_size = params["l1"][0].shape[0]
    pp = {}
    pp["l1"] = (_pad_w(params["l1"][0], input_size, P4), _pad_b(params["l1"][1], P4))
    for name in ("rb1a", "rb1b", "rb1c"):
        pp[name] = (_pad_w(params[name][0], P4, P4), _pad_b(params[name][1], P4))
    pp["l2"] = (_pad_w(params["l2"][0], P4, P2), _pad_b(params["l2"][1], P2))
    for name in ("rb2a", "rb2b", "rb2c"):
        pp[name] = (_pad_w(params[name][0], P2, P2), _pad_b(params[name][1], P2))
    pp["l3"] = (_pad_w(params["l3"][0], P2, PH), _pad_b(params["l3"][1], PH))
    w1, b1 = params["rl1"]
    pp["w1x"] = _pad_w(w1[:h], PH, PR1)        # x-part of rl1 (hoisted into trunk)
    pp["b_r1"] = _pad_b(b1, PR1)
    pp["w1h"] = _pad_w(w1[h:], PH, PR1)        # h-part of rl1 (stays in recurrence)
    pp["rl2"] = (_pad_w(params["rl2"][0], PR1, PR2), _pad_b(params["rl2"][1], PR2))
    pp["rl3"] = (_pad_w(params["rl3"][0], PR2, PH), _pad_b(params["rl3"][1], PH))
    pp["h0"] = _pad_b(params["h0"][None, :], PH)   # (1, PH), pad lanes zero
    return pp


# ----------------------------------------------------------------------------
# Kernel 1: feed-forward trunk, row-tiled.
#   linear1 -> resblock1 -> linear2 -> resblock2 -> linear3 -> (@ W1x + b_rl1)
# The last matmul is the hoisted, h-independent part of the recurrent cell.
# ----------------------------------------------------------------------------
def _lin_relu(x, w_ref, b_ref):
    return jnp.maximum(
        jnp.dot(x, w_ref[...], preferred_element_type=jnp.float32) + b_ref[...], 0.0)


def mlp_kernel(x_ref,
               w1, b1, wr1a, br1a, wr1b, br1b, wr1c, br1c,
               w2, b2, wr2a, br2a, wr2b, br2b, wr2c, br2c,
               w3, b3, w1x, br1, o_ref):
    x = x_ref[...]
    a = _lin_relu(x, w1, b1)
    # resblock1
    y = _lin_relu(a, wr1a, br1a)
    y = _lin_relu(y, wr1b, br1b)
    y = _lin_relu(y, wr1c, br1c)
    a = y + a
    a = _lin_relu(a, w2, b2)
    # resblock2
    y = _lin_relu(a, wr2a, br2a)
    y = _lin_relu(y, wr2b, br2b)
    y = _lin_relu(y, wr2c, br2c)
    a = y + a
    a = _lin_relu(a, w3, b3)
    # Hoisted recurrent term: x_t @ W1x + b1 (no relu here; completed per-step).
    o_ref[...] = (jnp.dot(a, w1x[...], preferred_element_type=jnp.float32)
                  + br1[...]).astype(o_ref.dtype)


def run_mlp(x_flat, pp):
    n, input_size = x_flat.shape
    tm = n if n <= 512 else 512           # multiple of 8, or the full extent
    grid = (pl.cdiv(n, tm),)

    weight_args = []
    for name in ("l1", "rb1a", "rb1b", "rb1c", "l2", "rb2a", "rb2b", "rb2c", "l3"):
        weight_args.extend(pp[name])
    weight_args.extend([pp["w1x"], pp["b_r1"]])

    in_specs = [pl.BlockSpec((tm, input_size), lambda i: (i, 0))]
    in_specs += [pl.BlockSpec(a.shape, lambda i: (0, 0)) for a in weight_args]
    out_spec = pl.BlockSpec((tm, PR1), lambda i: (i, 0))

    return pl.pallas_call(
        mlp_kernel,
        out_shape=jax.ShapeDtypeStruct((n, PR1), D_TYPE),
        grid_spec=pltpu.PrefetchScalarGridSpec(
            num_scalar_prefetch=0,
            grid=grid,
            in_specs=in_specs,
            out_specs=out_spec,
        ),
        compiler_params=pltpu.CompilerParams(
            dimension_semantics=("parallel",),
            vmem_limit_bytes=VMEM_LIMIT),
    )(x_flat, *weight_args)


# ----------------------------------------------------------------------------
# Kernel 2: recurrent head.  Grid iterates over time CHUNKS; inside each chunk a
# lax.fori_loop walks the timesteps.  The hidden state lives in VMEM scratch and
# is carried across grid steps.  Per-step work is only:
#   d1 = relu(precomp_t + h @ W1h); d2 = relu(d1 @ W2 + b2); h = d2 @ W3 + b3
# ----------------------------------------------------------------------------
def recurrent_kernel(xp_ref, h0_ref, w1h_ref, w2_ref, b2_ref, w3_ref, b3_ref,
                     o_ref, h_scr, *, seq_len, ts):
    chunk = pl.program_id(0)

    @pl.when(chunk == 0)
    def _():
        h_scr[...] = jnp.broadcast_to(h0_ref[...], h_scr.shape)

    if seq_len % ts == 0:
        n_valid = ts
    else:
        n_valid = jnp.minimum(ts, seq_len - chunk * ts)

    w1h = w1h_ref[...]
    w2 = w2_ref[...]
    b2 = b2_ref[...]
    w3 = w3_ref[...]
    b3 = b3_ref[...]

    def step(t, h):
        d1 = jnp.maximum(
            xp_ref[t] + jnp.dot(h, w1h, preferred_element_type=jnp.float32), 0.0)
        d2 = jnp.maximum(
            jnp.dot(d1, w2, preferred_element_type=jnp.float32) + b2, 0.0)
        h_new = jnp.dot(d2, w3, preferred_element_type=jnp.float32) + b3
        o_ref[t] = h_new.astype(o_ref.dtype)
        return h_new

    h_scr[...] = jax.lax.fori_loop(0, n_valid, step, h_scr[...])


def run_recurrent(xp_tbf, pp):
    seq_len, batch, pr1 = xp_tbf.shape
    ts = seq_len if seq_len <= 128 else 128
    grid = (pl.cdiv(seq_len, ts),)

    w1h = pp["w1h"]
    w2, b2 = pp["rl2"]
    w3, b3 = pp["rl3"]
    h0 = pp["h0"]

    full = lambda a: pl.BlockSpec(a.shape, lambda c, _s=a.ndim: (0,) * _s)
    kernel = functools.partial(recurrent_kernel, seq_len=seq_len, ts=ts)

    return pl.pallas_call(
        kernel,
        out_shape=jax.ShapeDtypeStruct((seq_len, batch, PH), D_TYPE),
        grid_spec=pltpu.PrefetchScalarGridSpec(
            num_scalar_prefetch=0,
            grid=grid,
            in_specs=[
                pl.BlockSpec((ts, batch, pr1), lambda c: (c, 0, 0)),
                full(h0),
                full(w1h), full(w2), full(b2), full(w3), full(b3),
            ],
            out_specs=pl.BlockSpec((ts, batch, PH), lambda c: (c, 0, 0)),
            scratch_shapes=[pltpu.VMEM((batch, PH), jnp.float32)],
        ),
        compiler_params=pltpu.CompilerParams(
            dimension_semantics=("arbitrary",),
            vmem_limit_bytes=VMEM_LIMIT),
    )(xp_tbf, h0, w1h, w2, b2, w3, b3)


# ----------------------------------------------------------------------------
# Full model forward
# ----------------------------------------------------------------------------
@jax.jit
def model_map_predict(x, lengths, prepared):
    # x: (batch, seq, input_size); lengths is unused in the reference forward.
    del lengths
    batch, seq, input_size = x.shape
    # Time-major flatten of the *narrow* raw input (cheap), so the trunk output is
    # already (seq, batch, F) with a free reshape — no wide-feature transpose.
    x_tm = jnp.transpose(x, (1, 0, 2)).reshape(seq * batch, input_size)
    precomp = run_mlp(x_tm, prepared)                 # (seq*batch, PR1)
    precomp = precomp.reshape(seq, batch, PR1)        # free reshape
    out = run_recurrent(precomp, prepared)            # (seq, batch, PH)
    out = jnp.transpose(out, (1, 0, 2))[..., :NUM_POINTS]
    return out
    # TODO(synk): bf16 weights/activations (f32 accumulate) would further speed up
    # v6e/v7x but is kept f32 here to preserve bitwise-comparable semantics.


# ----------------------------------------------------------------------------
# Pure-JAX reference (mirrors the PyTorch forward) for a correctness check
# ----------------------------------------------------------------------------
def reference_forward(x, params):
    def lin(a, wb):
        w, b = wb
        return a @ w + b

    a = jax.nn.relu(lin(x, params["l1"]))
    y = jax.nn.relu(lin(a, params["rb1a"]))
    y = jax.nn.relu(lin(y, params["rb1b"]))
    y = jax.nn.relu(lin(y, params["rb1c"]))
    a = y + a
    a = jax.nn.relu(lin(a, params["l2"]))
    y = jax.nn.relu(lin(a, params["rb2a"]))
    y = jax.nn.relu(lin(y, params["rb2b"]))
    y = jax.nn.relu(lin(y, params["rb2c"]))
    a = y + a
    a = jax.nn.relu(lin(a, params["l3"]))
    a = jnp.transpose(a, (1, 0, 2))  # (seq, batch, F)
    seq_len, batch, _ = a.shape
    h = jnp.broadcast_to(params["h0"][None, :], (batch, NUM_POINTS))
    outs = []
    for t in range(seq_len):
        d = jnp.concatenate([a[t], h], axis=1)
        d = jax.nn.relu(lin(d, params["rl1"]))
        d = jax.nn.relu(lin(d, params["rl2"]))
        h = lin(d, params["rl3"])
        outs.append(h)
    out = jnp.stack(outs)
    return jnp.transpose(out, (1, 0, 2))


if __name__ == "__main__":
    key = jax.random.PRNGKey(0)
    k_param, k_x = jax.random.split(key)

    batch, seq, input_size = 2, 8, 32
    params = init_params(input_size, k_param)
    prepared = prepare_params(params)
    x = jax.random.normal(k_x, (batch, seq, input_size), dtype=D_TYPE)
    lengths = jnp.full((batch,), seq, dtype=jnp.int32)

    out = model_map_predict(x, lengths, prepared)
    out = jax.block_until_ready(out)

    ref = reference_forward(x, params)
    assert out.shape == (batch, seq, NUM_POINTS), out.shape
    np.testing.assert_allclose(np.asarray(out), np.asarray(ref), rtol=1e-4, atol=1e-4)

    print("KERNEL_OK")
</pallas_src>

<mosaic_0001>
module attributes {stable_mosaic.version = 11 : i64} {
  func.func @mlp_kernel(%arg0: i32, %arg1: memref<16x32xf32, #tpu.memory_space<vmem>>, %arg2: memref<32x128xf32, #tpu.memory_space<vmem>>, %arg3: memref<1x128xf32, #tpu.memory_space<vmem>>, %arg4: memref<128x128xf32, #tpu.memory_space<vmem>>, %arg5: memref<1x128xf32, #tpu.memory_space<vmem>>, %arg6: memref<128x128xf32, #tpu.memory_space<vmem>>, %arg7: memref<1x128xf32, #tpu.memory_space<vmem>>, %arg8: memref<128x128xf32, #tpu.memory_space<vmem>>, %arg9: memref<1x128xf32, #tpu.memory_space<vmem>>, %arg10: memref<128x128xf32, #tpu.memory_space<vmem>>, %arg11: memref<1x128xf32, #tpu.memory_space<vmem>>, %arg12: memref<128x128xf32, #tpu.memory_space<vmem>>, %arg13: memref<1x128xf32, #tpu.memory_space<vmem>>, %arg14: memref<128x128xf32, #tpu.memory_space<vmem>>, %arg15: memref<1x128xf32, #tpu.memory_space<vmem>>, %arg16: memref<128x128xf32, #tpu.memory_space<vmem>>, %arg17: memref<1x128xf32, #tpu.memory_space<vmem>>, %arg18: memref<128x256xf32, #tpu.memory_space<vmem>>, %arg19: memref<1x256xf32, #tpu.memory_space<vmem>>, %arg20: memref<256x384xf32, #tpu.memory_space<vmem>>, %arg21: memref<1x384xf32, #tpu.memory_space<vmem>>, %arg22: memref<16x384xf32, #tpu.memory_space<vmem>>) attributes {dimension_semantics = [#tpu.dimension_semantics<parallel>], iteration_bounds = array<i64: 1>, scalar_prefetch = 0 : i64, scratch_operands = 0 : i64, tpu.core_type = #tpu.core_type<tc>, window_params = [{transform_indices = @transform_0, window_bounds = array<i64: 16, 32>}, {pipeline_mode = #tpu.pipeline_mode<synchronous>, transform_indices = @transform_1, window_bounds = array<i64: 32, 128>}, {pipeline_mode = #tpu.pipeline_mode<synchronous>, transform_indices = @transform_2, window_bounds = array<i64: 1, 128>}, {pipeline_mode = #tpu.pipeline_mode<synchronous>, transform_indices = @transform_3, window_bounds = array<i64: 128, 128>}, {pipeline_mode = #tpu.pipeline_mode<synchronous>, transform_indices = @transform_4, window_bounds = array<i64: 1, 128>}, {pipeline_mode = #tpu.pipeline_mode<synchronous>, transform_indices = @transform_5, window_bounds = array<i64: 128, 128>}, {pipeline_mode = #tpu.pipeline_mode<synchronous>, transform_indices = @transform_6, window_bounds = array<i64: 1, 128>}, {pipeline_mode = #tpu.pipeline_mode<synchronous>, transform_indices = @transform_7, window_bounds = array<i64: 128, 128>}, {pipeline_mode = #tpu.pipeline_mode<synchronous>, transform_indices = @transform_8, window_bounds = array<i64: 1, 128>}, {pipeline_mode = #tpu.pipeline_mode<synchronous>, transform_indices = @transform_9, window_bounds = array<i64: 128, 128>}, {pipeline_mode = #tpu.pipeline_mode<synchronous>, transform_indices = @transform_10, window_bounds = array<i64: 1, 128>}, {pipeline_mode = #tpu.pipeline_mode<synchronous>, transform_indices = @transform_11, window_bounds = array<i64: 128, 128>}, {pipeline_mode = #tpu.pipeline_mode<synchronous>, transform_indices = @transform_12, window_bounds = array<i64: 1, 128>}, {pipeline_mode = #tpu.pipeline_mode<synchronous>, transform_indices = @transform_13, window_bounds = array<i64: 128, 128>}, {pipeline_mode = #tpu.pipeline_mode<synchronous>, transform_indices = @transform_14, window_bounds = array<i64: 1, 128>}, {pipeline_mode = #tpu.pipeline_mode<synchronous>, transform_indices = @transform_15, window_bounds = array<i64: 128, 128>}, {pipeline_mode = #tpu.pipeline_mode<synchronous>, transform_indices = @transform_16, window_bounds = array<i64: 1, 128>}, {pipeline_mode = #tpu.pipeline_mode<synchronous>, transform_indices = @transform_17, window_bounds = array<i64: 128, 256>}, {pipeline_mode = #tpu.pipeline_mode<synchronous>, transform_indices = @transform_18, window_bounds = array<i64: 1, 256>}, {pipeline_mode = #tpu.pipeline_mode<synchronous>, transform_indices = @transform_19, window_bounds = array<i64: 256, 384>}, {pipeline_mode = #tpu.pipeline_mode<synchronous>, transform_indices = @transform_20, window_bounds = array<i64: 1, 384>}, {transform_indices = @transform_21, window_bounds = array<i64: 16, 384>}]} {
    %c0 = arith.constant 0 : index
    %c0_0 = arith.constant 0 : index
    %0 = vector.load %arg1[%c0, %c0_0] : memref<16x32xf32, #tpu.memory_space<vmem>>, vector<16x32xf32>
    %c0_1 = arith.constant 0 : index
    %c0_2 = arith.constant 0 : index
    %1 = vector.load %arg2[%c0_1, %c0_2] : memref<32x128xf32, #tpu.memory_space<vmem>>, vector<32x128xf32>
    %cst = arith.constant dense<0.000000e+00> : vector<16x128xf32>
    %2 = tpu.matmul %0, %1, %cst {dimension_numbers = #tpu.dot_dimension_numbers<[1], [0], [0], [1], [0, 0, 1, 1], [], []>} : vector<16x32xf32>, vector<32x128xf32>, vector<16x128xf32> -> vector<16x128xf32>
    %c0_3 = arith.constant 0 : index
    %c0_4 = arith.constant 0 : index
    %3 = vector.load %arg3[%c0_3, %c0_4] : memref<1x128xf32, #tpu.memory_space<vmem>>, vector<1x128xf32>
    %4 = vector.broadcast %3 : vector<1x128xf32> to vector<16x128xf32>
    %5 = arith.addf %2, %4 : vector<16x128xf32>
    %cst_5 = arith.constant 0.000000e+00 : f32
    %6 = vector.broadcast %cst_5 : f32 to vector<16x128xf32>
    %7 = arith.maximumf %5, %6 : vector<16x128xf32>
    %c0_6 = arith.constant 0 : index
    %c0_7 = arith.constant 0 : index
    %8 = vector.load %arg4[%c0_6, %c0_7] : memref<128x128xf32, #tpu.memory_space<vmem>>, vector<128x128xf32>
    %cst_8 = arith.constant dense<0.000000e+00> : vector<16x128xf32>
    %9 = tpu.matmul %7, %8, %cst_8 {dimension_numbers = #tpu.dot_dimension_numbers<[1], [0], [0], [1], [0, 0, 1, 1], [], []>} : vector<16x128xf32>, vector<128x128xf32>, vector<16x128xf32> -> vector<16x128xf32>
    %c0_9 = arith.constant 0 : index
    %c0_10 = arith.constant 0 : index
    %10 = vector.load %arg5[%c0_9, %c0_10] : memref<1x128xf32, #tpu.memory_space<vmem>>, vector<1x128xf32>
    %11 = vector.broadcast %10 : vector<1x128xf32> to vector<16x128xf32>
    %12 = arith.addf %9, %11 : vector<16x128xf32>
    %cst_11 = arith.constant 0.000000e+00 : f32
    %13 = vector.broadcast %cst_11 : f32 to vector<16x128xf32>
    %14 = arith.maximumf %12, %13 : vector<16x128xf32>
    %c0_12 = arith.constant 0 : index
    %c0_13 = arith.constant 0 : index
    %15 = vector.load %arg6[%c0_12, %c0_13] : memref<128x128xf32, #tpu.memory_space<vmem>>, vector<128x128xf32>
    %cst_14 = arith.constant dense<0.000000e+00> : vector<16x128xf32>
    %16 = tpu.matmul %14, %15, %cst_14 {dimension_numbers = #tpu.dot_dimension_numbers<[1], [0], [0], [1], [0, 0, 1, 1], [], []>} : vector<16x128xf32>, vector<128x128xf32>, vector<16x128xf32> -> vector<16x128xf32>
    %c0_15 = arith.constant 0 : index
    %c0_16 = arith.constant 0 : index
    %17 = vector.load %arg7[%c0_15, %c0_16] : memref<1x128xf32, #tpu.memory_space<vmem>>, vector<1x128xf32>
    %18 = vector.broadcast %17 : vector<1x128xf32> to vector<16x128xf32>
    %19 = arith.addf %16, %18 : vector<16x128xf32>
    %cst_17 = arith.constant 0.000000e+00 : f32
    %20 = vector.broadcast %cst_17 : f32 to vector<16x128xf32>
    %21 = arith.maximumf %19, %20 : vector<16x128xf32>
    %c0_18 = arith.constant 0 : index
    %c0_19 = arith.constant 0 : index
    %22 = vector.load %arg8[%c0_18, %c0_19] : memref<128x128xf32, #tpu.memory_space<vmem>>, vector<128x128xf32>
    %cst_20 = arith.constant dense<0.000000e+00> : vector<16x128xf32>
    %23 = tpu.matmul %21, %22, %cst_20 {dimension_numbers = #tpu.dot_dimension_numbers<[1], [0], [0], [1], [0, 0, 1, 1], [], []>} : vector<16x128xf32>, vector<128x128xf32>, vector<16x128xf32> -> vector<16x128xf32>
    %c0_21 = arith.constant 0 : index
    %c0_22 = arith.constant 0 : index
    %24 = vector.load %arg9[%c0_21, %c0_22] : memref<1x128xf32, #tpu.memory_space<vmem>>, vector<1x128xf32>
    %25 = vector.broadcast %24 : vector<1x128xf32> to vector<16x128xf32>
    %26 = arith.addf %23, %25 : vector<16x128xf32>
    %cst_23 = arith.constant 0.000000e+00 : f32
    %27 = vector.broadcast %cst_23 : f32 to vector<16x128xf32>
    %28 = arith.maximumf %26, %27 : vector<16x128xf32>
    %29 = arith.addf %28, %7 : vector<16x128xf32>
    %c0_24 = arith.constant 0 : index
    %c0_25 = arith.constant 0 : index
    %30 = vector.load %arg10[%c0_24, %c0_25] : memref<128x128xf32, #tpu.memory_space<vmem>>, vector<128x128xf32>
    %cst_26 = arith.constant dense<0.000000e+00> : vector<16x128xf32>
    %31 = tpu.matmul %29, %30, %cst_26 {dimension_numbers = #tpu.dot_dimension_numbers<[1], [0], [0], [1], [0, 0, 1, 1], [], []>} : vector<16x128xf32>, vector<128x128xf32>, vector<16x128xf32> -> vector<16x128xf32>
    %c0_27 = arith.constant 0 : index
    %c0_28 = arith.constant 0 : index
    %32 = vector.load %arg11[%c0_27, %c0_28] : memref<1x128xf32, #tpu.memory_space<vmem>>, vector<1x128xf32>
    %33 = vector.broadcast %32 : vector<1x128xf32> to vector<16x128xf32>
    %34 = arith.addf %31, %33 : vector<16x128xf32>
    %cst_29 = arith.constant 0.000000e+00 : f32
    %35 = vector.broadcast %cst_29 : f32 to vector<16x128xf32>
    %36 = arith.maximumf %34, %35 : vector<16x128xf32>
    %c0_30 = arith.constant 0 : index
    %c0_31 = arith.constant 0 : index
    %37 = vector.load %arg12[%c0_30, %c0_31] : memref<128x128xf32, #tpu.memory_space<vmem>>, vector<128x128xf32>
    %cst_32 = arith.constant dense<0.000000e+00> : vector<16x128xf32>
    %38 = tpu.matmul %36, %37, %cst_32 {dimension_numbers = #tpu.dot_dimension_numbers<[1], [0], [0], [1], [0, 0, 1, 1], [], []>} : vector<16x128xf32>, vector<128x128xf32>, vector<16x128xf32> -> vector<16x128xf32>
    %c0_33 = arith.constant 0 : index
    %c0_34 = arith.constant 0 : index
    %39 = vector.load %arg13[%c0_33, %c0_34] : memref<1x128xf32, #tpu.memory_space<vmem>>, vector<1x128xf32>
    %40 = vector.broadcast %39 : vector<1x128xf32> to vector<16x128xf32>
    %41 = arith.addf %38, %40 : vector<16x128xf32>
    %cst_35 = arith.constant 0.000000e+00 : f32
    %42 = vector.broadcast %cst_35 : f32 to vector<16x128xf32>
    %43 = arith.maximumf %41, %42 : vector<16x128xf32>
    %c0_36 = arith.constant 0 : index
    %c0_37 = arith.constant 0 : index
    %44 = vector.load %arg14[%c0_36, %c0_37] : memref<128x128xf32, #tpu.memory_space<vmem>>, vector<128x128xf32>
    %cst_38 = arith.constant dense<0.000000e+00> : vector<16x128xf32>
    %45 = tpu.matmul %43, %44, %cst_38 {dimension_numbers = #tpu.dot_dimension_numbers<[1], [0], [0], [1], [0, 0, 1, 1], [], []>} : vector<16x128xf32>, vector<128x128xf32>, vector<16x128xf32> -> vector<16x128xf32>
    %c0_39 = arith.constant 0 : index
    %c0_40 = arith.constant 0 : index
    %46 = vector.load %arg15[%c0_39, %c0_40] : memref<1x128xf32, #tpu.memory_space<vmem>>, vector<1x128xf32>
    %47 = vector.broadcast %46 : vector<1x128xf32> to vector<16x128xf32>
    %48 = arith.addf %45, %47 : vector<16x128xf32>
    %cst_41 = arith.constant 0.000000e+00 : f32
    %49 = vector.broadcast %cst_41 : f32 to vector<16x128xf32>
    %50 = arith.maximumf %48, %49 : vector<16x128xf32>
    %c0_42 = arith.constant 0 : index
    %c0_43 = arith.constant 0 : index
    %51 = vector.load %arg16[%c0_42, %c0_43] : memref<128x128xf32, #tpu.memory_space<vmem>>, vector<128x128xf32>
    %cst_44 = arith.constant dense<0.000000e+00> : vector<16x128xf32>
    %52 = tpu.matmul %50, %51, %cst_44 {dimension_numbers = #tpu.dot_dimension_numbers<[1], [0], [0], [1], [0, 0, 1, 1], [], []>} : vector<16x128xf32>, vector<128x128xf32>, vector<16x128xf32> -> vector<16x128xf32>
    %c0_45 = arith.constant 0 : index
    %c0_46 = arith.constant 0 : index
    %53 = vector.load %arg17[%c0_45, %c0_46] : memref<1x128xf32, #tpu.memory_space<vmem>>, vector<1x128xf32>
    %54 = vector.broadcast %53 : vector<1x128xf32> to vector<16x128xf32>
    %55 = arith.addf %52, %54 : vector<16x128xf32>
    %cst_47 = arith.constant 0.000000e+00 : f32
    %56 = vector.broadcast %cst_47 : f32 to vector<16x128xf32>
    %57 = arith.maximumf %55, %56 : vector<16x128xf32>
    %58 = arith.addf %57, %36 : vector<16x128xf32>
    %c0_48 = arith.constant 0 : index
    %c0_49 = arith.constant 0 : index
    %59 = vector.load %arg18[%c0_48, %c0_49] : memref<128x256xf32, #tpu.memory_space<vmem>>, vector<128x256xf32>
    %cst_50 = arith.constant dense<0.000000e+00> : vector<16x256xf32>
    %60 = tpu.matmul %58, %59, %cst_50 {dimension_numbers = #tpu.dot_dimension_numbers<[1], [0], [0], [1], [0, 0, 1, 1], [], []>} : vector<16x128xf32>, vector<128x256xf32>, vector<16x256xf32> -> vector<16x256xf32>
    %c0_51 = arith.constant 0 : index
    %c0_52 = arith.constant 0 : index
    %61 = vector.load %arg19[%c0_51, %c0_52] : memref<1x256xf32, #tpu.memory_space<vmem>>, vector<1x256xf32>
    %62 = vector.broadcast %61 : vector<1x256xf32> to vector<16x256xf32>
    %63 = arith.addf %60, %62 : vector<16x256xf32>
    %cst_53 = arith.constant 0.000000e+00 : f32
    %64 = vector.broadcast %cst_53 : f32 to vector<16x256xf32>
    %65 = arith.maximumf %63, %64 : vector<16x256xf32>
    %c0_54 = arith.constant 0 : index
    %c0_55 = arith.constant 0 : index
    %66 = vector.load %arg20[%c0_54, %c0_55] : memref<256x384xf32, #tpu.memory_space<vmem>>, vector<256x384xf32>
    %cst_56 = arith.constant dense<0.000000e+00> : vector<16x384xf32>
    %67 = tpu.matmul %65, %66, %cst_56 {dimension_numbers = #tpu.dot_dimension_numbers<[1], [0], [0], [1], [0, 0, 1, 1], [], []>} : vector<16x256xf32>, vector<256x384xf32>, vector<16x384xf32> -> vector<16x384xf32>
    %c0_57 = arith.constant 0 : index
    %c0_58 = arith.constant 0 : index
    %68 = vector.load %arg21[%c0_57, %c0_58] : memref<1x384xf32, #tpu.memory_space<vmem>>, vector<1x384xf32>
    %69 = vector.broadcast %68 : vector<1x384xf32> to vector<16x384xf32>
    %70 = arith.addf %67, %69 : vector<16x384xf32>
    %c0_59 = arith.constant 0 : index
    %c0_60 = arith.constant 0 : index
    %71 = vector.load %arg22[%c0_59, %c0_60] : memref<16x384xf32, #tpu.memory_space<vmem>>, vector<16x384xf32>
    tpu.vector_store %arg22[%c0_59, %c0_60], %70 {strides = array<i32>} : memref<16x384xf32, #tpu.memory_space<vmem>>, vector<16x384xf32>,
    return
  }
  func.func @transform_0(%arg0: i32) -> (i32, i32) {
    %c0_i32 = arith.constant 0 : i32
    %c0_i32_0 = arith.constant 0 : i32
    return %arg0, %c0_i32 : i32, i32
  }
  func.func @transform_1(%arg0: i32) -> (i32, i32) {
    %c0_i32 = arith.constant 0 : i32
    %c0_i32_0 = arith.constant 0 : i32
    %c0_i32_1 = arith.constant 0 : i32
    return %c0_i32, %c0_i32_0 : i32, i32
  }
  func.func @transform_2(%arg0: i32) -> (i32, i32) {
    %c0_i32 = arith.constant 0 : i32
    %c0_i32_0 = arith.constant 0 : i32
    %c0_i32_1 = arith.constant 0 : i32
    return %c0_i32, %c0_i32_0 : i32, i32
  }
  func.func @transform_3(%arg0: i32) -> (i32, i32) {
    %c0_i32 = arith.constant 0 : i32
    %c0_i32_0 = arith.constant 0 : i32
    %c0_i32_1 = arith.constant 0 : i32
    return %c0_i32, %c0_i32_0 : i32, i32
  }
  func.func @transform_4(%arg0: i32) -> (i32, i32) {
    %c0_i32 = arith.constant 0 : i32
    %c0_i32_0 = arith.constant 0 : i32
    %c0_i32_1 = arith.constant 0 : i32
    return %c0_i32, %c0_i32_0 : i32, i32
  }
  func.func @transform_5(%arg0: i32) -> (i32, i32) {
    %c0_i32 = arith.constant 0 : i32
    %c0_i32_0 = arith.constant 0 : i32
    %c0_i32_1 = arith.constant 0 : i32
    return %c0_i32, %c0_i32_0 : i32, i32
  }
  func.func @transform_6(%arg0: i32) -> (i32, i32) {
    %c0_i32 = arith.constant 0 : i32
    %c0_i32_0 = arith.constant 0 : i32
    %c0_i32_1 = arith.constant 0 : i32
    return %c0_i32, %c0_i32_0 : i32, i32
  }
  func.func @transform_7(%arg0: i32) -> (i32, i32) {
    %c0_i32 = arith.constant 0 : i32
    %c0_i32_0 = arith.constant 0 : i32
    %c0_i32_1 = arith.constant 0 : i32
    return %c0_i32, %c0_i32_0 : i32, i32
  }
  func.func @transform_8(%arg0: i32) -> (i32, i32) {
    %c0_i32 = arith.constant 0 : i32
    %c0_i32_0 = arith.constant 0 : i32
    %c0_i32_1 = arith.constant 0 : i32
    return %c0_i32, %c0_i32_0 : i32, i32
  }
  func.func @transform_9(%arg0: i32) -> (i32, i32) {
    %c0_i32 = arith.constant 0 : i32
    %c0_i32_0 = arith.constant 0 : i32
    %c0_i32_1 = arith.constant 0 : i32
    return %c0_i32, %c0_i32_0 : i32, i32
  }
  func.func @transform_10(%arg0: i32) -> (i32, i32) {
    %c0_i32 = arith.constant 0 : i32
    %c0_i32_0 = arith.constant 0 : i32
    %c0_i32_1 = arith.constant 0 : i32
    return %c0_i32, %c0_i32_0 : i32, i32
  }
  func.func @transform_11(%arg0: i32) -> (i32, i32) {
    %c0_i32 = arith.constant 0 : i32
    %c0_i32_0 = arith.constant 0 : i32
    %c0_i32_1 = arith.constant 0 : i32
    return %c0_i32, %c0_i32_0 : i32, i32
  }
  func.func @transform_12(%arg0: i32) -> (i32, i32) {
    %c0_i32 = arith.constant 0 : i32
    %c0_i32_0 = arith.constant 0 : i32
    %c0_i32_1 = arith.constant 0 : i32
    return %c0_i32, %c0_i32_0 : i32, i32
  }
  func.func @transform_13(%arg0: i32) -> (i32, i32) {
    %c0_i32 = arith.constant 0 : i32
    %c0_i32_0 = arith.constant 0 : i32
    %c0_i32_1 = arith.constant 0 : i32
    return %c0_i32, %c0_i32_0 : i32, i32
  }
  func.func @transform_14(%arg0: i32) -> (i32, i32) {
    %c0_i32 = arith.constant 0 : i32
    %c0_i32_0 = arith.constant 0 : i32
    %c0_i32_1 = arith.constant 0 : i32
    return %c0_i32, %c0_i32_0 : i32, i32
  }
  func.func @transform_15(%arg0: i32) -> (i32, i32) {
    %c0_i32 = arith.constant 0 : i32
    %c0_i32_0 = arith.constant 0 : i32
    %c0_i32_1 = arith.constant 0 : i32
    return %c0_i32, %c0_i32_0 : i32, i32
  }
  func.func @transform_16(%arg0: i32) -> (i32, i32) {
    %c0_i32 = arith.constant 0 : i32
    %c0_i32_0 = arith.constant 0 : i32
    %c0_i32_1 = arith.constant 0 : i32
    return %c0_i32, %c0_i32_0 : i32, i32
  }
  func.func @transform_17(%arg0: i32) -> (i32, i32) {
    %c0_i32 = arith.constant 0 : i32
    %c0_i32_0 = arith.constant 0 : i32
    %c0_i32_1 = arith.constant 0 : i32
    return %c0_i32, %c0_i32_0 : i32, i32
  }
  func.func @transform_18(%arg0: i32) -> (i32, i32) {
    %c0_i32 = arith.constant 0 : i32
    %c0_i32_0 = arith.constant 0 : i32
    %c0_i32_1 = arith.constant 0 : i32
    return %c0_i32, %c0_i32_0 : i32, i32
  }
  func.func @transform_19(%arg0: i32) -> (i32, i32) {
    %c0_i32 = arith.constant 0 : i32
    %c0_i32_0 = arith.constant 0 : i32
    %c0_i32_1 = arith.constant 0 : i32
    return %c0_i32, %c0_i32_0 : i32, i32
  }
  func.func @transform_20(%arg0: i32) -> (i32, i32) {
    %c0_i32 = arith.constant 0 : i32
    %c0_i32_0 = arith.constant 0 : i32
    %c0_i32_1 = arith.constant 0 : i32
    return %c0_i32, %c0_i32_0 : i32, i32
  }
  func.func @transform_21(%arg0: i32) -> (i32, i32) {
    %c0_i32 = arith.constant 0 : i32
    %c0_i32_0 = arith.constant 0 : i32
    return %arg0, %c0_i32 : i32, i32
  }
}

module attributes {stable_mosaic.version = 11 : i64} {
  func.func @recurrent_kernel(%arg0: i32, %arg1: memref<8x2x384xf32, #tpu.memory_space<vmem>>, %arg2: memref<1x256xf32, #tpu.memory_space<vmem>>, %arg3: memref<256x384xf32, #tpu.memory_space<vmem>>, %arg4: memref<384x384xf32, #tpu.memory_space<vmem>>, %arg5: memref<1x384xf32, #tpu.memory_space<vmem>>, %arg6: memref<384x256xf32, #tpu.memory_space<vmem>>, %arg7: memref<1x256xf32, #tpu.memory_space<vmem>>, %arg8: memref<8x2x256xf32, #tpu.memory_space<vmem>>, %arg9: memref<2x256xf32, #tpu.memory_space<vmem>>) attributes {dimension_semantics = [#tpu.dimension_semantics<arbitrary>], iteration_bounds = array<i64: 1>, scalar_prefetch = 0 : i64, scratch_operands = 1 : i64, tpu.core_type = #tpu.core_type<tc>, window_params = [{transform_indices = @transform_0, window_bounds = array<i64: 8, 2, 384>}, {pipeline_mode = #tpu.pipeline_mode<synchronous>, transform_indices = @transform_1, window_bounds = array<i64: 1, 256>}, {pipeline_mode = #tpu.pipeline_mode<synchronous>, transform_indices = @transform_2, window_bounds = array<i64: 256, 384>}, {pipeline_mode = #tpu.pipeline_mode<synchronous>, transform_indices = @transform_3, window_bounds = array<i64: 384, 384>}, {pipeline_mode = #tpu.pipeline_mode<synchronous>, transform_indices = @transform_4, window_bounds = array<i64: 1, 384>}, {pipeline_mode = #tpu.pipeline_mode<synchronous>, transform_indices = @transform_5, window_bounds = array<i64: 384, 256>}, {pipeline_mode = #tpu.pipeline_mode<synchronous>, transform_indices = @transform_6, window_bounds = array<i64: 1, 256>}, {transform_indices = @transform_7, window_bounds = array<i64: 8, 2, 256>}]} {
    %c0_i32 = arith.constant 0 : i32
    %0 = arith.cmpi eq, %arg0, %c0_i32 : i32
    %1 = arith.extui %0 : i1 to i32
    %c0_i32_0 = arith.constant 0 : i32
    %2 = arith.cmpi ne, %1, %c0_i32_0 : i32
    scf.if %2 {
      %c0_16 = arith.constant 0 : index
      %c0_17 = arith.constant 0 : index
      %12 = vector.load %arg2[%c0_16, %c0_17] : memref<1x256xf32, #tpu.memory_space<vmem>>, vector<1x256xf32>
      %13 = vector.shape_cast %12 : vector<1x256xf32> to vector<1x256xf32>
      %14 = vector.broadcast %13 : vector<1x256xf32> to vector<2x256xf32>
      %c0_18 = arith.constant 0 : index
      %c0_19 = arith.constant 0 : index
      %15 = vector.load %arg9[%c0_18, %c0_19] : memref<2x256xf32, #tpu.memory_space<vmem>>, vector<2x256xf32>
      tpu.vector_store %arg9[%c0_18, %c0_19], %14 {strides = array<i32>} : memref<2x256xf32, #tpu.memory_space<vmem>>, vector<2x256xf32>,
    } else {
    }
    %c0 = arith.constant 0 : index
    %c0_1 = arith.constant 0 : index
    %3 = vector.load %arg3[%c0, %c0_1] : memref<256x384xf32, #tpu.memory_space<vmem>>, vector<256x384xf32>
    %c0_2 = arith.constant 0 : index
    %c0_3 = arith.constant 0 : index
    %4 = vector.load %arg4[%c0_2, %c0_3] : memref<384x384xf32, #tpu.memory_space<vmem>>, vector<384x384xf32>
    %c0_4 = arith.constant 0 : index
    %c0_5 = arith.constant 0 : index
    %5 = vector.load %arg5[%c0_4, %c0_5] : memref<1x384xf32, #tpu.memory_space<vmem>>, vector<1x384xf32>
    %c0_6 = arith.constant 0 : index
    %c0_7 = arith.constant 0 : index
    %6 = vector.load %arg6[%c0_6, %c0_7] : memref<384x256xf32, #tpu.memory_space<vmem>>, vector<384x256xf32>
    %c0_8 = arith.constant 0 : index
    %c0_9 = arith.constant 0 : index
    %7 = vector.load %arg7[%c0_8, %c0_9] : memref<1x256xf32, #tpu.memory_space<vmem>>, vector<1x256xf32>
    %c0_10 = arith.constant 0 : index
    %c0_11 = arith.constant 0 : index
    %8 = vector.load %arg9[%c0_10, %c0_11] : memref<2x256xf32, #tpu.memory_space<vmem>>, vector<2x256xf32>
    %c0_i32_12 = arith.constant 0 : i32
    %c8_i32 = arith.constant 8 : i32
    %9 = arith.addi %c0_i32_12, %c8_i32 : i32
    %c1_i32 = arith.constant 1 : i32
    %10 = scf.for %arg10 = %c0_i32_12 to %9 step %c1_i32 iter_args(%arg11 = %8) -> (vector<2x256xf32>)  : i32 {
      %12 = arith.index_cast %arg10 : i32 to index
      %c0_16 = arith.constant 0 : index
      %c0_17 = arith.constant 0 : index
      %13 = vector.load %arg1[%12, %c0_16, %c0_17] : memref<8x2x384xf32, #tpu.memory_space<vmem>>, vector<1x2x384xf32>
      %14 = vector.shape_cast %13 : vector<1x2x384xf32> to vector<2x384xf32>
      %cst = arith.constant dense<0.000000e+00> : vector<2x384xf32>
      %15 = tpu.matmul %arg11, %3, %cst {dimension_numbers = #tpu.dot_dimension_numbers<[1], [0], [0], [1], [0, 0, 1, 1], [], []>} : vector<2x256xf32>, vector<256x384xf32>, vector<2x384xf32> -> vector<2x384xf32>
      %16 = arith.addf %14, %15 : vector<2x384xf32>
      %cst_18 = arith.constant 0.000000e+00 : f32
      %17 = vector.broadcast %cst_18 : f32 to vector<2x384xf32>
      %18 = arith.maximumf %16, %17 : vector<2x384xf32>
      %cst_19 = arith.constant dense<0.000000e+00> : vector<2x384xf32>
      %19 = tpu.matmul %18, %4, %cst_19 {dimension_numbers = #tpu.dot_dimension_numbers<[1], [0], [0], [1], [0, 0, 1, 1], [], []>} : vector<2x384xf32>, vector<384x384xf32>, vector<2x384xf32> -> vector<2x384xf32>
      %20 = vector.broadcast %5 : vector<1x384xf32> to vector<2x384xf32>
      %21 = arith.addf %19, %20 : vector<2x384xf32>
      %cst_20 = arith.constant 0.000000e+00 : f32
      %22 = vector.broadcast %cst_20 : f32 to vector<2x384xf32>
      %23 = arith.maximumf %21, %22 : vector<2x384xf32>
      %cst_21 = arith.constant dense<0.000000e+00> : vector<2x256xf32>
      %24 = tpu.matmul %23, %6, %cst_21 {dimension_numbers = #tpu.dot_dimension_numbers<[1], [0], [0], [1], [0, 0, 1, 1], [], []>} : vector<2x384xf32>, vector<384x256xf32>, vector<2x256xf32> -> vector<2x256xf32>
      %25 = vector.broadcast %7 : vector<1x256xf32> to vector<2x256xf32>
      %26 = arith.addf %24, %25 : vector<2x256xf32>
      %27 = arith.index_cast %arg10 : i32 to index
      %c0_22 = arith.constant 0 : index
      %c0_23 = arith.constant 0 : index
      %28 = vector.load %arg8[%27, %c0_22, %c0_23] : memref<8x2x256xf32, #tpu.memory_space<vmem>>, vector<1x2x256xf32>
      %29 = vector.shape_cast %28 : vector<1x2x256xf32> to vector<2x256xf32>
      %30 = vector.shape_cast %26 : vector<2x256xf32> to vector<1x2x256xf32>
      tpu.vector_store %arg8[%27, %c0_22, %c0_23], %30 {strides = array<i32>} : memref<8x2x256xf32, #tpu.memory_space<vmem>>, vector<1x2x256xf32>,
      scf.yield %26 : vector<2x256xf32>
    }
    %c8_i32_13 = arith.constant 8 : i32
    %c0_14 = arith.constant 0 : index
    %c0_15 = arith.constant 0 : index
    %11 = vector.load %arg9[%c0_14, %c0_15] : memref<2x256xf32, #tpu.memory_space<vmem>>, vector<2x256xf32>
    tpu.vector_store %arg9[%c0_14, %c0_15], %10 {strides = array<i32>} : memref<2x256xf32, #tpu.memory_space<vmem>>, vector<2x256xf32>,
    return
  }
  func.func @transform_0(%arg0: i32) -> (i32, i32, i32) {
    %c0_i32 = arith.constant 0 : i32
    %c0_i32_0 = arith.constant 0 : i32
    %c0_i32_1 = arith.constant 0 : i32
    return %arg0, %c0_i32, %c0_i32_0 : i32, i32, i32
  }
  func.func @transform_1(%arg0: i32) -> (i32, i32) {
    %c0_i32 = arith.constant 0 : i32
    %c0_i32_0 = arith.constant 0 : i32
    %c0_i32_1 = arith.constant 0 : i32
    return %c0_i32, %c0_i32_0 : i32, i32
  }
  func.func @transform_2(%arg0: i32) -> (i32, i32) {
    %c0_i32 = arith.constant 0 : i32
    %c0_i32_0 = arith.constant 0 : i32
    %c0_i32_1 = arith.constant 0 : i32
    return %c0_i32, %c0_i32_0 : i32, i32
  }
  func.func @transform_3(%arg0: i32) -> (i32, i32) {
    %c0_i32 = arith.constant 0 : i32
    %c0_i32_0 = arith.constant 0 : i32
    %c0_i32_1 = arith.constant 0 : i32
    return %c0_i32, %c0_i32_0 : i32, i32
  }
  func.func @transform_4(%arg0: i32) -> (i32, i32) {
    %c0_i32 = arith.constant 0 : i32
    %c0_i32_0 = arith.constant 0 : i32
    %c0_i32_1 = arith.constant 0 : i32
    return %c0_i32, %c0_i32_0 : i32, i32
  }
  func.func @transform_5(%arg0: i32) -> (i32, i32) {
    %c0_i32 = arith.constant 0 : i32
    %c0_i32_0 = arith.constant 0 : i32
    %c0_i32_1 = arith.constant 0 : i32
    return %c0_i32, %c0_i32_0 : i32, i32
  }
  func.func @transform_6(%arg0: i32) -> (i32, i32) {
    %c0_i32 = arith.constant 0 : i32
    %c0_i32_0 = arith.constant 0 : i32
    %c0_i32_1 = arith.constant 0 : i32
    return %c0_i32, %c0_i32_0 : i32, i32
  }
  func.func @transform_7(%arg0: i32) -> (i32, i32, i32) {
    %c0_i32 = arith.constant 0 : i32
    %c0_i32_0 = arith.constant 0 : i32
    %c0_i32_1 = arith.constant 0 : i32
    return %arg0, %c0_i32, %c0_i32_0 : i32, i32, i32
  }
}

</mosaic_0001>

<llo_original>
// kernel: model_map_predict.2
$region0: #{model_map_predict.2}
  #allocation0 [shape = 'u32[]', space=smem, size = 0x4, offset = 0x4, fixed_abs, tag = 'smem constant byte address 0x4 - core index']
  #allocation1 [shape = 'u32[144,128]{1,0:T(1,128)}', space=vmem, size = 0x12000, scoped, tag = 'internal scratch']
  %s0 = inlined_call_operand.vmem [shape: f32[16,32], index: 0, kind: input, shape index: {}]
  %s1 = inlined_call_operand.hbm [shape: f32[32,128], index: 1, kind: input, shape index: {}]
  %s2 = inlined_call_operand.hbm [shape: f32[1,128], index: 2, kind: input, shape index: {}]
  %s3 = inlined_call_operand.hbm [shape: f32[128,128], index: 3, kind: input, shape index: {}]
  %s4 = inlined_call_operand.hbm [shape: f32[1,128], index: 4, kind: input, shape index: {}]
  %s5 = inlined_call_operand.hbm [shape: f32[128,128], index: 5, kind: input, shape index: {}]
  %s6 = inlined_call_operand.hbm [shape: f32[1,128], index: 6, kind: input, shape index: {}]
  %s7 = inlined_call_operand.hbm [shape: f32[128,128], index: 7, kind: input, shape index: {}]
  %s8 = inlined_call_operand.hbm [shape: f32[1,128], index: 8, kind: input, shape index: {}]
  %s9 = inlined_call_operand.hbm [shape: f32[128,128], index: 9, kind: input, shape index: {}]
  %s10 = inlined_call_operand.hbm [shape: f32[1,128], index: 10, kind: input, shape index: {}]
  %s11 = inlined_call_operand.hbm [shape: f32[128,128], index: 11, kind: input, shape index: {}]
  %s12 = inlined_call_operand.hbm [shape: f32[1,128], index: 12, kind: input, shape index: {}]
  %s13 = inlined_call_operand.hbm [shape: f32[128,128], index: 13, kind: input, shape index: {}]
  %s14 = inlined_call_operand.hbm [shape: f32[1,128], index: 14, kind: input, shape index: {}]
  %s15 = inlined_call_operand.hbm [shape: f32[128,128], index: 15, kind: input, shape index: {}]
  %s16 = inlined_call_operand.hbm [shape: f32[1,128], index: 16, kind: input, shape index: {}]
  %s17 = inlined_call_operand.hbm [shape: f32[128,256], index: 17, kind: input, shape index: {}]
  %s18 = inlined_call_operand.hbm [shape: f32[1,256], index: 18, kind: input, shape index: {}]
  %s19 = inlined_call_operand.hbm [shape: f32[256,384], index: 19, kind: input, shape index: {}]
  %s20 = inlined_call_operand.hbm [shape: f32[1,384], index: 20, kind: input, shape index: {}]
  %s21 = inlined_call_operand.vmem [shape: f32[16,384], index: 21, kind: output, shape index: {}]
  %s22 = sld [smem:[#allocation0]]
  $region174: #{model_map_predict.2} parent=0
    _
  %s24 = ssub.s32 1, %s22
  %s25 = scalar_select 0, %s24, %s22
  $region1: #{model_map_predict.2} parent=0
    #allocation2 [shape = 'u8[16384]{0}', space=vmem, size = 0x4000, scoped, tag = 'input window, operand 1, single buffered']
    #allocation3 [shape = 's32[1]{0}', space=sflag, size = 0x4, scoped, tag = 'scoped memory for model_map_predict.2']
    #allocation4 [shape = 'u8[512]{0}', space=vmem, size = 0x400, scoped, tag = 'input window, operand 2, single buffered']
    #allocation5 [shape = 's32[1]{0}', space=sflag, size = 0x4, scoped, tag = 'scoped memory for model_map_predict.2']
    #allocation6 [shape = 'u8[65536]{0}', space=vmem, size = 0x10000, scoped, tag = 'input window, operand 3, single buffered']
    #allocation7 [shape = 'u8[512]{0}', space=vmem, size = 0x400, scoped, tag = 'input window, operand 4, single buffered']
    #allocation8 [shape = 's32[1]{0}', space=sflag, size = 0x4, scoped, tag = 'scoped memory for model_map_predict.2']
    #allocation9 [shape = 'u8[65536]{0}', space=vmem, size = 0x10000, scoped, tag = 'input window, operand 5, single buffered']
    #allocation10 [shape = 'u8[512]{0}', space=vmem, size = 0x400, scoped, tag = 'input window, operand 6, single buffered']
    #allocation11 [shape = 's32[1]{0}', space=sflag, size = 0x4, scoped, tag = 'scoped memory for model_map_predict.2']
    #allocation12 [shape = 'u8[65536]{0}', space=vmem, size = 0x10000, scoped, tag = 'input window, operand 7, single buffered']
    #allocation13 [shape = 'u8[512]{0}', space=vmem, size = 0x400, scoped, tag = 'input window, operand 8, single buffered']
    #allocation14 [shape = 's32[1]{0}', space=sflag, size = 0x4, scoped, tag = 'scoped memory for model_map_predict.2']
    #allocation15 [shape = 'u8[65536]{0}', space=vmem, size = 0x10000, scoped, tag = 'input window, operand 9, single buffered']
    #allocation16 [shape = 'u8[512]{0}', space=vmem, size = 0x400, scoped, tag = 'input window, operand 10, single buffered']
    #allocation17 [shape = 's32[1]{0}', space=sflag, size = 0x4, scoped, tag = 'scoped memory for model_map_predict.2']
    #allocation18 [shape = 'u8[65536]{0}', space=vmem, size = 0x10000, scoped, tag = 'input window, operand 11, single buffered']
    #allocation19 [shape = 'u8[512]{0}', space=vmem, size = 0x400, scoped, tag = 'input window, operand 12, single buffered']
    #allocation20 [shape = 's32[1]{0}', space=sflag, size = 0x4, scoped, tag = 'scoped memory for model_map_predict.2']
    #allocation21 [shape = 'u8[65536]{0}', space=vmem, size = 0x10000, scoped, tag = 'input window, operand 13, single buffered']
    #allocation22 [shape = 'u8[512]{0}', space=vmem, size = 0x400, scoped, tag = 'input window, operand 14, single buffered']
    #allocation23 [shape = 's32[1]{0}', space=sflag, size = 0x4, scoped, tag = 'scoped memory for model_map_predict.2']
    #allocation24 [shape = 'u8[65536]{0}', space=vmem, size = 0x10000, scoped, tag = 'input window, operand 15, single buffered']
    #allocation25 [shape = 'u8[512]{0}', space=vmem, size = 0x400, scoped, tag = 'input window, operand 16, single buffered']
    #allocation26 [shape = 's32[1]{0}', space=sflag, size = 0x4, scoped, tag = 'scoped memory for model_map_predict.2']
    #allocation27 [shape = 'u8[131072]{0}', space=vmem, size = 0x20000, scoped, tag = 'input window, operand 17, single buffered']
    #allocation28 [shape = 'u8[1024]{0}', space=vmem, size = 0x400, scoped, tag = 'input window, operand 18, single buffered']
    #allocation29 [shape = 's32[1]{0}', space=sflag, size = 0x4, scoped, tag = 'scoped memory for model_map_predict.2']
    #allocation30 [shape = 'u8[393216]{0}', space=vmem, size = 0x60000, scoped, tag = 'input window, operand 19, single buffered']
    #allocation31 [shape = 'u8[1536]{0}', space=vmem, size = 0x800, scoped, tag = 'input window, operand 20, single buffered']
    #allocation32 [shape = 's32[1]{0}', space=sflag, size = 0x4, scoped, tag = 'scoped memory for model_map_predict.2']
    %26 = vsyncpa [#allocation3], 0
    %27 = vsyncpa [#allocation5], 0
    %28 = vsyncpa [#allocation8], 0
    %29 = vsyncpa [#allocation11], 0
    %30 = vsyncpa [#allocation14], 0
    %31 = vsyncpa [#allocation17], 0
    %32 = vsyncpa [#allocation20], 0
    %33 = vsyncpa [#allocation23], 0
    %34 = vsyncpa [#allocation26], 0
    %35 = vsyncpa [#allocation29], 0
    %36 = vsyncpa [#allocation32], 0
    // Predicated region
    $region2: #{model_map_predict.2} parent=1 // pred_check
      _
    $region3: #{model_map_predict.2} parent=1 // pred_check_branch
      %38 = sbr.rel (0) target = $region5
    $region4: #{model_map_predict.2} parent=1 // pred_region
      _
    $region5: #{model_map_predict.2} parent=1 // pred_fallthru
      _
    // Predicated region
    $region6: #{model_map_predict.2} parent=1 // pred_check
      _
    $region7: #{model_map_predict.2} parent=1 // pred_check_branch
      %40 = sbr.rel (0) target = $region9
    $region8: #{model_map_predict.2} parent=1 // pred_region
      %s42 = ssub.s32 512, 512
      %43 = vsyncadd [#allocation3], %s42
      %s44 = sshll.u32 [#allocation2], 4
      %s45 = int_to_ptr.vmem [resolvable:$true] %s44
      %50 = dma.hbm_to_vmem [thread:$0]  %s1, 512, %s45, [#allocation3], 128, 128, 8
    $region9: #{model_map_predict.2} parent=1 // pred_fallthru
      _
    // Predicated region
    $region10: #{model_map_predict.2} parent=1 // pred_check
      _
    $region11: #{model_map_predict.2} parent=1 // pred_check_branch
      %52 = sbr.rel (0) target = $region13
    $region12: #{model_map_predict.2} parent=1 // pred_region
      %s54 = ssub.s32 16, 16
      %55 = vsyncadd [#allocation5], %s54
      %s57 = sshll.u32 [#allocation4], 4
      %s58 = int_to_ptr.vmem [resolvable:$true] %s57
      %60 = dma.hbm_to_vmem [thread:$0]  %s2, 16, %s58, [#allocation5]
    $region13: #{model_map_predict.2} parent=1 // pred_fallthru
      _
    // Predicated region
    $region14: #{model_map_predict.2} parent=1 // pred_check
      _
    $region15: #{model_map_predict.2} parent=1 // pred_check_branch
      %62 = sbr.rel (0) target = $region17
    $region16: #{model_map_predict.2} parent=1 // pred_region
      %s64 = ssub.s32 2048, 2048
      %65 = vsyncadd [#allocation5], %s64
      %s66 = sshll.u32 [#allocation6], 4
      %s67 = int_to_ptr.vmem [resolvable:$true] %s66
      %72 = dma.hbm_to_vmem [thread:$0]  %s3, 2048, %s67, [#allocation5], 128, 128, 8
    $region17: #{model_map_predict.2} parent=1 // pred_fallthru
      _
    // Predicated region
    $region18: #{model_map_predict.2} parent=1 // pred_check
      _
    $region19: #{model_map_predict.2} parent=1 // pred_check_branch
      %74 = sbr.rel (0) target = $region21
    $region20: #{model_map_predict.2} parent=1 // pred_region
      %s76 = ssub.s32 16, 16
      %77 = vsyncadd [#allocation8], %s76
      %s79 = sshll.u32 [#allocation7], 4
      %s80 = int_to_ptr.vmem [resolvable:$true] %s79
      %82 = dma.hbm_to_vmem [thread:$0]  %s4, 16, %s80, [#allocation8]
    $region21: #{model_map_predict.2} parent=1 // pred_fallthru
      _
    // Predicated region
    $region22: #{model_map_predict.2} parent=1 // pred_check
      _
    $region23: #{model_map_predict.2} parent=1 // pred_check_branch
      %84 = sbr.rel (0) target = $region25
    $region24: #{model_map_predict.2} parent=1 // pred_region
      %s86 = ssub.s32 2048, 2048
      %87 = vsyncadd [#allocation8], %s86
      %s88 = sshll.u32 [#allocation9], 4
      %s89 = int_to_ptr.vmem [resolvable:$true] %s88
      %94 = dma.hbm_to_vmem [thread:$0]  %s5, 2048, %s89, [#allocation8], 128, 128, 8
    $region25: #{model_map_predict.2} parent=1 // pred_fallthru
      _
    // Predicated region
    $region26: #{model_map_predict.2} parent=1 // pred_check
      _
    $region27: #{model_map_predict.2} parent=1 // pred_check_branch
      %96 = sbr.rel (0) target = $region29
    $region28: #{model_map_predict.2} parent=1 // pred_region
      %s98 = ssub.s32 16, 16
      %99 = vsyncadd [#allocation11], %s98
      %s101 = sshll.u32 [#allocation10], 4
      %s102 = int_to_ptr.vmem [resolvable:$true] %s101
      %104 = dma.hbm_to_vmem [thread:$0]  %s6, 16, %s102, [#allocation11]
    $region29: #{model_map_predict.2} parent=1 // pred_fallthru
      _
    // Predicated region
    $region30: #{model_map_predict.2} parent=1 // pred_check
      _
    $region31: #{model_map_predict.2} parent=1 // pred_check_branch
      %106 = sbr.rel (0) target = $region33
    $region32: #{model_map_predict.2} parent=1 // pred_region
      %s108 = ssub.s32 2048, 2048
      %109 = vsyncadd [#allocation11], %s108
      %s110 = sshll.u32 [#allocation12], 4
      %s111 = int_to_ptr.vmem [resolvable:$true] %s110
      %116 = dma.hbm_to_vmem [thread:$0]  %s7, 2048, %s111, [#allocation11], 128, 128, 8
    $region33: #{model_map_predict.2} parent=1 // pred_fallthru
      _
    // Predicated region
    $region34: #{model_map_predict.2} parent=1 // pred_check
      _
    $region35: #{model_map_predict.2} parent=1 // pred_check_branch
      %118 = sbr.rel (0) target = $region37
    $region36: #{model_map_predict.2} parent=1 // pred_region
      %s120 = ssub.s32 16, 16
      %121 = vsyncadd [#allocation14], %s120
      %s123 = sshll.u32 [#allocation13], 4
      %s124 = int_to_ptr.vmem [resolvable:$true] %s123
      %126 = dma.hbm_to_vmem [thread:$0]  %s8, 16, %s124, [#allocation14]
    $region37: #{model_map_predict.2} parent=1 // pred_fallthru
      _
    // Predicated region
    $region38: #{model_map_predict.2} parent=1 // pred_check
      _
    $region39: #{model_map_predict.2} parent=1 // pred_check_branch
      %128 = sbr.rel (0) target = $region41
    $region40: #{model_map_predict.2} parent=1 // pred_region
      %s130 = ssub.s32 2048, 2048
      %131 = vsyncadd [#allocation14], %s130
      %s132 = sshll.u32 [#allocation15], 4
      %s133 = int_to_ptr.vmem [resolvable:$true] %s132
      %138 = dma.hbm_to_vmem [thread:$0]  %s9, 2048, %s133, [#allocation14], 128, 128, 8
    $region41: #{model_map_predict.2} parent=1 // pred_fallthru
      _
    // Predicated region
    $region42: #{model_map_predict.2} parent=1 // pred_check
      _
    $region43: #{model_map_predict.2} parent=1 // pred_check_branch
      %140 = sbr.rel (0) target = $region45
    $region44: #{model_map_predict.2} parent=1 // pred_region
      %s142 = ssub.s32 16, 16
      %143 = vsyncadd [#allocation17], %s142
      %s145 = sshll.u32 [#allocation16], 4
      %s146 = int_to_ptr.vmem [resolvable:$true] %s145
      %148 = dma.hbm_to_vmem [thread:$0]  %s10, 16, %s146, [#allocation17]
    $region45: #{model_map_predict.2} parent=1 // pred_fallthru
      _
    // Predicated region
    $region46: #{model_map_predict.2} parent=1 // pred_check
      _
    $region47: #{model_map_predict.2} parent=1 // pred_check_branch
      %150 = sbr.rel (0) target = $region49
    $region48: #{model_map_predict.2} parent=1 // pred_region
      %s152 = ssub.s32 2048, 2048
      %153 = vsyncadd [#allocation17], %s152
      %s154 = sshll.u32 [#allocation18], 4
      %s155 = int_to_ptr.vmem [resolvable:$true] %s154
      %160 = dma.hbm_to_vmem [thread:$0]  %s11, 2048, %s155, [#allocation17], 128, 128, 8
    $region49: #{model_map_predict.2} parent=1 // pred_fallthru
      _
    // Predicated region
    $region50: #{model_map_predict.2} parent=1 // pred_check
      _
    $region51: #{model_map_predict.2} parent=1 // pred_check_branch
      %162 = sbr.rel (0) target = $region53
    $region52: #{model_map_predict.2} parent=1 // pred_region
      %s164 = ssub.s32 16, 16
      %165 = vsyncadd [#allocation20], %s164
      %s167 = sshll.u32 [#allocation19], 4
      %s168 = int_to_ptr.vmem [resolvable:$true] %s167
      %170 = dma.hbm_to_vmem [thread:$0]  %s12, 16, %s168, [#allocation20]
    $region53: #{model_map_predict.2} parent=1 // pred_fallthru
      _
    // Predicated region
    $region54: #{model_map_predict.2} parent=1 // pred_check
      _
    $region55: #{model_map_predict.2} parent=1 // pred_check_branch
      %172 = sbr.rel (0) target = $region57
    $region56: #{model_map_predict.2} parent=1 // pred_region
      %s174 = ssub.s32 2048, 2048
      %175 = vsyncadd [#allocation20], %s174
      %s176 = sshll.u32 [#allocation21], 4
      %s177 = int_to_ptr.vmem [resolvable:$true] %s176
      %182 = dma.hbm_to_vmem [thread:$0]  %s13, 2048, %s177, [#allocation20], 128, 128, 8
    $region57: #{model_map_predict.2} parent=1 // pred_fallthru
      _
    // Predicated region
    $region58: #{model_map_predict.2} parent=1 // pred_check
      _
    $region59: #{model_map_predict.2} parent=1 // pred_check_branch
      %184 = sbr.rel (0) target = $region61
    $region60: #{model_map_predict.2} parent=1 // pred_region
      %s186 = ssub.s32 16, 16
      %187 = vsyncadd [#allocation23], %s186
      %s189 = sshll.u32 [#allocation22], 4
      %s190 = int_to_ptr.vmem [resolvable:$true] %s189
      %192 = dma.hbm_to_vmem [thread:$0]  %s14, 16, %s190, [#allocation23]
    $region61: #{model_map_predict.2} parent=1 // pred_fallthru
      _
    // Predicated region
    $region62: #{model_map_predict.2} parent=1 // pred_check
      _
    $region63: #{model_map_predict.2} parent=1 // pred_check_branch
      %194 = sbr.rel (0) target = $region65
    $region64: #{model_map_predict.2} parent=1 // pred_region
      %s196 = ssub.s32 2048, 2048
      %197 = vsyncadd [#allocation23], %s196
      %s198 = sshll.u32 [#allocation24], 4
      %s199 = int_to_ptr.vmem [resolvable:$true] %s198
      %204 = dma.hbm_to_vmem [thread:$0]  %s15, 2048, %s199, [#allocation23], 128, 128, 8
    $region65: #{model_map_predict.2} parent=1 // pred_fallthru
      _
    // Predicated region
    $region66: #{model_map_predict.2} parent=1 // pred_check
      _
    $region67: #{model_map_predict.2} parent=1 // pred_check_branch
      %206 = sbr.rel (0) target = $region69
    $region68: #{model_map_predict.2} parent=1 // pred_region
      %s208 = ssub.s32 16, 16
      %209 = vsyncadd [#allocation26], %s208
      %s211 = sshll.u32 [#allocation25], 4
      %s212 = int_to_ptr.vmem [resolvable:$true] %s211
      %214 = dma.hbm_to_vmem [thread:$0]  %s16, 16, %s212, [#allocation26]
    $region69: #{model_map_predict.2} parent=1 // pred_fallthru
      _
    // Predicated region
    $region70: #{model_map_predict.2} parent=1 // pred_check
      _
    $region71: #{model_map_predict.2} parent=1 // pred_check_branch
      %216 = sbr.rel (0) target = $region73
    $region72: #{model_map_predict.2} parent=1 // pred_region
      %s218 = ssub.s32 4096, 4096
      %219 = vsyncadd [#allocation26], %s218
      %s220 = sshll.u32 [#allocation27], 4
      %s221 = int_to_ptr.vmem [resolvable:$true] %s220
      %226 = dma.hbm_to_vmem [thread:$0]  %s17, 4096, %s221, [#allocation26], 256, 256, 16
    $region73: #{model_map_predict.2} parent=1 // pred_fallthru
      _
    // Predicated region
    $region74: #{model_map_predict.2} parent=1 // pred_check
      _
    $region75: #{model_map_predict.2} parent=1 // pred_check_branch
      %228 = sbr.rel (0) target = $region77
    $region76: #{model_map_predict.2} parent=1 // pred_region
      %s230 = ssub.s32 32, 32
      %231 = vsyncadd [#allocation29], %s230
      %s233 = sshll.u32 [#allocation28], 4
      %s234 = int_to_ptr.vmem [resolvable:$true] %s233
      %236 = dma.hbm_to_vmem [thread:$0]  %s18, 32, %s234, [#allocation29]
    $region77: #{model_map_predict.2} parent=1 // pred_fallthru
      _
    // Predicated region
    $region78: #{model_map_predict.2} parent=1 // pred_check
      _
    $region79: #{model_map_predict.2} parent=1 // pred_check_branch
      %238 = sbr.rel (0) target = $region81
    $region80: #{model_map_predict.2} parent=1 // pred_region
      %s240 = ssub.s32 12288, 12288
      %241 = vsyncadd [#allocation29], %s240
      %s242 = sshll.u32 [#allocation30], 4
      %s243 = int_to_ptr.vmem [resolvable:$true] %s242
      %248 = dma.hbm_to_vmem [thread:$0]  %s19, 12288, %s243, [#allocation29], 384, 384, 24
    $region81: #{model_map_predict.2} parent=1 // pred_fallthru
      _
    // Predicated region
    $region82: #{model_map_predict.2} parent=1 // pred_check
      _
    $region83: #{model_map_predict.2} parent=1 // pred_check_branch
      %250 = sbr.rel (0) target = $region85
    $region84: #{model_map_predict.2} parent=1 // pred_region
      %s252 = ssub.s32 48, 48
      %253 = vsyncadd [#allocation32], %s252
      %s255 = sshll.u32 [#allocation31], 4
      %s256 = int_to_ptr.vmem [resolvable:$true] %s255
      %258 = dma.hbm_to_vmem [thread:$0]  %s20, 48, %s256, [#allocation32]
    $region85: #{model_map_predict.2} parent=1 // pred_fallthru
      _
    // Predicated region
    $region86: #{model_map_predict.2} parent=1 // pred_check
      _
    $region87: #{model_map_predict.2} parent=1 // pred_check_branch
      %260 = sbr.rel (0) target = $region89
    $region88: #{model_map_predict.2} parent=1 // pred_region
      %261 = dma.done [#allocation3], 512
    $region89: #{model_map_predict.2} parent=1 // pred_fallthru
      _
    // Predicated region
    $region90: #{model_map_predict.2} parent=1 // pred_check
      _
    $region91: #{model_map_predict.2} parent=1 // pred_check_branch
      %263 = sbr.rel (0) target = $region93
    $region92: #{model_map_predict.2} parent=1 // pred_region
      %264 = dma.done [#allocation5], 16
    $region93: #{model_map_predict.2} parent=1 // pred_fallthru
      _
    // Predicated region
    $region94: #{model_map_predict.2} parent=1 // pred_check
      _
    $region95: #{model_map_predict.2} parent=1 // pred_check_branch
      %266 = sbr.rel (0) target = $region97
    $region96: #{model_map_predict.2} parent=1 // pred_region
      %267 = dma.done [#allocation5], 2048
    $region97: #{model_map_predict.2} parent=1 // pred_fallthru
      _
    // Predicated region
    $region98: #{model_map_predict.2} parent=1 // pred_check
      _
    $region99: #{model_map_predict.2} parent=1 // pred_check_branch
      %269 = sbr.rel (0) target = $region101
    $region100: #{model_map_predict.2} parent=1 // pred_region
      %270 = dma.done [#allocation8], 16
    $region101: #{model_map_predict.2} parent=1 // pred_fallthru
      _
    // Predicated region
    $region102: #{model_map_predict.2} parent=1 // pred_check
      _
    $region103: #{model_map_predict.2} parent=1 // pred_check_branch
      %272 = sbr.rel (0) target = $region105
    $region104: #{model_map_predict.2} parent=1 // pred_region
      %273 = dma.done [#allocation8], 2048
    $region105: #{model_map_predict.2} parent=1 // pred_fallthru
      _
    // Predicated region
    $region106: #{model_map_predict.2} parent=1 // pred_check
      _
    $region107: #{model_map_predict.2} parent=1 // pred_check_branch
      %275 = sbr.rel (0) target = $region109
    $region108: #{model_map_predict.2} parent=1 // pred_region
      %276 = dma.done [#allocation11], 16
    $region109: #{model_map_predict.2} parent=1 // pred_fallthru
      _
    // Predicated region
    $region110: #{model_map_predict.2} parent=1 // pred_check
      _
    $region111: #{model_map_predict.2} parent=1 // pred_check_branch
      %278 = sbr.rel (0) target = $region113
    $region112: #{model_map_predict.2} parent=1 // pred_region
      %279 = dma.done [#allocation11], 2048
    $region113: #{model_map_predict.2} parent=1 // pred_fallthru
      _
    // Predicated region
    $region114: #{model_map_predict.2} parent=1 // pred_check
      _
    $region115: #{model_map_predict.2} parent=1 // pred_check_branch
      %281 = sbr.rel (0) target = $region117
    $region116: #{model_map_predict.2} parent=1 // pred_region
      %282 = dma.done [#allocation14], 16
    $region117: #{model_map_predict.2} parent=1 // pred_fallthru
      _
    // Predicated region
    $region118: #{model_map_predict.2} parent=1 // pred_check
      _
    $region119: #{model_map_predict.2} parent=1 // pred_check_branch
      %284 = sbr.rel (0) target = $region121
    $region120: #{model_map_predict.2} parent=1 // pred_region
      %285 = dma.done [#allocation14], 2048
    $region121: #{model_map_predict.2} parent=1 // pred_fallthru
      _
    // Predicated region
    $region122: #{model_map_predict.2} parent=1 // pred_check
      _
    $region123: #{model_map_predict.2} parent=1 // pred_check_branch
      %287 = sbr.rel (0) target = $region125
    $region124: #{model_map_predict.2} parent=1 // pred_region
      %288 = dma.done [#allocation17], 16
    $region125: #{model_map_predict.2} parent=1 // pred_fallthru
      _
    // Predicated region
    $region126: #{model_map_predict.2} parent=1 // pred_check
      _
    $region127: #{model_map_predict.2} parent=1 // pred_check_branch
      %290 = sbr.rel (0) target = $region129
    $region128: #{model_map_predict.2} parent=1 // pred_region
      %291 = dma.done [#allocation17], 2048
    $region129: #{model_map_predict.2} parent=1 // pred_fallthru
      _
    // Predicated region
    $region130: #{model_map_predict.2} parent=1 // pred_check
      _
    $region131: #{model_map_predict.2} parent=1 // pred_check_branch
      %293 = sbr.rel (0) target = $region133
    $region132: #{model_map_predict.2} parent=1 // pred_region
      %294 = dma.done [#allocation20], 16
    $region133: #{model_map_predict.2} parent=1 // pred_fallthru
      _
    // Predicated region
    $region134: #{model_map_predict.2} parent=1 // pred_check
      _
    $region135: #{model_map_predict.2} parent=1 // pred_check_branch
      %296 = sbr.rel (0) target = $region137
    $region136: #{model_map_predict.2} parent=1 // pred_region
      %297 = dma.done [#allocation20], 2048
    $region137: #{model_map_predict.2} parent=1 // pred_fallthru
      _
    // Predicated region
    $region138: #{model_map_predict.2} parent=1 // pred_check
      _
    $region139: #{model_map_predict.2} parent=1 // pred_check_branch
      %299 = sbr.rel (0) target = $region141
    $region140: #{model_map_predict.2} parent=1 // pred_region
      %300 = dma.done [#allocation23], 16
    $region141: #{model_map_predict.2} parent=1 // pred_fallthru
      _
    // Predicated region
    $region142: #{model_map_predict.2} parent=1 // pred_check
      _
    $region143: #{model_map_predict.2} parent=1 // pred_check_branch
      %302 = sbr.rel (0) target = $region145
    $region144: #{model_map_predict.2} parent=1 // pred_region
      %303 = dma.done [#allocation23], 2048
    $region145: #{model_map_predict.2} parent=1 // pred_fallthru
      _
    // Predicated region
    $region146: #{model_map_predict.2} parent=1 // pred_check
      _
    $region147: #{model_map_predict.2} parent=1 // pred_check_branch
      %305 = sbr.rel (0) target = $region149
    $region148: #{model_map_predict.2} parent=1 // pred_region
      %306 = dma.done [#allocation26], 16
    $region149: #{model_map_predict.2} parent=1 // pred_fallthru
      _
    // Predicated region
    $region150: #{model_map_predict.2} parent=1 // pred_check
      _
    $region151: #{model_map_predict.2} parent=1 // pred_check_branch
      %308 = sbr.rel (0) target = $region153
    $region152: #{model_map_predict.2} parent=1 // pred_region
      %309 = dma.done [#allocation26], 4096
    $region153: #{model_map_predict.2} parent=1 // pred_fallthru
      _
    // Predicated region
    $region154: #{model_map_predict.2} parent=1 // pred_check
      _
    $region155: #{model_map_predict.2} parent=1 // pred_check_branch
      %311 = sbr.rel (0) target = $region157
    $region156: #{model_map_predict.2} parent=1 // pred_region
      %312 = dma.done [#allocation29], 32
    $region157: #{model_map_predict.2} parent=1 // pred_fallthru
      _
    // Predicated region
    $region158: #{model_map_predict.2} parent=1 // pred_check
      _
    $region159: #{model_map_predict.2} parent=1 // pred_check_branch
      %314 = sbr.rel (0) target = $region161
    $region160: #{model_map_predict.2} parent=1 // pred_region
      %315 = dma.done [#allocation29], 12288
    $region161: #{model_map_predict.2} parent=1 // pred_fallthru
      _
    // Predicated region
    $region162: #{model_map_predict.2} parent=1 // pred_check
      _
    $region163: #{model_map_predict.2} parent=1 // pred_check_branch
      %317 = sbr.rel (0) target = $region165
    $region164: #{model_map_predict.2} parent=1 // pred_region
      %318 = dma.done [#allocation32], 48
    $region165: #{model_map_predict.2} parent=1 // pred_fallthru
      _
    %v319 = vld [vmem:[%s0] sm:$0xff]
    %v320 = vld [vmem:[%s0 + $0x8] sm:$0xff]
    %v321 = vld [vmem:[#allocation2] sm:$0xff]
    %v322 = vld [vmem:[#allocation2 + $0x8] sm:$0xff]
    %v323 = vld [vmem:[#allocation2 + $0x10] sm:$0xff]
    %v324 = vld [vmem:[#allocation2 + $0x18] sm:$0xff]
    %v325 = vld [vmem:[#allocation4] sm:$0x1]
    %v327 = vlaneseq
    %v328 = vshrl.u32 %v327, 7
    %v329 = vsub.s32 0, %v328
    %v330 = vrot.slane %v325, %v329
    %vm332 = vcmask 261120
    %v334 = vsel %vm332, %v319, 0
    %v337 = vsel %vm332, %v320, 0
    %339 = vmatprep.subr.mxu0 0.0
    %340 = vmatpush1.msra.mxu0 0.0
    %341 = vmatprep.subr.mxu0 0.0
    %342 = vmatpush1.msra.mxu0 0.0
    %343 = vmatprep.subr.mxu0 0.0
    %344 = vmatpush1.msra.mxu0 0.0
    %345 = vmatprep.subr.mxu0 0.0
    %346 = vmatpush1.msra.mxu0 0.0
    %347 = vmatprep.subr.mxu0 0.0
    %348 = vmatpush1.msra.mxu0 0.0
    %349 = vmatprep.subr.mxu0 0.0
    %350 = vmatpush1.msra.mxu0 0.0
    %351 = vmatprep.subr.mxu0 0.0
    %352 = vmatpush1.msra.mxu0 0.0
    %353 = vmatprep.subr.mxu0 0.0
    %354 = vmatpush1.msra.mxu0 0.0
    %355 = vmatprep.subr.mxu0 0.0
    %356 = vmatpush1.msra.mxu0 0.0
    %357 = vmatprep.subr.mxu0 0.0
    %358 = vmatpush1.msra.mxu0 0.0
    %359 = vmatprep.subr.mxu0 0.0
    %360 = vmatpush1.msra.mxu0 0.0
    %361 = vmatprep.subr.mxu0 0.0
    %362 = vmatpush1.msra.mxu0 0.0
    %363 = vmatprep.subr.mxu0 0.0
    %364 = vmatpush1.msra.mxu0 %v324
    %365 = vmatprep.subr.mxu0 0.0
    %366 = vmatpush1.msra.mxu0 %v323
    %367 = vmatprep.subr.mxu0 0.0
    %368 = vmatpush1.msra.mxu0 %v322
    %369 = vmatprep.subr.mxu0 0.0
    %370 = vmatpush1.msra.mxu0 %v321
    %371 = vmatprep.subr.mxu0 0.0
    %372 = vmatpush2.msra.mxu0 0.0
    %373 = vmatprep.subr.mxu0 0.0
    %374 = vmatpush2.msra.mxu0 0.0
    %375 = vmatprep.subr.mxu0 0.0
    %376 = vmatpush2.msra.mxu0 0.0
    %377 = vmatprep.subr.mxu0 0.0
    %378 = vmatpush2.msra.mxu0 0.0
    %379 = vmatprep.subr.mxu0 0.0
    %380 = vmatpush2.msra.mxu0 0.0
    %381 = vmatprep.subr.mxu0 0.0
    %382 = vmatpush2.msra.mxu0 0.0
    %383 = vmatprep.subr.mxu0 0.0
    %384 = vmatpush2.msra.mxu0 0.0
    %385 = vmatprep.subr.mxu0 0.0
    %386 = vmatpush2.msra.mxu0 0.0
    %387 = vmatprep.subr.mxu0 0.0
    %388 = vmatpush2.msra.mxu0 0.0
    %389 = vmatprep.subr.mxu0 0.0
    %390 = vmatpush2.msra.mxu0 0.0
    %391 = vmatprep.subr.mxu0 0.0
    %392 = vmatpush2.msra.mxu0 0.0
    %393 = vmatprep.subr.mxu0 0.0
    %394 = vmatpush2.msra.mxu0 0.0
    %395 = vmatprep.subr.mxu0 0.0
    %396 = vmatpush2.msra.mxu0 0.0
    %397 = vmatprep.subr.mxu0 0.0
    %398 = vmatpush2.msra.mxu0 0.0
    %399 = vmatprep.subr.mxu0 0.0
    %400 = vmatpush2.msra.mxu0 0.0
    %401 = vmatprep.subr.mxu0 0.0
    %402 = vmatpush2.msra.mxu0 0.0
    %403 = vmatprep.mubr.f32.mxu0 0.0
    %404 = vmatmul.mubr.f32.gmra.mxu0 %v334
    %v405 = vpop.f32.mrf.mxu0
    %v406 = vadd.f32 %v330, %v405
    %v407 = vpop.f32.mrf.mxu0
    %408 = vmatprep.mubr.f32.mxu0 0.0
    %409 = vmatmul.mubr.f32.gmra.mxu0 %v337
    %v410 = vpop.f32.mrf.mxu0
    %v411 = vadd.f32 %v330, %v410
    %v412 = vpop.f32.mrf.mxu0
    %413 = vdwg.mxu0
    %v414 = vmax.f32 %v406, 0.0
    %v415 = vmax.f32 %v411, 0.0
    %v416 = vld [vmem:[#allocation6] sm:$0xff]
    %v417 = vld [vmem:[#allocation6 + $0x8] sm:$0xff]
    %v418 = vld [vmem:[#allocation6 + $0x10] sm:$0xff]
    %v419 = vld [vmem:[#allocation6 + $0x18] sm:$0xff]
    %v420 = vld [vmem:[#allocation6 + $0x20] sm:$0xff]
    %v421 = vld [vmem:[#allocation6 + $0x28] sm:$0xff]
    %v422 = vld [vmem:[#allocation6 + $0x30] sm:$0xff]
    %v423 = vld [vmem:[#allocation6 + $0x38] sm:$0xff]
    %v424 = vld [vmem:[#allocation6 + $0x40] sm:$0xff]
    %v425 = vld [vmem:[#allocation6 + $0x48] sm:$0xff]
    %v426 = vld [vmem:[#allocation6 + $0x50] sm:$0xff]
    %v427 = vld [vmem:[#allocation6 + $0x58] sm:$0xff]
    %v428 = vld [vmem:[#allocation6 + $0x60] sm:$0xff]
    %v429 = vld [vmem:[#allocation6 + $0x68] sm:$0xff]
    %v430 = vld [vmem:[#allocation6 + $0x70] sm:$0xff]
    %v431 = vld [vmem:[#allocation6 + $0x78] sm:$0xff]
    %v432 = vld [vmem:[#allocation7] sm:$0x1]
    %v434 = vlaneseq
    %v435 = vshrl.u32 %v434, 7
    %v436 = vsub.s32 0, %v435
    %v437 = vrot.slane %v432, %v436
    %439 = vmatprep.subr.mxu0 0.0
    %440 = vmatpush1.msra.mxu0 %v431
    %441 = vmatprep.subr.mxu0 0.0
    %442 = vmatpush1.msra.mxu0 %v430
    %443 = vmatprep.subr.mxu0 0.0
    %444 = vmatpush1.msra.mxu0 %v429
    %445 = vmatprep.subr.mxu0 0.0
    %446 = vmatpush1.msra.mxu0 %v428
    %447 = vmatprep.subr.mxu0 0.0
    %448 = vmatpush1.msra.mxu0 %v427
    %449 = vmatprep.subr.mxu0 0.0
    %450 = vmatpush1.msra.mxu0 %v426
    %451 = vmatprep.subr.mxu0 0.0
    %452 = vmatpush1.msra.mxu0 %v425
    %453 = vmatprep.subr.mxu0 0.0
    %454 = vmatpush1.msra.mxu0 %v424
    %455 = vmatprep.subr.mxu0 0.0
    %456 = vmatpush1.msra.mxu0 %v423
    %457 = vmatprep.subr.mxu0 0.0
    %458 = vmatpush1.msra.mxu0 %v422
    %459 = vmatprep.subr.mxu0 0.0
    %460 = vmatpush1.msra.mxu0 %v421
    %461 = vmatprep.subr.mxu0 0.0
    %462 = vmatpush1.msra.mxu0 %v420
    %463 = vmatprep.subr.mxu0 0.0
    %464 = vmatpush1.msra.mxu0 %v419
    %465 = vmatprep.subr.mxu0 0.0
    %466 = vmatpush1.msra.mxu0 %v418
    %467 = vmatprep.subr.mxu0 0.0
    %468 = vmatpush1.msra.mxu0 %v417
    %469 = vmatprep.subr.mxu0 0.0
    %470 = vmatpush1.msra.mxu0 %v416
    %471 = vmatprep.subr.mxu0 0.0
    %472 = vmatpush2.msra.mxu0 0.0
    %473 = vmatprep.subr.mxu0 0.0
    %474 = vmatpush2.msra.mxu0 0.0
    %475 = vmatprep.subr.mxu0 0.0
    %476 = vmatpush2.msra.mxu0 0.0
    %477 = vmatprep.subr.mxu0 0.0
    %478 = vmatpush2.msra.mxu0 0.0
    %479 = vmatprep.subr.mxu0 0.0
    %480 = vmatpush2.msra.mxu0 0.0
    %481 = vmatprep.subr.mxu0 0.0
    %482 = vmatpush2.msra.mxu0 0.0
    %483 = vmatprep.subr.mxu0 0.0
    %484 = vmatpush2.msra.mxu0 0.0
    %485 = vmatprep.subr.mxu0 0.0
    %486 = vmatpush2.msra.mxu0 0.0
    %487 = vmatprep.subr.mxu0 0.0
    %488 = vmatpush2.msra.mxu0 0.0
    %489 = vmatprep.subr.mxu0 0.0
    %490 = vmatpush2.msra.mxu0 0.0
    %491 = vmatprep.subr.mxu0 0.0
    %492 = vmatpush2.msra.mxu0 0.0
    %493 = vmatprep.subr.mxu0 0.0
    %494 = vmatpush2.msra.mxu0 0.0
    %495 = vmatprep.subr.mxu0 0.0
    %496 = vmatpush2.msra.mxu0 0.0
    %497 = vmatprep.subr.mxu0 0.0
    %498 = vmatpush2.msra.mxu0 0.0
    %499 = vmatprep.subr.mxu0 0.0
    %500 = vmatpush2.msra.mxu0 0.0
    %501 = vmatprep.subr.mxu0 0.0
    %502 = vmatpush2.msra.mxu0 0.0
    %503 = vmatprep.mubr.f32.mxu0 0.0
    %504 = vmatmul.mubr.f32.gmra.mxu0 %v414
    %v505 = vpop.f32.mrf.mxu0
    %v506 = vadd.f32 %v437, %v505
    %v507 = vpop.f32.mrf.mxu0
    %508 = vmatprep.mubr.f32.mxu0 0.0
    %509 = vmatmul.mubr.f32.gmra.mxu0 %v415
    %v510 = vpop.f32.mrf.mxu0
    %v511 = vadd.f32 %v437, %v510
    %v512 = vpop.f32.mrf.mxu0
    %513 = vdwg.mxu0
    %v514 = vmax.f32 %v506, 0.0
    %v515 = vmax.f32 %v511, 0.0
    %v516 = vld [vmem:[#allocation9] sm:$0xff]
    %v517 = vld [vmem:[#allocation9 + $0x8] sm:$0xff]
    %v518 = vld [vmem:[#allocation9 + $0x10] sm:$0xff]
    %v519 = vld [vmem:[#allocation9 + $0x18] sm:$0xff]
    %v520 = vld [vmem:[#allocation9 + $0x20] sm:$0xff]
    %v521 = vld [vmem:[#allocation9 + $0x28] sm:$0xff]
    %v522 = vld [vmem:[#allocation9 + $0x30] sm:$0xff]
    %v523 = vld [vmem:[#allocation9 + $0x38] sm:$0xff]
    %v524 = vld [vmem:[#allocation9 + $0x40] sm:$0xff]
    %v525 = vld [vmem:[#allocation9 + $0x48] sm:$0xff]
    %v526 = vld [vmem:[#allocation9 + $0x50] sm:$0xff]
    %v527 = vld [vmem:[#allocation9 + $0x58] sm:$0xff]
    %v528 = vld [vmem:[#allocation9 + $0x60] sm:$0xff]
    %v529 = vld [vmem:[#allocation9 + $0x68] sm:$0xff]
    %v530 = vld [vmem:[#allocation9 + $0x70] sm:$0xff]
    %v531 = vld [vmem:[#allocation9 + $0x78] sm:$0xff]
    %v532 = vld [vmem:[#allocation10] sm:$0x1]
    %v534 = vlaneseq
    %v535 = vshrl.u32 %v534, 7
    %v536 = vsub.s32 0, %v535
    %v537 = vrot.slane %v532, %v536
    %539 = vmatprep.subr.mxu0 0.0
    %540 = vmatpush1.msra.mxu0 %v531
    %541 = vmatprep.subr.mxu0 0.0
    %542 = vmatpush1.msra.mxu0 %v530
    %543 = vmatprep.subr.mxu0 0.0
    %544 = vmatpush1.msra.mxu0 %v529
    %545 = vmatprep.subr.mxu0 0.0
    %546 = vmatpush1.msra.mxu0 %v528
    %547 = vmatprep.subr.mxu0 0.0
    %548 = vmatpush1.msra.mxu0 %v527
    %549 = vmatprep.subr.mxu0 0.0
    %550 = vmatpush1.msra.mxu0 %v526
    %551 = vmatprep.subr.mxu0 0.0
    %552 = vmatpush1.msra.mxu0 %v525
    %553 = vmatprep.subr.mxu0 0.0
    %554 = vmatpush1.msra.mxu0 %v524
    %555 = vmatprep.subr.mxu0 0.0
    %556 = vmatpush1.msra.mxu0 %v523
    %557 = vmatprep.subr.mxu0 0.0
    %558 = vmatpush1.msra.mxu0 %v522
    %559 = vmatprep.subr.mxu0 0.0
    %560 = vmatpush1.msra.mxu0 %v521
    %561 = vmatprep.subr.mxu0 0.0
    %562 = vmatpush1.msra.mxu0 %v520
    %563 = vmatprep.subr.mxu0 0.0
    %564 = vmatpush1.msra.mxu0 %v519
    %565 = vmatprep.subr.mxu0 0.0
    %566 = vmatpush1.msra.mxu0 %v518
    %567 = vmatprep.subr.mxu0 0.0
    %568 = vmatpush1.msra.mxu0 %v517
    %569 = vmatprep.subr.mxu0 0.0
    %570 = vmatpush1.msra.mxu0 %v516
    %571 = vmatprep.subr.mxu0 0.0
    %572 = vmatpush2.msra.mxu0 0.0
    %573 = vmatprep.subr.mxu0 0.0
    %574 = vmatpush2.msra.mxu0 0.0
    %575 = vmatprep.subr.mxu0 0.0
    %576 = vmatpush2.msra.mxu0 0.0
    %577 = vmatprep.subr.mxu0 0.0
    %578 = vmatpush2.msra.mxu0 0.0
    %579 = vmatprep.subr.mxu0 0.0
    %580 = vmatpush2.msra.mxu0 0.0
    %581 = vmatprep.subr.mxu0 0.0
    %582 = vmatpush2.msra.mxu0 0.0
    %583 = vmatprep.subr.mxu0 0.0
    %584 = vmatpush2.msra.mxu0 0.0
    %585 = vmatprep.subr.mxu0 0.0
    %586 = vmatpush2.msra.mxu0 0.0
    %587 = vmatprep.subr.mxu0 0.0
    %588 = vmatpush2.msra.mxu0 0.0
    %589 = vmatprep.subr.mxu0 0.0
    %590 = vmatpush2.msra.mxu0 0.0
    %591 = vmatprep.subr.mxu0 0.0
    %592 = vmatpush2.msra.mxu0 0.0
    %593 = vmatprep.subr.mxu0 0.0
    %594 = vmatpush2.msra.mxu0 0.0
    %595 = vmatprep.subr.mxu0 0.0
    %596 = vmatpush2.msra.mxu0 0.0
    %597 = vmatprep.subr.mxu0 0.0
    %598 = vmatpush2.msra.mxu0 0.0
    %599 = vmatprep.subr.mxu0 0.0
    %600 = vmatpush2.msra.mxu0 0.0
    %601 = vmatprep.subr.mxu0 0.0
    %602 = vmatpush2.msra.mxu0 0.0
    %603 = vmatprep.mubr.f32.mxu0 0.0
    %604 = vmatmul.mubr.f32.gmra.mxu0 %v514
    %v605 = vpop.f32.mrf.mxu0
    %v606 = vadd.f32 %v537, %v605
    %v607 = vpop.f32.mrf.mxu0
    %608 = vmatprep.mubr.f32.mxu0 0.0
    %609 = vmatmul.mubr.f32.gmra.mxu0 %v515
    %v610 = vpop.f32.mrf.mxu0
    %v611 = vadd.f32 %v537, %v610
    %v612 = vpop.f32.mrf.mxu0
    %613 = vdwg.mxu0
    %v614 = vmax.f32 %v606, 0.0
    %v615 = vmax.f32 %v611, 0.0
    %v616 = vld [vmem:[#allocation12] sm:$0xff]
    %v617 = vld [vmem:[#allocation12 + $0x8] sm:$0xff]
    %v618 = vld [vmem:[#allocation12 + $0x10] sm:$0xff]
    %v619 = vld [vmem:[#allocation12 + $0x18] sm:$0xff]
    %v620 = vld [vmem:[#allocation12 + $0x20] sm:$0xff]
    %v621 = vld [vmem:[#allocation12 + $0x28] sm:$0xff]
    %v622 = vld [vmem:[#allocation12 + $0x30] sm:$0xff]
    %v623 = vld [vmem:[#allocation12 + $0x38] sm:$0xff]
    %v624 = vld [vmem:[#allocation12 + $0x40] sm:$0xff]
    %v625 = vld [vmem:[#allocation12 + $0x48] sm:$0xff]
    %v626 = vld [vmem:[#allocation12 + $0x50] sm:$0xff]
    %v627 = vld [vmem:[#allocation12 + $0x58] sm:$0xff]
    %v628 = vld [vmem:[#allocation12 + $0x60] sm:$0xff]
    %v629 = vld [vmem:[#allocation12 + $0x68] sm:$0xff]
    %v630 = vld [vmem:[#allocation12 + $0x70] sm:$0xff]
    %v631 = vld [vmem:[#allocation12 + $0x78] sm:$0xff]
    %v632 = vld [vmem:[#allocation13] sm:$0x1]
    %v634 = vlaneseq
    %v635 = vshrl.u32 %v634, 7
    %v636 = vsub.s32 0, %v635
    %v637 = vrot.slane %v632, %v636
    %639 = vmatprep.subr.mxu0 0.0
    %640 = vmatpush1.msra.mxu0 %v631
    %641 = vmatprep.subr.mxu0 0.0
    %642 = vmatpush1.msra.mxu0 %v630
    %643 = vmatprep.subr.mxu0 0.0
    %644 = vmatpush1.msra.mxu0 %v629
    %645 = vmatprep.subr.mxu0 0.0
    %646 = vmatpush1.msra.mxu0 %v628
    %647 = vmatprep.subr.mxu0 0.0
    %648 = vmatpush1.msra.mxu0 %v627
    %649 = vmatprep.subr.mxu0 0.0
    %650 = vmatpush1.msra.mxu0 %v626
    %651 = vmatprep.subr.mxu0 0.0
    %652 = vmatpush1.msra.mxu0 %v625
    %653 = vmatprep.subr.mxu0 0.0
    %654 = vmatpush1.msra.mxu0 %v624
    %655 = vmatprep.subr.mxu0 0.0
    %656 = vmatpush1.msra.mxu0 %v623
    %657 = vmatprep.subr.mxu0 0.0
    %658 = vmatpush1.msra.mxu0 %v622
    %659 = vmatprep.subr.mxu0 0.0
    %660 = vmatpush1.msra.mxu0 %v621
    %661 = vmatprep.subr.mxu0 0.0
    %662 = vmatpush1.msra.mxu0 %v620
    %663 = vmatprep.subr.mxu0 0.0
    %664 = vmatpush1.msra.mxu0 %v619
    %665 = vmatprep.subr.mxu0 0.0
    %666 = vmatpush1.msra.mxu0 %v618
    %667 = vmatprep.subr.mxu0 0.0
    %668 = vmatpush1.msra.mxu0 %v617
    %669 = vmatprep.subr.mxu0 0.0
    %670 = vmatpush1.msra.mxu0 %v616
    %671 = vmatprep.subr.mxu0 0.0
    %672 = vmatpush2.msra.mxu0 0.0
    %673 = vmatprep.subr.mxu0 0.0
    %674 = vmatpush2.msra.mxu0 0.0
    %675 = vmatprep.subr.mxu0 0.0
    %676 = vmatpush2.msra.mxu0 0.0
    %677 = vmatprep.subr.mxu0 0.0
    %678 = vmatpush2.msra.mxu0 0.0
    %679 = vmatprep.subr.mxu0 0.0
    %680 = vmatpush2.msra.mxu0 0.0
    %681 = vmatprep.subr.mxu0 0.0
    %682 = vmatpush2.msra.mxu0 0.0
    %683 = vmatprep.subr.mxu0 0.0
    %684 = vmatpush2.msra.mxu0 0.0
    %685 = vmatprep.subr.mxu0 0.0
    %686 = vmatpush2.msra.mxu0 0.0
    %687 = vmatprep.subr.mxu0 0.0
    %688 = vmatpush2.msra.mxu0 0.0
    %689 = vmatprep.subr.mxu0 0.0
    %690 = vmatpush2.msra.mxu0 0.0
    %691 = vmatprep.subr.mxu0 0.0
    %692 = vmatpush2.msra.mxu0 0.0
    %693 = vmatprep.subr.mxu0 0.0
    %694 = vmatpush2.msra.mxu0 0.0
    %695 = vmatprep.subr.mxu0 0.0
    %696 = vmatpush2.msra.mxu0 0.0
    %697 = vmatprep.subr.mxu0 0.0
    %698 = vmatpush2.msra.mxu0 0.0
    %699 = vmatprep.subr.mxu0 0.0
    %700 = vmatpush2.msra.mxu0 0.0
    %701 = vmatprep.subr.mxu0 0.0
    %702 = vmatpush2.msra.mxu0 0.0
    %703 = vmatprep.mubr.f32.mxu0 0.0
    %704 = vmatmul.mubr.f32.gmra.mxu0 %v614
    %v705 = vpop.f32.mrf.mxu0
    %v706 = vadd.f32 %v637, %v705
    %v707 = vpop.f32.mrf.mxu0
    %708 = vmatprep.mubr.f32.mxu0 0.0
    %709 = vmatmul.mubr.f32.gmra.mxu0 %v615
    %v710 = vpop.f32.mrf.mxu0
    %v711 = vadd.f32 %v637, %v710
    %v712 = vpop.f32.mrf.mxu0
    %713 = vdwg.mxu0
    %v714 = vmax.f32 %v706, 0.0
    %v715 = vmax.f32 %v711, 0.0
    %v716 = vadd.f32 %v714, %v414
    %v717 = vadd.f32 %v715, %v415
    %v718 = vld [vmem:[#allocation15] sm:$0xff]
    %v719 = vld [vmem:[#allocation15 + $0x8] sm:$0xff]
    %v720 = vld [vmem:[#allocation15 + $0x10] sm:$0xff]
    %v721 = vld [vmem:[#allocation15 + $0x18] sm:$0xff]
    %v722 = vld [vmem:[#allocation15 + $0x20] sm:$0xff]
    %v723 = vld [vmem:[#allocation15 + $0x28] sm:$0xff]
    %v724 = vld [vmem:[#allocation15 + $0x30] sm:$0xff]
    %v725 = vld [vmem:[#allocation15 + $0x38] sm:$0xff]
    %v726 = vld [vmem:[#allocation15 + $0x40] sm:$0xff]
    %v727 = vld [vmem:[#allocation15 + $0x48] sm:$0xff]
    %v728 = vld [vmem:[#allocation15 + $0x50] sm:$0xff]
    %v729 = vld [vmem:[#allocation15 + $0x58] sm:$0xff]
    %v730 = vld [vmem:[#allocation15 + $0x60] sm:$0xff]
    %v731 = vld [vmem:[#allocation15 + $0x68] sm:$0xff]
    %v732 = vld [vmem:[#allocation15 + $0x70] sm:$0xff]
    %v733 = vld [vmem:[#allocation15 + $0x78] sm:$0xff]
    %v734 = vld [vmem:[#allocation16] sm:$0x1]
    %v736 = vlaneseq
    %v737 = vshrl.u32 %v736, 7
    %v738 = vsub.s32 0, %v737
    %v739 = vrot.slane %v734, %v738
    %741 = vmatprep.subr.mxu0 0.0
    %742 = vmatpush1.msra.mxu0 %v733
    %743 = vmatprep.subr.mxu0 0.0
    %744 = vmatpush1.msra.mxu0 %v732
    %745 = vmatprep.subr.mxu0 0.0
    %746 = vmatpush1.msra.mxu0 %v731
    %747 = vmatprep.subr.mxu0 0.0
    %748 = vmatpush1.msra.mxu0 %v730
    %749 = vmatprep.subr.mxu0 0.0
    %750 = vmatpush1.msra.mxu0 %v729
    %751 = vmatprep.subr.mxu0 0.0
    %752 = vmatpush1.msra.mxu0 %v728
    %753 = vmatprep.subr.mxu0 0.0
    %754 = vmatpush1.msra.mxu0 %v727
    %755 = vmatprep.subr.mxu0 0.0
    %756 = vmatpush1.msra.mxu0 %v726
    %757 = vmatprep.subr.mxu0 0.0
    %758 = vmatpush1.msra.mxu0 %v725
    %759 = vmatprep.subr.mxu0 0.0
    %760 = vmatpush1.msra.mxu0 %v724
    %761 = vmatprep.subr.mxu0 0.0
    %762 = vmatpush1.msra.mxu0 %v723
    %763 = vmatprep.subr.mxu0 0.0
    %764 = vmatpush1.msra.mxu0 %v722
    %765 = vmatprep.subr.mxu0 0.0
    %766 = vmatpush1.msra.mxu0 %v721
    %767 = vmatprep.subr.mxu0 0.0
    %768 = vmatpush1.msra.mxu0 %v720
    %769 = vmatprep.subr.mxu0 0.0
    %770 = vmatpush1.msra.mxu0 %v719
    %771 = vmatprep.subr.mxu0 0.0
    %772 = vmatpush1.msra.mxu0 %v718
    %773 = vmatprep.subr.mxu0 0.0
    %774 = vmatpush2.msra.mxu0 0.0
    %775 = vmatprep.subr.mxu0 0.0
    %776 = vmatpush2.msra.mxu0 0.0
    %777 = vmatprep.subr.mxu0 0.0
    %778 = vmatpush2.msra.mxu0 0.0
    %779 = vmatprep.subr.mxu0 0.0
    %780 = vmatpush2.msra.mxu0 0.0
    %781 = vmatprep.subr.mxu0 0.0
    %782 = vmatpush2.msra.mxu0 0.0
    %783 = vmatprep.subr.mxu0 0.0
    %784 = vmatpush2.msra.mxu0 0.0
    %785 = vmatprep.subr.mxu0 0.0
    %786 = vmatpush2.msra.mxu0 0.0
    %787 = vmatprep.subr.mxu0 0.0
    %788 = vmatpush2.msra.mxu0 0.0
    %789 = vmatprep.subr.mxu0 0.0
    %790 = vmatpush2.msra.mxu0 0.0
    %791 = vmatprep.subr.mxu0 0.0
    %792 = vmatpush2.msra.mxu0 0.0
    %793 = vmatprep.subr.mxu0 0.0
    %794 = vmatpush2.msra.mxu0 0.0
    %795 = vmatprep.subr.mxu0 0.0
    %796 = vmatpush2.msra.mxu0 0.0
    %797 = vmatprep.subr.mxu0 0.0
    %798 = vmatpush2.msra.mxu0 0.0
    %799 = vmatprep.subr.mxu0 0.0
    %800 = vmatpush2.msra.mxu0 0.0
    %801 = vmatprep.subr.mxu0 0.0
    %802 = vmatpush2.msra.mxu0 0.0
    %803 = vmatprep.subr.mxu0 0.0
    %804 = vmatpush2.msra.mxu0 0.0
    %805 = vmatprep.mubr.f32.mxu0 0.0
    %806 = vmatmul.mubr.f32.gmra.mxu0 %v716
    %v807 = vpop.f32.mrf.mxu0
    %v808 = vadd.f32 %v739, %v807
    %v809 = vpop.f32.mrf.mxu0
    %810 = vmatprep.mubr.f32.mxu0 0.0
    %811 = vmatmul.mubr.f32.gmra.mxu0 %v717
    %v812 = vpop.f32.mrf.mxu0
    %v813 = vadd.f32 %v739, %v812
    %v814 = vpop.f32.mrf.mxu0
    %815 = vdwg.mxu0
    %v816 = vmax.f32 %v808, 0.0
    %v817 = vmax.f32 %v813, 0.0
    %v818 = vld [vmem:[#allocation18] sm:$0xff]
    %v819 = vld [vmem:[#allocation18 + $0x8] sm:$0xff]
    %v820 = vld [vmem:[#allocation18 + $0x10] sm:$0xff]
    %v821 = vld [vmem:[#allocation18 + $0x18] sm:$0xff]
    %v822 = vld [vmem:[#allocation18 + $0x20] sm:$0xff]
    %v823 = vld [vmem:[#allocation18 + $0x28] sm:$0xff]
    %v824 = vld [vmem:[#allocation18 + $0x30] sm:$0xff]
    %v825 = vld [vmem:[#allocation18 + $0x38] sm:$0xff]
    %v826 = vld [vmem:[#allocation18 + $0x40] sm:$0xff]
    %v827 = vld [vmem:[#allocation18 + $0x48] sm:$0xff]
    %v828 = vld [vmem:[#allocation18 + $0x50] sm:$0xff]
    %v829 = vld [vmem:[#allocation18 + $0x58] sm:$0xff]
    %v830 = vld [vmem:[#allocation18 + $0x60] sm:$0xff]
    %v831 = vld [vmem:[#allocation18 + $0x68] sm:$0xff]
    %v832 = vld [vmem:[#allocation18 + $0x70] sm:$0xff]
    %v833 = vld [vmem:[#allocation18 + $0x78] sm:$0xff]
    %v834 = vld [vmem:[#allocation19] sm:$0x1]
    %v836 = vlaneseq
    %v837 = vshrl.u32 %v836, 7
    %v838 = vsub.s32 0, %v837
    %v839 = vrot.slane %v834, %v838
    %841 = vmatprep.subr.mxu0 0.0
    %842 = vmatpush1.msra.mxu0 %v833
    %843 = vmatprep.subr.mxu0 0.0
    %844 = vmatpush1.msra.mxu0 %v832
    %845 = vmatprep.subr.mxu0 0.0
    %846 = vmatpush1.msra.mxu0 %v831
    %847 = vmatprep.subr.mxu0 0.0
    %848 = vmatpush1.msra.mxu0 %v830
    %849 = vmatprep.subr.mxu0 0.0
    %850 = vmatpush1.msra.mxu0 %v829
    %851 = vmatprep.subr.mxu0 0.0
    %852 = vmatpush1.msra.mxu0 %v828
    %853 = vmatprep.subr.mxu0 0.0
    %854 = vmatpush1.msra.mxu0 %v827
    %855 = vmatprep.subr.mxu0 0.0
    %856 = vmatpush1.msra.mxu0 %v826
    %857 = vmatprep.subr.mxu0 0.0
    %858 = vmatpush1.msra.mxu0 %v825
    %859 = vmatprep.subr.mxu0 0.0
    %860 = vmatpush1.msra.mxu0 %v824
    %861 = vmatprep.subr.mxu0 0.0
    %862 = vmatpush1.msra.mxu0 %v823
    %863 = vmatprep.subr.mxu0 0.0
    %864 = vmatpush1.msra.mxu0 %v822
    %865 = vmatprep.subr.mxu0 0.0
    %866 = vmatpush1.msra.mxu0 %v821
    %867 = vmatprep.subr.mxu0 0.0
    %868 = vmatpush1.msra.mxu0 %v820
    %869 = vmatprep.subr.mxu0 0.0
    %870 = vmatpush1.msra.mxu0 %v819
    %871 = vmatprep.subr.mxu0 0.0
    %872 = vmatpush1.msra.mxu0 %v818
    %873 = vmatprep.subr.mxu0 0.0
    %874 = vmatpush2.msra.mxu0 0.0
    %875 = vmatprep.subr.mxu0 0.0
    %876 = vmatpush2.msra.mxu0 0.0
    %877 = vmatprep.subr.mxu0 0.0
    %878 = vmatpush2.msra.mxu0 0.0
    %879 = vmatprep.subr.mxu0 0.0
    %880 = vmatpush2.msra.mxu0 0.0
    %881 = vmatprep.subr.mxu0 0.0
    %882 = vmatpush2.msra.mxu0 0.0
    %883 = vmatprep.subr.mxu0 0.0
    %884 = vmatpush2.msra.mxu0 0.0
    %885 = vmatprep.subr.mxu0 0.0
    %886 = vmatpush2.msra.mxu0 0.0
    %887 = vmatprep.subr.mxu0 0.0
    %888 = vmatpush2.msra.mxu0 0.0
    %889 = vmatprep.subr.mxu0 0.0
    %890 = vmatpush2.msra.mxu0 0.0
    %891 = vmatprep.subr.mxu0 0.0
    %892 = vmatpush2.msra.mxu0 0.0
    %893 = vmatprep.subr.mxu0 0.0
    %894 = vmatpush2.msra.mxu0 0.0
    %895 = vmatprep.subr.mxu0 0.0
    %896 = vmatpush2.msra.mxu0 0.0
    %897 = vmatprep.subr.mxu0 0.0
    %898 = vmatpush2.msra.mxu0 0.0
    %899 = vmatprep.subr.mxu0 0.0
    %900 = vmatpush2.msra.mxu0 0.0
    %901 = vmatprep.subr.mxu0 0.0
    %902 = vmatpush2.msra.mxu0 0.0
    %903 = vmatprep.subr.mxu0 0.0
    %904 = vmatpush2.msra.mxu0 0.0
    %905 = vmatprep.mubr.f32.mxu0 0.0
    %906 = vmatmul.mubr.f32.gmra.mxu0 %v816
    %v907 = vpop.f32.mrf.mxu0
    %v908 = vadd.f32 %v839, %v907
    %v909 = vpop.f32.mrf.mxu0
    %910 = vmatprep.mubr.f32.mxu0 0.0
    %911 = vmatmul.mubr.f32.gmra.mxu0 %v817
    %v912 = vpop.f32.mrf.mxu0
    %v913 = vadd.f32 %v839, %v912
    %v914 = vpop.f32.mrf.mxu0
    %915 = vdwg.mxu0
    %v916 = vmax.f32 %v908, 0.0
    %v917 = vmax.f32 %v913, 0.0
    %v918 = vld [vmem:[#allocation21] sm:$0xff]
    %v919 = vld [vmem:[#allocation21 + $0x8] sm:$0xff]
    %v920 = vld [vmem:[#allocation21 + $0x10] sm:$0xff]
    %v921 = vld [vmem:[#allocation21 + $0x18] sm:$0xff]
    %v922 = vld [vmem:[#allocation21 + $0x20] sm:$0xff]
    %v923 = vld [vmem:[#allocation21 + $0x28] sm:$0xff]
    %v924 = vld [vmem:[#allocation21 + $0x30] sm:$0xff]
    %v925 = vld [vmem:[#allocation21 + $0x38] sm:$0xff]
    %v926 = vld [vmem:[#allocation21 + $0x40] sm:$0xff]
    %v927 = vld [vmem:[#allocation21 + $0x48] sm:$0xff]
    %v928 = vld [vmem:[#allocation21 + $0x50] sm:$0xff]
    %v929 = vld [vmem:[#allocation21 + $0x58] sm:$0xff]
    %v930 = vld [vmem:[#allocation21 + $0x60] sm:$0xff]
    %v931 = vld [vmem:[#allocation21 + $0x68] sm:$0xff]
    %v932 = vld [vmem:[#allocation21 + $0x70] sm:$0xff]
    %v933 = vld [vmem:[#allocation21 + $0x78] sm:$0xff]
    %v934 = vld [vmem:[#allocation22] sm:$0x1]
    %v936 = vlaneseq
    %v937 = vshrl.u32 %v936, 7
    %v938 = vsub.s32 0, %v937
    %v939 = vrot.slane %v934, %v938
    %941 = vmatprep.subr.mxu0 0.0
    %942 = vmatpush1.msra.mxu0 %v933
    %943 = vmatprep.subr.mxu0 0.0
    %944 = vmatpush1.msra.mxu0 %v932
    %945 = vmatprep.subr.mxu0 0.0
    %946 = vmatpush1.msra.mxu0 %v931
    %947 = vmatprep.subr.mxu0 0.0
    %948 = vmatpush1.msra.mxu0 %v930
    %949 = vmatprep.subr.mxu0 0.0
    %950 = vmatpush1.msra.mxu0 %v929
    %951 = vmatprep.subr.mxu0 0.0
    %952 = vmatpush1.msra.mxu0 %v928
    %953 = vmatprep.subr.mxu0 0.0
    %954 = vmatpush1.msra.mxu0 %v927
    %955 = vmatprep.subr.mxu0 0.0
    %956 = vmatpush1.msra.mxu0 %v926
    %957 = vmatprep.subr.mxu0 0.0
    %958 = vmatpush1.msra.mxu0 %v925
    %959 = vmatprep.subr.mxu0 0.0
    %960 = vmatpush1.msra.mxu0 %v924
    %961 = vmatprep.subr.mxu0 0.0
    %962 = vmatpush1.msra.mxu0 %v923
    %963 = vmatprep.subr.mxu0 0.0
    %964 = vmatpush1.msra.mxu0 %v922
    %965 = vmatprep.subr.mxu0 0.0
    %966 = vmatpush1.msra.mxu0 %v921
    %967 = vmatprep.subr.mxu0 0.0
    %968 = vmatpush1.msra.mxu0 %v920
    %969 = vmatprep.subr.mxu0 0.0
    %970 = vmatpush1.msra.mxu0 %v919
    %971 = vmatprep.subr.mxu0 0.0
    %972 = vmatpush1.msra.mxu0 %v918
    %973 = vmatprep.subr.mxu0 0.0
    %974 = vmatpush2.msra.mxu0 0.0
    %975 = vmatprep.subr.mxu0 0.0
    %976 = vmatpush2.msra.mxu0 0.0
    %977 = vmatprep.subr.mxu0 0.0
    %978 = vmatpush2.msra.mxu0 0.0
    %979 = vmatprep.subr.mxu0 0.0
    %980 = vmatpush2.msra.mxu0 0.0
    %981 = vmatprep.subr.mxu0 0.0
    %982 = vmatpush2.msra.mxu0 0.0
    %983 = vmatprep.subr.mxu0 0.0
    %984 = vmatpush2.msra.mxu0 0.0
    %985 = vmatprep.subr.mxu0 0.0
    %986 = vmatpush2.msra.mxu0 0.0
    %987 = vmatprep.subr.mxu0 0.0
    %988 = vmatpush2.msra.mxu0 0.0
    %989 = vmatprep.subr.mxu0 0.0
    %990 = vmatpush2.msra.mxu0 0.0
    %991 = vmatprep.subr.mxu0 0.0
    %992 = vmatpush2.msra.mxu0 0.0
    %993 = vmatprep.subr.mxu0 0.0
    %994 = vmatpush2.msra.mxu0 0.0
    %995 = vmatprep.subr.mxu0 0.0
    %996 = vmatpush2.msra.mxu0 0.0
    %997 = vmatprep.subr.mxu0 0.0
    %998 = vmatpush2.msra.mxu0 0.0
    %999 = vmatprep.subr.mxu0 0.0
    %1000 = vmatpush2.msra.mxu0 0.0
    %1001 = vmatprep.subr.mxu0 0.0
    %1002 = vmatpush2.msra.mxu0 0.0
    %1003 = vmatprep.subr.mxu0 0.0
    %1004 = vmatpush2.msra.mxu0 0.0
    %1005 = vmatprep.mubr.f32.mxu0 0.0
    %1006 = vmatmul.mubr.f32.gmra.mxu0 %v916
    %v1007 = vpop.f32.mrf.mxu0
    %v1008 = vadd.f32 %v939, %v1007
    %v1009 = vpop.f32.mrf.mxu0
    %1010 = vmatprep.mubr.f32.mxu0 0.0
    %1011 = vmatmul.mubr.f32.gmra.mxu0 %v917
    %v1012 = vpop.f32.mrf.mxu0
    %v1013 = vadd.f32 %v939, %v1012
    %v1014 = vpop.f32.mrf.mxu0
    %1015 = vdwg.mxu0
    %v1016 = vmax.f32 %v1008, 0.0
    %v1017 = vmax.f32 %v1013, 0.0
    %v1018 = vld [vmem:[#allocation24] sm:$0xff]
    %v1019 = vld [vmem:[#allocation24 + $0x8] sm:$0xff]
    %v1020 = vld [vmem:[#allocation24 + $0x10] sm:$0xff]
    %v1021 = vld [vmem:[#allocation24 + $0x18] sm:$0xff]
    %v1022 = vld [vmem:[#allocation24 + $0x20] sm:$0xff]
    %v1023 = vld [vmem:[#allocation24 + $0x28] sm:$0xff]
    %v1024 = vld [vmem:[#allocation24 + $0x30] sm:$0xff]
    %v1025 = vld [vmem:[#allocation24 + $0x38] sm:$0xff]
    %v1026 = vld [vmem:[#allocation24 + $0x40] sm:$0xff]
    %v1027 = vld [vmem:[#allocation24 + $0x48] sm:$0xff]
    %v1028 = vld [vmem:[#allocation24 + $0x50] sm:$0xff]
    %v1029 = vld [vmem:[#allocation24 + $0x58] sm:$0xff]
    %v1030 = vld [vmem:[#allocation24 + $0x60] sm:$0xff]
    %v1031 = vld [vmem:[#allocation24 + $0x68] sm:$0xff]
    %v1032 = vld [vmem:[#allocation24 + $0x70] sm:$0xff]
    %v1033 = vld [vmem:[#allocation24 + $0x78] sm:$0xff]
    %v1034 = vld [vmem:[#allocation25] sm:$0x1]
    %v1036 = vlaneseq
    %v1037 = vshrl.u32 %v1036, 7
    %v1038 = vsub.s32 0, %v1037
    %v1039 = vrot.slane %v1034, %v1038
    %1041 = vmatprep.subr.mxu0 0.0
    %1042 = vmatpush1.msra.mxu0 %v1033
    %1043 = vmatprep.subr.mxu0 0.0
    %1044 = vmatpush1.msra.mxu0 %v1032
    %1045 = vmatprep.subr.mxu0 0.0
    %1046 = vmatpush1.msra.mxu0 %v1031
    %1047 = vmatprep.subr.mxu0 0.0
    %1048 = vmatpush1.msra.mxu0 %v1030
    %1049 = vmatprep.subr.mxu0 0.0
    %1050 = vmatpush1.msra.mxu0 %v1029
    %1051 = vmatprep.subr.mxu0 0.0
    %1052 = vmatpush1.msra.mxu0 %v1028
    %1053 = vmatprep.subr.mxu0 0.0
    %1054 = vmatpush1.msra.mxu0 %v1027
    %1055 = vmatprep.subr.mxu0 0.0
    %1056 = vmatpush1.msra.mxu0 %v1026
    %1057 = vmatprep.subr.mxu0 0.0
    %1058 = vmatpush1.msra.mxu0 %v1025
    %1059 = vmatprep.subr.mxu0 0.0
    %1060 = vmatpush1.msra.mxu0 %v1024
    %1061 = vmatprep.subr.mxu0 0.0
    %1062 = vmatpush1.msra.mxu0 %v1023
    %1063 = vmatprep.subr.mxu0 0.0
    %1064 = vmatpush1.msra.mxu0 %v1022
    %1065 = vmatprep.subr.mxu0 0.0
    %1066 = vmatpush1.msra.mxu0 %v1021
    %1067 = vmatprep.subr.mxu0 0.0
    %1068 = vmatpush1.msra.mxu0 %v1020
    %1069 = vmatprep.subr.mxu0 0.0
    %1070 = vmatpush1.msra.mxu0 %v1019
    %1071 = vmatprep.subr.mxu0 0.0
    %1072 = vmatpush1.msra.mxu0 %v1018
    %1073 = vmatprep.subr.mxu0 0.0
    %1074 = vmatpush2.msra.mxu0 0.0
    %1075 = vmatprep.subr.mxu0 0.0
    %1076 = vmatpush2.msra.mxu0 0.0
    %1077 = vmatprep.subr.mxu0 0.0
    %1078 = vmatpush2.msra.mxu0 0.0
    %1079 = vmatprep.subr.mxu0 0.0
    %1080 = vmatpush2.msra.mxu0 0.0
    %1081 = vmatprep.subr.mxu0 0.0
    %1082 = vmatpush2.msra.mxu0 0.0
    %1083 = vmatprep.subr.mxu0 0.0
    %1084 = vmatpush2.msra.mxu0 0.0
    %1085 = vmatprep.subr.mxu0 0.0
    %1086 = vmatpush2.msra.mxu0 0.0
    %1087 = vmatprep.subr.mxu0 0.0
    %1088 = vmatpush2.msra.mxu0 0.0
    %1089 = vmatprep.subr.mxu0 0.0
    %1090 = vmatpush2.msra.mxu0 0.0
    %1091 = vmatprep.subr.mxu0 0.0
    %1092 = vmatpush2.msra.mxu0 0.0
    %1093 = vmatprep.subr.mxu0 0.0
    %1094 = vmatpush2.msra.mxu0 0.0
    %1095 = vmatprep.subr.mxu0 0.0
    %1096 = vmatpush2.msra.mxu0 0.0
    %1097 = vmatprep.subr.mxu0 0.0
    %1098 = vmatpush2.msra.mxu0 0.0
    %1099 = vmatprep.subr.mxu0 0.0
    %1100 = vmatpush2.msra.mxu0 0.0
    %1101 = vmatprep.subr.mxu0 0.0
    %1102 = vmatpush2.msra.mxu0 0.0
    %1103 = vmatprep.subr.mxu0 0.0
    %1104 = vmatpush2.msra.mxu0 0.0
    %1105 = vmatprep.mubr.f32.mxu0 0.0
    %1106 = vmatmul.mubr.f32.gmra.mxu0 %v1016
    %v1107 = vpop.f32.mrf.mxu0
    %v1108 = vadd.f32 %v1039, %v1107
    %v1109 = vpop.f32.mrf.mxu0
    %1110 = vmatprep.mubr.f32.mxu0 0.0
    %1111 = vmatmul.mubr.f32.gmra.mxu0 %v1017
    %v1112 = vpop.f32.mrf.mxu0
    %v1113 = vadd.f32 %v1039, %v1112
    %v1114 = vpop.f32.mrf.mxu0
    %1115 = vdwg.mxu0
    %v1116 = vmax.f32 %v1108, 0.0
    %v1117 = vmax.f32 %v1113, 0.0
    %v1118 = vadd.f32 %v1116, %v816
    %v1119 = vadd.f32 %v1117, %v817
    %v1120 = vld [vmem:[#allocation27] sm:$0xff]
    %v1121 = vld [vmem:[#allocation27 + $0x8] sm:$0xff]
    %v1122 = vld [vmem:[#allocation27 + $0x10] sm:$0xff]
    %v1123 = vld [vmem:[#allocation27 + $0x18] sm:$0xff]
    %v1124 = vld [vmem:[#allocation27 + $0x20] sm:$0xff]
    %v1125 = vld [vmem:[#allocation27 + $0x28] sm:$0xff]
    %v1126 = vld [vmem:[#allocation27 + $0x30] sm:$0xff]
    %v1127 = vld [vmem:[#allocation27 + $0x38] sm:$0xff]
    %v1128 = vld [vmem:[#allocation27 + $0x40] sm:$0xff]
    %v1129 = vld [vmem:[#allocation27 + $0x48] sm:$0xff]
    %v1130 = vld [vmem:[#allocation27 + $0x50] sm:$0xff]
    %v1131 = vld [vmem:[#allocation27 + $0x58] sm:$0xff]
    %v1132 = vld [vmem:[#allocation27 + $0x60] sm:$0xff]
    %v1133 = vld [vmem:[#allocation27 + $0x68] sm:$0xff]
    %v1134 = vld [vmem:[#allocation27 + $0x70] sm:$0xff]
    %v1135 = vld [vmem:[#allocation27 + $0x78] sm:$0xff]
    %v1136 = vld [vmem:[#allocation27 + $0x80] sm:$0xff]
    %v1137 = vld [vmem:[#allocation27 + $0x88] sm:$0xff]
    %v1138 = vld [vmem:[#allocation27 + $0x90] sm:$0xff]
    %v1139 = vld [vmem:[#allocation27 + $0x98] sm:$0xff]
    %v1140 = vld [vmem:[#allocation27 + $0xa0] sm:$0xff]
    %v1141 = vld [vmem:[#allocation27 + $0xa8] sm:$0xff]
    %v1142 = vld [vmem:[#allocation27 + $0xb0] sm:$0xff]
    %v1143 = vld [vmem:[#allocation27 + $0xb8] sm:$0xff]
    %v1144 = vld [vmem:[#allocation27 + $0xc0] sm:$0xff]
    %v1145 = vld [vmem:[#allocation27 + $0xc8] sm:$0xff]
    %v1146 = vld [vmem:[#allocation27 + $0xd0] sm:$0xff]
    %v1147 = vld [vmem:[#allocation27 + $0xd8] sm:$0xff]
    %v1148 = vld [vmem:[#allocation27 + $0xe0] sm:$0xff]
    %v1149 = vld [vmem:[#allocation27 + $0xe8] sm:$0xff]
    %v1150 = vld [vmem:[#allocation27 + $0xf0] sm:$0xff]
    %v1151 = vld [vmem:[#allocation27 + $0xf8] sm:$0xff]
    %v1152 = vld [vmem:[#allocation28] sm:$0x3]
    %v1154 = vlaneseq
    %v1155 = vshrl.u32 %v1154, 7
    %v1156 = vsub.s32 0, %v1155
    %v1157 = vrot.slane %v1152, %v1156
    %v1158 = vlaneseq
    %v1159 = vshrl.u32 %v1158, 7
    %v1160 = vsub.s32 1, %v1159
    %v1161 = vrot.slane %v1152, %v1160
    %1164 = vmatprep.subr.mxu0 %v1151
    %1165 = vmatpush1.msra.mxu0 %v1150
    %1166 = vmatprep.subr.mxu0 %v1149
    %1167 = vmatpush1.msra.mxu0 %v1148
    %1168 = vmatprep.subr.mxu0 %v1147
    %1169 = vmatpush1.msra.mxu0 %v1146
    %1170 = vmatprep.subr.mxu0 %v1145
    %1171 = vmatpush1.msra.mxu0 %v1144
    %1172 = vmatprep.subr.mxu0 %v1143
    %1173 = vmatpush1.msra.mxu0 %v1142
    %1174 = vmatprep.subr.mxu0 %v1141
    %1175 = vmatpush1.msra.mxu0 %v1140
    %1176 = vmatprep.subr.mxu0 %v1139
    %1177 = vmatpush1.msra.mxu0 %v1138
    %1178 = vmatprep.subr.mxu0 %v1137
    %1179 = vmatpush1.msra.mxu0 %v1136
    %1180 = vmatprep.subr.mxu0 %v1135
    %1181 = vmatpush1.msra.mxu0 %v1134
    %1182 = vmatprep.subr.mxu0 %v1133
    %1183 = vmatpush1.msra.mxu0 %v1132
    %1184 = vmatprep.subr.mxu0 %v1131
    %1185 = vmatpush1.msra.mxu0 %v1130
    %1186 = vmatprep.subr.mxu0 %v1129
    %1187 = vmatpush1.msra.mxu0 %v1128
    %1188 = vmatprep.subr.mxu0 %v1127
    %1189 = vmatpush1.msra.mxu0 %v1126
    %1190 = vmatprep.subr.mxu0 %v1125
    %1191 = vmatpush1.msra.mxu0 %v1124
    %1192 = vmatprep.subr.mxu0 %v1123
    %1193 = vmatpush1.msra.mxu0 %v1122
    %1194 = vmatprep.subr.mxu0 %v1121
    %1195 = vmatpush1.msra.mxu0 %v1120
    %1196 = vmatprep.subr.mxu0 0.0
    %1197 = vmatpush2.msra.mxu0 0.0
    %1198 = vmatprep.subr.mxu0 0.0
    %1199 = vmatpush2.msra.mxu0 0.0
    %1200 = vmatprep.subr.mxu0 0.0
    %1201 = vmatpush2.msra.mxu0 0.0
    %1202 = vmatprep.subr.mxu0 0.0
    %1203 = vmatpush2.msra.mxu0 0.0
    %1204 = vmatprep.subr.mxu0 0.0
    %1205 = vmatpush2.msra.mxu0 0.0
    %1206 = vmatprep.subr.mxu0 0.0
    %1207 = vmatpush2.msra.mxu0 0.0
    %1208 = vmatprep.subr.mxu0 0.0
    %1209 = vmatpush2.msra.mxu0 0.0
    %1210 = vmatprep.subr.mxu0 0.0
    %1211 = vmatpush2.msra.mxu0 0.0
    %1212 = vmatprep.subr.mxu0 0.0
    %1213 = vmatpush2.msra.mxu0 0.0
    %1214 = vmatprep.subr.mxu0 0.0
    %1215 = vmatpush2.msra.mxu0 0.0
    %1216 = vmatprep.subr.mxu0 0.0
    %1217 = vmatpush2.msra.mxu0 0.0
    %1218 = vmatprep.subr.mxu0 0.0
    %1219 = vmatpush2.msra.mxu0 0.0
    %1220 = vmatprep.subr.mxu0 0.0
    %1221 = vmatpush2.msra.mxu0 0.0
    %1222 = vmatprep.subr.mxu0 0.0
    %1223 = vmatpush2.msra.mxu0 0.0
    %1224 = vmatprep.subr.mxu0 0.0
    %1225 = vmatpush2.msra.mxu0 0.0
    %1226 = vmatprep.subr.mxu0 0.0
    %1227 = vmatpush2.msra.mxu0 0.0
    %1228 = vmatprep.mubr.f32.mxu0 0.0
    %1229 = vmatmul.mubr.f32.gmra.mxu0 %v1118
    %v1230 = vpop.f32.mrf.mxu0
    %v1231 = vadd.f32 %v1157, %v1230
    %v1232 = vpop.f32.mrf.mxu0
    %v1233 = vadd.f32 %v1161, %v1232
    %1234 = vmatprep.mubr.f32.mxu0 0.0
    %1235 = vmatmul.mubr.f32.gmra.mxu0 %v1119
    %v1236 = vpop.f32.mrf.mxu0
    %v1237 = vadd.f32 %v1157, %v1236
    %v1238 = vpop.f32.mrf.mxu0
    %v1239 = vadd.f32 %v1161, %v1238
    %1240 = vdwg.mxu0
    %v1241 = vmax.f32 %v1231, 0.0
    %v1242 = vmax.f32 %v1233, 0.0
    %v1243 = vmax.f32 %v1237, 0.0
    %v1244 = vmax.f32 %v1239, 0.0
    %v1245 = vld [vmem:[#allocation30] sm:$0xff]
    %v1246 = vld [vmem:[#allocation30 + $0x8] sm:$0xff]
    %v1247 = vld [vmem:[#allocation30 + $0x10] sm:$0xff]
    %v1248 = vld [vmem:[#allocation30 + $0x18] sm:$0xff]
    %v1249 = vld [vmem:[#allocation30 + $0x20] sm:$0xff]
    %v1250 = vld [vmem:[#allocation30 + $0x28] sm:$0xff]
    %v1251 = vld [vmem:[#allocation30 + $0x30] sm:$0xff]
    %v1252 = vld [vmem:[#allocation30 + $0x38] sm:$0xff]
    %v1253 = vld [vmem:[#allocation30 + $0x40] sm:$0xff]
    %v1254 = vld [vmem:[#allocation30 + $0x48] sm:$0xff]
    %v1255 = vld [vmem:[#allocation30 + $0x50] sm:$0xff]
    %v1256 = vld [vmem:[#allocation30 + $0x58] sm:$0xff]
    %v1257 = vld [vmem:[#allocation30 + $0x60] sm:$0xff]
    %v1258 = vld [vmem:[#allocation30 + $0x68] sm:$0xff]
    %v1259 = vld [vmem:[#allocation30 + $0x70] sm:$0xff]
    %v1260 = vld [vmem:[#allocation30 + $0x78] sm:$0xff]
    %v1261 = vld [vmem:[#allocation30 + $0x80] sm:$0xff]
    %v1262 = vld [vmem:[#allocation30 + $0x88] sm:$0xff]
    %v1263 = vld [vmem:[#allocation30 + $0x90] sm:$0xff]
    %v1264 = vld [vmem:[#allocation30 + $0x98] sm:$0xff]
    %v1265 = vld [vmem:[#allocation30 + $0xa0] sm:$0xff]
    %v1266 = vld [vmem:[#allocation30 + $0xa8] sm:$0xff]
    %v1267 = vld [vmem:[#allocation30 + $0xb0] sm:$0xff]
    %v1268 = vld [vmem:[#allocation30 + $0xb8] sm:$0xff]
    %v1269 = vld [vmem:[#allocation30 + $0xc0] sm:$0xff]
    %v1270 = vld [vmem:[#allocation30 + $0xc8] sm:$0xff]
    %v1271 = vld [vmem:[#allocation30 + $0xd0] sm:$0xff]
    %v1272 = vld [vmem:[#allocation30 + $0xd8] sm:$0xff]
    %v1273 = vld [vmem:[#allocation30 + $0xe0] sm:$0xff]
    %v1274 = vld [vmem:[#allocation30 + $0xe8] sm:$0xff]
    %v1275 = vld [vmem:[#allocation30 + $0xf0] sm:$0xff]
    %v1276 = vld [vmem:[#allocation30 + $0xf8] sm:$0xff]
    %v1277 = vld [vmem:[#allocation30 + $0x100] sm:$0xff]
    %v1278 = vld [vmem:[#allocation30 + $0x108] sm:$0xff]
    %v1279 = vld [vmem:[#allocation30 + $0x110] sm:$0xff]
    %v1280 = vld [vmem:[#allocation30 + $0x118] sm:$0xff]
    %v1281 = vld [vmem:[#allocation30 + $0x120] sm:$0xff]
    %v1282 = vld [vmem:[#allocation30 + $0x128] sm:$0xff]
    %v1283 = vld [vmem:[#allocation30 + $0x130] sm:$0xff]
    %v1284 = vld [vmem:[#allocation30 + $0x138] sm:$0xff]
    %v1285 = vld [vmem:[#allocation30 + $0x140] sm:$0xff]
    %v1286 = vld [vmem:[#allocation30 + $0x148] sm:$0xff]
    %v1287 = vld [vmem:[#allocation30 + $0x150] sm:$0xff]
    %v1288 = vld [vmem:[#allocation30 + $0x158] sm:$0xff]
    %v1289 = vld [vmem:[#allocation30 + $0x160] sm:$0xff]
    %v1290 = vld [vmem:[#allocation30 + $0x168] sm:$0xff]
    %v1291 = vld [vmem:[#allocation30 + $0x170] sm:$0xff]
    %v1292 = vld [vmem:[#allocation30 + $0x178] sm:$0xff]
    %v1293 = vld [vmem:[#allocation30 + $0x180] sm:$0xff]
    %v1294 = vld [vmem:[#allocation30 + $0x188] sm:$0xff]
    %v1295 = vld [vmem:[#allocation30 + $0x190] sm:$0xff]
    %v1296 = vld [vmem:[#allocation30 + $0x198] sm:$0xff]
    %v1297 = vld [vmem:[#allocation30 + $0x1a0] sm:$0xff]
    %v1298 = vld [vmem:[#allocation30 + $0x1a8] sm:$0xff]
    %v1299 = vld [vmem:[#allocation30 + $0x1b0] sm:$0xff]
    %v1300 = vld [vmem:[#allocation30 + $0x1b8] sm:$0xff]
    %v1301 = vld [vmem:[#allocation30 + $0x1c0] sm:$0xff]
    %v1302 = vld [vmem:[#allocation30 + $0x1c8] sm:$0xff]
    %v1303 = vld [vmem:[#allocation30 + $0x1d0] sm:$0xff]
    %v1304 = vld [vmem:[#allocation30 + $0x1d8] sm:$0xff]
    %v1305 = vld [vmem:[#allocation30 + $0x1e0] sm:$0xff]
    %v1306 = vld [vmem:[#allocation30 + $0x1e8] sm:$0xff]
    %v1307 = vld [vmem:[#allocation30 + $0x1f0] sm:$0xff]
    %v1308 = vld [vmem:[#allocation30 + $0x1f8] sm:$0xff]
    %v1309 = vld [vmem:[#allocation30 + $0x200] sm:$0xff]
    %v1310 = vld [vmem:[#allocation30 + $0x208] sm:$0xff]
    %v1311 = vld [vmem:[#allocation30 + $0x210] sm:$0xff]
    %v1312 = vld [vmem:[#allocation30 + $0x218] sm:$0xff]
    %v1313 = vld [vmem:[#allocation30 + $0x220] sm:$0xff]
    %v1314 = vld [vmem:[#allocation30 + $0x228] sm:$0xff]
    %v1315 = vld [vmem:[#allocation30 + $0x230] sm:$0xff]
    %v1316 = vld [vmem:[#allocation30 + $0x238] sm:$0xff]
    %v1317 = vld [vmem:[#allocation30 + $0x240] sm:$0xff]
    %v1318 = vld [vmem:[#allocation30 + $0x248] sm:$0xff]
    %v1319 = vld [vmem:[#allocation30 + $0x250] sm:$0xff]
    %v1320 = vld [vmem:[#allocation30 + $0x258] sm:$0xff]
    %v1321 = vld [vmem:[#allocation30 + $0x260] sm:$0xff]
    %v1322 = vld [vmem:[#allocation30 + $0x268] sm:$0xff]
    %v1323 = vld [vmem:[#allocation30 + $0x270] sm:$0xff]
    %v1324 = vld [vmem:[#allocation30 + $0x278] sm:$0xff]
    %v1325 = vld [vmem:[#allocation30 + $0x280] sm:$0xff]
    %v1326 = vld [vmem:[#allocation30 + $0x288] sm:$0xff]
    %v1327 = vld [vmem:[#allocation30 + $0x290] sm:$0xff]
    %v1328 = vld [vmem:[#allocation30 + $0x298] sm:$0xff]
    %v1329 = vld [vmem:[#allocation30 + $0x2a0] sm:$0xff]
    %v1330 = vld [vmem:[#allocation30 + $0x2a8] sm:$0xff]
    %v1331 = vld [vmem:[#allocation30 + $0x2b0] sm:$0xff]
    %v1332 = vld [vmem:[#allocation30 + $0x2b8] sm:$0xff]
    %v1333 = vld [vmem:[#allocation30 + $0x2c0] sm:$0xff]
    %v1334 = vld [vmem:[#allocation30 + $0x2c8] sm:$0xff]
    %v1335 = vld [vmem:[#allocation30 + $0x2d0] sm:$0xff]
    %v1336 = vld [vmem:[#allocation30 + $0x2d8] sm:$0xff]
    %v1337 = vld [vmem:[#allocation30 + $0x2e0] sm:$0xff]
    %v1338 = vld [vmem:[#allocation30 + $0x2e8] sm:$0xff]
    %v1339 = vld [vmem:[#allocation30 + $0x2f0] sm:$0xff]
    %v1340 = vld [vmem:[#allocation30 + $0x2f8] sm:$0xff]
    %v1341 = vld [vmem:[#allocation31] sm:$0x7]
    %v1343 = vlaneseq
    %v1344 = vshrl.u32 %v1343, 7
    %v1345 = vsub.s32 0, %v1344
    %v1346 = vrot.slane %v1341, %v1345
    %v1347 = vlaneseq
    %v1348 = vshrl.u32 %v1347, 7
    %v1349 = vsub.s32 1, %v1348
    %v1350 = vrot.slane %v1341, %v1349
    %v1351 = vlaneseq
    %v1352 = vshrl.u32 %v1351, 7
    %v1353 = vsub.s32 2, %v1352
    %v1354 = vrot.slane %v1341, %v1353
    %1358 = vmatprep.subr.mxu0 %v1291
    %1359 = vmatpush1.msra.mxu0 %v1290
    %1360 = vmatprep.subr.mxu0 %v1288
    %1361 = vmatpush1.msra.mxu0 %v1287
    %1362 = vmatprep.subr.mxu0 %v1285
    %1363 = vmatpush1.msra.mxu0 %v1284
    %1364 = vmatprep.subr.mxu0 %v1282
    %1365 = vmatpush1.msra.mxu0 %v1281
    %1366 = vmatprep.subr.mxu0 %v1279
    %1367 = vmatpush1.msra.mxu0 %v1278
    %1368 = vmatprep.subr.mxu0 %v1276
    %1369 = vmatpush1.msra.mxu0 %v1275
    %1370 = vmatprep.subr.mxu0 %v1273
    %1371 = vmatpush1.msra.mxu0 %v1272
    %1372 = vmatprep.subr.mxu0 %v1270
    %1373 = vmatpush1.msra.mxu0 %v1269
    %1374 = vmatprep.subr.mxu0 %v1267
    %1375 = vmatpush1.msra.mxu0 %v1266
    %1376 = vmatprep.subr.mxu0 %v1264
    %1377 = vmatpush1.msra.mxu0 %v1263
    %1378 = vmatprep.subr.mxu0 %v1261
    %1379 = vmatpush1.msra.mxu0 %v1260
    %1380 = vmatprep.subr.mxu0 %v1258
    %1381 = vmatpush1.msra.mxu0 %v1257
    %1382 = vmatprep.subr.mxu0 %v1255
    %1383 = vmatpush1.msra.mxu0 %v1254
    %1384 = vmatprep.subr.mxu0 %v1252
    %1385 = vmatpush1.msra.mxu0 %v1251
    %1386 = vmatprep.subr.mxu0 %v1249
    %1387 = vmatpush1.msra.mxu0 %v1248
    %1388 = vmatprep.subr.mxu0 %v1246
    %1389 = vmatpush1.msra.mxu0 %v1245
    %1390 = vmatprep.subr.mxu0 %v1339
    %1391 = vmatpush2.msra.mxu0 %v1338
    %1392 = vmatprep.subr.mxu0 %v1336
    %1393 = vmatpush2.msra.mxu0 %v1335
    %1394 = vmatprep.subr.mxu0 %v1333
    %1395 = vmatpush2.msra.mxu0 %v1332
    %1396 = vmatprep.subr.mxu0 %v1330
    %1397 = vmatpush2.msra.mxu0 %v1329
    %1398 = vmatprep.subr.mxu0 %v1327
    %1399 = vmatpush2.msra.mxu0 %v1326
    %1400 = vmatprep.subr.mxu0 %v1324
    %1401 = vmatpush2.msra.mxu0 %v1323
    %1402 = vmatprep.subr.mxu0 %v1321
    %1403 = vmatpush2.msra.mxu0 %v1320
    %1404 = vmatprep.subr.mxu0 %v1318
    %1405 = vmatpush2.msra.mxu0 %v1317
    %1406 = vmatprep.subr.mxu0 %v1315
    %1407 = vmatpush2.msra.mxu0 %v1314
    %1408 = vmatprep.subr.mxu0 %v1312
    %1409 = vmatpush2.msra.mxu0 %v1311
    %1410 = vmatprep.subr.mxu0 %v1309
    %1411 = vmatpush2.msra.mxu0 %v1308
    %1412 = vmatprep.subr.mxu0 %v1306
    %1413 = vmatpush2.msra.mxu0 %v1305
    %1414 = vmatprep.subr.mxu0 %v1303
    %1415 = vmatpush2.msra.mxu0 %v1302
    %1416 = vmatprep.subr.mxu0 %v1300
    %1417 = vmatpush2.msra.mxu0 %v1299
    %1418 = vmatprep.subr.mxu0 %v1297
    %1419 = vmatpush2.msra.mxu0 %v1296
    %1420 = vmatprep.subr.mxu0 %v1294
    %1421 = vmatpush2.msra.mxu0 %v1293
    %1422 = vmatprep.mubr.f32.mxu0 %v1242
    %1423 = vmatmul.mubr.f32.gmra.mxu0 %v1241
    %v1424 = vpop.f32.mrf.mxu0
    %v1425 = vadd.f32 %v1346, %v1424
    %v1426 = vpop.f32.mrf.mxu0
    %v1427 = vadd.f32 %v1350, %v1426
    %1428 = vmatprep.mubr.f32.mxu0 %v1244
    %1429 = vmatmul.mubr.f32.gmra.mxu0 %v1243
    %v1430 = vpop.f32.mrf.mxu0
    %v1431 = vadd.f32 %v1346, %v1430
    %v1432 = vpop.f32.mrf.mxu0
    %v1433 = vadd.f32 %v1350, %v1432
    %1434 = vdwg.mxu0
    %1435 = vmatprep.subr.mxu0 0.0
    %1436 = vmatpush1.msra.mxu0 %v1292
    %1437 = vmatprep.subr.mxu0 0.0
    %1438 = vmatpush1.msra.mxu0 %v1289
    %1439 = vmatprep.subr.mxu0 0.0
    %1440 = vmatpush1.msra.mxu0 %v1286
    %1441 = vmatprep.subr.mxu0 0.0
    %1442 = vmatpush1.msra.mxu0 %v1283
    %1443 = vmatprep.subr.mxu0 0.0
    %1444 = vmatpush1.msra.mxu0 %v1280
    %1445 = vmatprep.subr.mxu0 0.0
    %1446 = vmatpush1.msra.mxu0 %v1277
    %1447 = vmatprep.subr.mxu0 0.0
    %1448 = vmatpush1.msra.mxu0 %v1274
    %1449 = vmatprep.subr.mxu0 0.0
    %1450 = vmatpush1.msra.mxu0 %v1271
    %1451 = vmatprep.subr.mxu0 0.0
    %1452 = vmatpush1.msra.mxu0 %v1268
    %1453 = vmatprep.subr.mxu0 0.0
    %1454 = vmatpush1.msra.mxu0 %v1265
    %1455 = vmatprep.subr.mxu0 0.0
    %1456 = vmatpush1.msra.mxu0 %v1262
    %1457 = vmatprep.subr.mxu0 0.0
    %1458 = vmatpush1.msra.mxu0 %v1259
    %1459 = vmatprep.subr.mxu0 0.0
    %1460 = vmatpush1.msra.mxu0 %v1256
    %1461 = vmatprep.subr.mxu0 0.0
    %1462 = vmatpush1.msra.mxu0 %v1253
    %1463 = vmatprep.subr.mxu0 0.0
    %1464 = vmatpush1.msra.mxu0 %v1250
    %1465 = vmatprep.subr.mxu0 0.0
    %1466 = vmatpush1.msra.mxu0 %v1247
    %1467 = vmatprep.subr.mxu0 0.0
    %1468 = vmatpush2.msra.mxu0 %v1340
    %1469 = vmatprep.subr.mxu0 0.0
    %1470 = vmatpush2.msra.mxu0 %v1337
    %1471 = vmatprep.subr.mxu0 0.0
    %1472 = vmatpush2.msra.mxu0 %v1334
    %1473 = vmatprep.subr.mxu0 0.0
    %1474 = vmatpush2.msra.mxu0 %v1331
    %1475 = vmatprep.subr.mxu0 0.0
    %1476 = vmatpush2.msra.mxu0 %v1328
    %1477 = vmatprep.subr.mxu0 0.0
    %1478 = vmatpush2.msra.mxu0 %v1325
    %1479 = vmatprep.subr.mxu0 0.0
    %1480 = vmatpush2.msra.mxu0 %v1322
    %1481 = vmatprep.subr.mxu0 0.0
    %1482 = vmatpush2.msra.mxu0 %v1319
    %1483 = vmatprep.subr.mxu0 0.0
    %1484 = vmatpush2.msra.mxu0 %v1316
    %1485 = vmatprep.subr.mxu0 0.0
    %1486 = vmatpush2.msra.mxu0 %v1313
    %1487 = vmatprep.subr.mxu0 0.0
    %1488 = vmatpush2.msra.mxu0 %v1310
    %1489 = vmatprep.subr.mxu0 0.0
    %1490 = vmatpush2.msra.mxu0 %v1307
    %1491 = vmatprep.subr.mxu0 0.0
    %1492 = vmatpush2.msra.mxu0 %v1304
    %1493 = vmatprep.subr.mxu0 0.0
    %1494 = vmatpush2.msra.mxu0 %v1301
    %1495 = vmatprep.subr.mxu0 0.0
    %1496 = vmatpush2.msra.mxu0 %v1298
    %1497 = vmatprep.subr.mxu0 0.0
    %1498 = vmatpush2.msra.mxu0 %v1295
    %1499 = vmatprep.mubr.f32.mxu0 %v1242
    %1500 = vmatmul.mubr.f32.gmra.mxu0 %v1241
    %v1501 = vpop.f32.mrf.mxu0
    %v1502 = vadd.f32 %v1354, %v1501
    %v1503 = vpop.f32.mrf.mxu0
    %1504 = vmatprep.mubr.f32.mxu0 %v1244
    %1505 = vmatmul.mubr.f32.gmra.mxu0 %v1243
    %v1506 = vpop.f32.mrf.mxu0
    %v1507 = vadd.f32 %v1354, %v1506
    %v1508 = vpop.f32.mrf.mxu0
    %1509 = vdwg.mxu0
    %1510 = vst [vmem:[%s21] sm:$0xff] %v1425
    %1511 = vst [vmem:[%s21 + $0x8] sm:$0xff] %v1427
    %1512 = vst [vmem:[%s21 + $0x10] sm:$0xff] %v1502
    %1513 = vst [vmem:[%s21 + $0x18] sm:$0xff] %v1431
    %1514 = vst [vmem:[%s21 + $0x20] sm:$0xff] %v1433
    %1515 = vst [vmem:[%s21 + $0x28] sm:$0xff] %v1507
    // Predicated region
    $region166: #{model_map_predict.2} parent=1 // pred_check
      _
    $region167: #{model_map_predict.2} parent=1 // pred_check_branch
      %1517 = sbr.rel (0) target = $region169
    $region168: #{model_map_predict.2} parent=1 // pred_region
      _
    $region169: #{model_map_predict.2} parent=1 // pred_fallthru
      _
    // Predicated region
    $region170: #{model_map_predict.2} parent=1 // pred_check
      _
    $region171: #{model_map_predict.2} parent=1 // pred_check_branch
      %1519 = sbr.rel (0) target = $region173
    $region172: #{model_map_predict.2} parent=1 // pred_region
      _
    $region173: #{model_map_predict.2} parent=1 // pred_fallthru
      _
    %1520 = vsyncpa [#allocation3], 1
    %1521 = vsyncpa [#allocation5], 1
    %1522 = vsyncpa [#allocation8], 1
    %1523 = vsyncpa [#allocation11], 1
    %1524 = vsyncpa [#allocation14], 1
    %1525 = vsyncpa [#allocation17], 1
    %1526 = vsyncpa [#allocation20], 1
    %1527 = vsyncpa [#allocation23], 1
    %1528 = vsyncpa [#allocation26], 1
    %1529 = vsyncpa [#allocation29], 1
    %1530 = vsyncpa [#allocation32], 1

// kernel: model_map_predict.3
$region0: #{model_map_predict.3}
  #allocation0 [shape = 'u32[]', space=smem, size = 0x4, offset = 0x4, fixed_abs, tag = 'smem constant byte address 0x4 - core index']
  #allocation1 [shape = 'u32[144,128]{1,0:T(1,128)}', space=vmem, size = 0x12000, scoped, tag = 'internal scratch']
  #allocation2 [shape = 'f32[2,256]{1,0:T(2,128)}', space=vmem, size = 0x800, scoped, tag = 'scratch operand']
  %s0 = inlined_call_operand.vmem [shape: f32[8,2,384], index: 0, kind: input, shape index: {}]
  %s1 = inlined_call_operand.vmem [shape: f32[1,256], index: 1, kind: input, shape index: {}]
  %s2 = inlined_call_operand.vmem [shape: f32[256,384], index: 2, kind: input, shape index: {}]
  %s3 = inlined_call_operand.vmem [shape: f32[384,384], index: 3, kind: input, shape index: {}]
  %s4 = inlined_call_operand.vmem [shape: f32[1,384], index: 4, kind: input, shape index: {}]
  %s5 = inlined_call_operand.hbm [shape: f32[384,256], index: 5, kind: input, shape index: {}]
  %s6 = inlined_call_operand.vmem [shape: f32[1,256], index: 6, kind: input, shape index: {}]
  %s7 = inlined_call_operand.vmem [shape: f32[8,2,256], index: 7, kind: output, shape index: {}]
  %s8 = sld [smem:[#allocation0]]
  $region53: #{model_map_predict.3} parent=0
    _
  %s10 = ssub.s32 1, %s8
  %s11 = scalar_select 0, %s10, %s8
  $region1: #{model_map_predict.3} parent=0
    #allocation3 [shape = 'u8[393216]{0}', space=vmem, size = 0x60000, scoped, tag = 'input window, operand 5, single buffered']
    #allocation4 [shape = 's32[1]{0}', space=sflag, size = 0x4, scoped, tag = 'scoped memory for model_map_predict.3']
    %12 = vsyncpa [#allocation4], 0
    // Predicated region
    $region2: #{model_map_predict.3} parent=1 // pred_check
      _
    $region3: #{model_map_predict.3} parent=1 // pred_check_branch
      %14 = sbr.rel (0) target = $region5
    $region4: #{model_map_predict.3} parent=1 // pred_region
      _
    $region5: #{model_map_predict.3} parent=1 // pred_fallthru
      _
    // Predicated region
    $region6: #{model_map_predict.3} parent=1 // pred_check
      _
    $region7: #{model_map_predict.3} parent=1 // pred_check_branch
      %16 = sbr.rel (0) target = $region9
    $region8: #{model_map_predict.3} parent=1 // pred_region
      _
    $region9: #{model_map_predict.3} parent=1 // pred_fallthru
      _
    // Predicated region
    $region10: #{model_map_predict.3} parent=1 // pred_check
      _
    $region11: #{model_map_predict.3} parent=1 // pred_check_branch
      %18 = sbr.rel (0) target = $region13
    $region12: #{model_map_predict.3} parent=1 // pred_region
      _
    $region13: #{model_map_predict.3} parent=1 // pred_fallthru
      _
    // Predicated region
    $region14: #{model_map_predict.3} parent=1 // pred_check
      _
    $region15: #{model_map_predict.3} parent=1 // pred_check_branch
      %20 = sbr.rel (0) target = $region17
    $region16: #{model_map_predict.3} parent=1 // pred_region
      _
    $region17: #{model_map_predict.3} parent=1 // pred_fallthru
      _
    // Predicated region
    $region18: #{model_map_predict.3} parent=1 // pred_check
      _
    $region19: #{model_map_predict.3} parent=1 // pred_check_branch
      %22 = sbr.rel (0) target = $region21
    $region20: #{model_map_predict.3} parent=1 // pred_region
      _
    $region21: #{model_map_predict.3} parent=1 // pred_fallthru
      _
    // Predicated region
    $region22: #{model_map_predict.3} parent=1 // pred_check
      _
    $region23: #{model_map_predict.3} parent=1 // pred_check_branch
      %24 = sbr.rel (0) target = $region25
    $region24: #{model_map_predict.3} parent=1 // pred_region
      %s26 = ssub.s32 12288, 12288
      %27 = vsyncadd [#allocation4], %s26
      %s28 = sshll.u32 [#allocation3], 4
      %s29 = int_to_ptr.vmem [resolvable:$true] %s28
      %34 = dma.hbm_to_vmem [thread:$0]  %s5, 12288, %s29, [#allocation4], 256, 256, 16
    $region25: #{model_map_predict.3} parent=1 // pred_fallthru
      _
    // Predicated region
    $region26: #{model_map_predict.3} parent=1 // pred_check
      _
    $region27: #{model_map_predict.3} parent=1 // pred_check_branch
      %36 = sbr.rel (0) target = $region29
    $region28: #{model_map_predict.3} parent=1 // pred_region
      _
    $region29: #{model_map_predict.3} parent=1 // pred_fallthru
      _
    // Predicated region
    $region30: #{model_map_predict.3} parent=1 // pred_check
      _
    $region31: #{model_map_predict.3} parent=1 // pred_check_branch
      %38 = sbr.rel (0) target = $region33
    $region32: #{model_map_predict.3} parent=1 // pred_region
      %39 = dma.done [#allocation4], 12288
    $region33: #{model_map_predict.3} parent=1 // pred_fallthru
      _
    %p40 = scmp.eq.s32.totalorder 0, 0
    // Predicated region
    $region34: #{model_map_predict.3} parent=1 // pred_check
      %p41 = pneg %p40
    $region35: #{model_map_predict.3} parent=1 // pred_check_branch
      %43 = sbr.rel (%p41) target = $region37
    $region36: #{model_map_predict.3} parent=1 // pred_region
      %v44 = vld [vmem:[%s1] sm:$0x3]
      %v46 = vlaneseq
      %v47 = vshrl.u32 %v46, 7
      %v48 = vsub.s32 0, %v47
      %v49 = vrot.slane %v44, %v48
      %v50 = vlaneseq
      %v51 = vshrl.u32 %v50, 7
      %v52 = vsub.s32 1, %v51
      %v53 = vrot.slane %v44, %v52
      %v54 = vcombine.low %v49, %v53
      %v56 = vunpack.c.l.s4 1983009808
      %v57 = vunpack.c.0.s8 %v56
      %v58 = vlaneseq
      %v59 = vshrl.u32 %v58, 7
      %v60 = vsub.s32 %v57, %v59
      %v61 = vrot.slane %v54, %v60
      %63 = vst [vmem:[#allocation2] sm:$0xf] %v61
    $region37: #{model_map_predict.3} parent=1 // pred_fallthru
      _
    %v64 = vld [vmem:[%s2] sm:$0xff]
    %v65 = vld [vmem:[%s2 + $0x8] sm:$0xff]
    %v66 = vld [vmem:[%s2 + $0x10] sm:$0xff]
    %v67 = vld [vmem:[%s2 + $0x18] sm:$0xff]
    %v68 = vld [vmem:[%s2 + $0x20] sm:$0xff]
    %v69 = vld [vmem:[%s2 + $0x28] sm:$0xff]
    %v70 = vld [vmem:[%s2 + $0x30] sm:$0xff]
    %v71 = vld [vmem:[%s2 + $0x38] sm:$0xff]
    %v72 = vld [vmem:[%s2 + $0x40] sm:$0xff]
    %v73 = vld [vmem:[%s2 + $0x48] sm:$0xff]
    %v74 = vld [vmem:[%s2 + $0x50] sm:$0xff]
    %v75 = vld [vmem:[%s2 + $0x58] sm:$0xff]
    %v76 = vld [vmem:[%s2 + $0x60] sm:$0xff]
    %v77 = vld [vmem:[%s2 + $0x68] sm:$0xff]
    %v78 = vld [vmem:[%s2 + $0x70] sm:$0xff]
    %v79 = vld [vmem:[%s2 + $0x78] sm:$0xff]
    %v80 = vld [vmem:[%s2 + $0x80] sm:$0xff]
    %v81 = vld [vmem:[%s2 + $0x88] sm:$0xff]
    %v82 = vld [vmem:[%s2 + $0x90] sm:$0xff]
    %v83 = vld [vmem:[%s2 + $0x98] sm:$0xff]
    %v84 = vld [vmem:[%s2 + $0xa0] sm:$0xff]
    %v85 = vld [vmem:[%s2 + $0xa8] sm:$0xff]
    %v86 = vld [vmem:[%s2 + $0xb0] sm:$0xff]
    %v87 = vld [vmem:[%s2 + $0xb8] sm:$0xff]
    %v88 = vld [vmem:[%s2 + $0xc0] sm:$0xff]
    %v89 = vld [vmem:[%s2 + $0xc8] sm:$0xff]
    %v90 = vld [vmem:[%s2 + $0xd0] sm:$0xff]
    %v91 = vld [vmem:[%s2 + $0xd8] sm:$0xff]
    %v92 = vld [vmem:[%s2 + $0xe0] sm:$0xff]
    %v93 = vld [vmem:[%s2 + $0xe8] sm:$0xff]
    %v94 = vld [vmem:[%s2 + $0xf0] sm:$0xff]
    %v95 = vld [vmem:[%s2 + $0xf8] sm:$0xff]
    %v96 = vld [vmem:[%s2 + $0x100] sm:$0xff]
    %v97 = vld [vmem:[%s2 + $0x108] sm:$0xff]
    %v98 = vld [vmem:[%s2 + $0x110] sm:$0xff]
    %v99 = vld [vmem:[%s2 + $0x118] sm:$0xff]
    %v100 = vld [vmem:[%s2 + $0x120] sm:$0xff]
    %v101 = vld [vmem:[%s2 + $0x128] sm:$0xff]
    %v102 = vld [vmem:[%s2 + $0x130] sm:$0xff]
    %v103 = vld [vmem:[%s2 + $0x138] sm:$0xff]
    %v104 = vld [vmem:[%s2 + $0x140] sm:$0xff]
    %v105 = vld [vmem:[%s2 + $0x148] sm:$0xff]
    %v106 = vld [vmem:[%s2 + $0x150] sm:$0xff]
    %v107 = vld [vmem:[%s2 + $0x158] sm:$0xff]
    %v108 = vld [vmem:[%s2 + $0x160] sm:$0xff]
    %v109 = vld [vmem:[%s2 + $0x168] sm:$0xff]
    %v110 = vld [vmem:[%s2 + $0x170] sm:$0xff]
    %v111 = vld [vmem:[%s2 + $0x178] sm:$0xff]
    %v112 = vld [vmem:[%s2 + $0x180] sm:$0xff]
    %v113 = vld [vmem:[%s2 + $0x188] sm:$0xff]
    %v114 = vld [vmem:[%s2 + $0x190] sm:$0xff]
    %v115 = vld [vmem:[%s2 + $0x198] sm:$0xff]
    %v116 = vld [vmem:[%s2 + $0x1a0] sm:$0xff]
    %v117 = vld [vmem:[%s2 + $0x1a8] sm:$0xff]
    %v118 = vld [vmem:[%s2 + $0x1b0] sm:$0xff]
    %v119 = vld [vmem:[%s2 + $0x1b8] sm:$0xff]
    %v120 = vld [vmem:[%s2 + $0x1c0] sm:$0xff]
    %v121 = vld [vmem:[%s2 + $0x1c8] sm:$0xff]
    %v122 = vld [vmem:[%s2 + $0x1d0] sm:$0xff]
    %v123 = vld [vmem:[%s2 + $0x1d8] sm:$0xff]
    %v124 = vld [vmem:[%s2 + $0x1e0] sm:$0xff]
    %v125 = vld [vmem:[%s2 + $0x1e8] sm:$0xff]
    %v126 = vld [vmem:[%s2 + $0x1f0] sm:$0xff]
    %v127 = vld [vmem:[%s2 + $0x1f8] sm:$0xff]
    %v128 = vld [vmem:[%s2 + $0x200] sm:$0xff]
    %v129 = vld [vmem:[%s2 + $0x208] sm:$0xff]
    %v130 = vld [vmem:[%s2 + $0x210] sm:$0xff]
    %v131 = vld [vmem:[%s2 + $0x218] sm:$0xff]
    %v132 = vld [vmem:[%s2 + $0x220] sm:$0xff]
    %v133 = vld [vmem:[%s2 + $0x228] sm:$0xff]
    %v134 = vld [vmem:[%s2 + $0x230] sm:$0xff]
    %v135 = vld [vmem:[%s2 + $0x238] sm:$0xff]
    %v136 = vld [vmem:[%s2 + $0x240] sm:$0xff]
    %v137 = vld [vmem:[%s2 + $0x248] sm:$0xff]
    %v138 = vld [vmem:[%s2 + $0x250] sm:$0xff]
    %v139 = vld [vmem:[%s2 + $0x258] sm:$0xff]
    %v140 = vld [vmem:[%s2 + $0x260] sm:$0xff]
    %v141 = vld [vmem:[%s2 + $0x268] sm:$0xff]
    %v142 = vld [vmem:[%s2 + $0x270] sm:$0xff]
    %v143 = vld [vmem:[%s2 + $0x278] sm:$0xff]
    %v144 = vld [vmem:[%s2 + $0x280] sm:$0xff]
    %v145 = vld [vmem:[%s2 + $0x288] sm:$0xff]
    %v146 = vld [vmem:[%s2 + $0x290] sm:$0xff]
    %v147 = vld [vmem:[%s2 + $0x298] sm:$0xff]
    %v148 = vld [vmem:[%s2 + $0x2a0] sm:$0xff]
    %v149 = vld [vmem:[%s2 + $0x2a8] sm:$0xff]
    %v150 = vld [vmem:[%s2 + $0x2b0] sm:$0xff]
    %v151 = vld [vmem:[%s2 + $0x2b8] sm:$0xff]
    %v152 = vld [vmem:[%s2 + $0x2c0] sm:$0xff]
    %v153 = vld [vmem:[%s2 + $0x2c8] sm:$0xff]
    %v154 = vld [vmem:[%s2 + $0x2d0] sm:$0xff]
    %v155 = vld [vmem:[%s2 + $0x2d8] sm:$0xff]
    %v156 = vld [vmem:[%s2 + $0x2e0] sm:$0xff]
    %v157 = vld [vmem:[%s2 + $0x2e8] sm:$0xff]
    %v158 = vld [vmem:[%s2 + $0x2f0] sm:$0xff]
    %v159 = vld [vmem:[%s2 + $0x2f8] sm:$0xff]
    %v160 = vld [vmem:[%s3] sm:$0xff]
    %v161 = vld [vmem:[%s3 + $0x8] sm:$0xff]
    %v162 = vld [vmem:[%s3 + $0x10] sm:$0xff]
    %v163 = vld [vmem:[%s3 + $0x18] sm:$0xff]
    %v164 = vld [vmem:[%s3 + $0x20] sm:$0xff]
    %v165 = vld [vmem:[%s3 + $0x28] sm:$0xff]
    %v166 = vld [vmem:[%s3 + $0x30] sm:$0xff]
    %v167 = vld [vmem:[%s3 + $0x38] sm:$0xff]
    %v168 = vld [vmem:[%s3 + $0x40] sm:$0xff]
    %v169 = vld [vmem:[%s3 + $0x48] sm:$0xff]
    %v170 = vld [vmem:[%s3 + $0x50] sm:$0xff]
    %v171 = vld [vmem:[%s3 + $0x58] sm:$0xff]
    %v172 = vld [vmem:[%s3 + $0x60] sm:$0xff]
    %v173 = vld [vmem:[%s3 + $0x68] sm:$0xff]
    %v174 = vld [vmem:[%s3 + $0x70] sm:$0xff]
    %v175 = vld [vmem:[%s3 + $0x78] sm:$0xff]
    %v176 = vld [vmem:[%s3 + $0x80] sm:$0xff]
    %v177 = vld [vmem:[%s3 + $0x88] sm:$0xff]
    %v178 = vld [vmem:[%s3 + $0x90] sm:$0xff]
    %v179 = vld [vmem:[%s3 + $0x98] sm:$0xff]
    %v180 = vld [vmem:[%s3 + $0xa0] sm:$0xff]
    %v181 = vld [vmem:[%s3 + $0xa8] sm:$0xff]
    %v182 = vld [vmem:[%s3 + $0xb0] sm:$0xff]
    %v183 = vld [vmem:[%s3 + $0xb8] sm:$0xff]
    %v184 = vld [vmem:[%s3 + $0xc0] sm:$0xff]
    %v185 = vld [vmem:[%s3 + $0xc8] sm:$0xff]
    %v186 = vld [vmem:[%s3 + $0xd0] sm:$0xff]
    %v187 = vld [vmem:[%s3 + $0xd8] sm:$0xff]
    %v188 = vld [vmem:[%s3 + $0xe0] sm:$0xff]
    %v189 = vld [vmem:[%s3 + $0xe8] sm:$0xff]
    %v190 = vld [vmem:[%s3 + $0xf0] sm:$0xff]
    %v191 = vld [vmem:[%s3 + $0xf8] sm:$0xff]
    %v192 = vld [vmem:[%s3 + $0x100] sm:$0xff]
    %v193 = vld [vmem:[%s3 + $0x108] sm:$0xff]
    %v194 = vld [vmem:[%s3 + $0x110] sm:$0xff]
    %v195 = vld [vmem:[%s3 + $0x118] sm:$0xff]
    %v196 = vld [vmem:[%s3 + $0x120] sm:$0xff]
    %v197 = vld [vmem:[%s3 + $0x128] sm:$0xff]
    %v198 = vld [vmem:[%s3 + $0x130] sm:$0xff]
    %v199 = vld [vmem:[%s3 + $0x138] sm:$0xff]
    %v200 = vld [vmem:[%s3 + $0x140] sm:$0xff]
    %v201 = vld [vmem:[%s3 + $0x148] sm:$0xff]
    %v202 = vld [vmem:[%s3 + $0x150] sm:$0xff]
    %v203 = vld [vmem:[%s3 + $0x158] sm:$0xff]
    %v204 = vld [vmem:[%s3 + $0x160] sm:$0xff]
    %v205 = vld [vmem:[%s3 + $0x168] sm:$0xff]
    %v206 = vld [vmem:[%s3 + $0x170] sm:$0xff]
    %v207 = vld [vmem:[%s3 + $0x178] sm:$0xff]
    %v208 = vld [vmem:[%s3 + $0x180] sm:$0xff]
    %v209 = vld [vmem:[%s3 + $0x188] sm:$0xff]
    %v210 = vld [vmem:[%s3 + $0x190] sm:$0xff]
    %v211 = vld [vmem:[%s3 + $0x198] sm:$0xff]
    %v212 = vld [vmem:[%s3 + $0x1a0] sm:$0xff]
    %v213 = vld [vmem:[%s3 + $0x1a8] sm:$0xff]
    %v214 = vld [vmem:[%s3 + $0x1b0] sm:$0xff]
    %v215 = vld [vmem:[%s3 + $0x1b8] sm:$0xff]
    %v216 = vld [vmem:[%s3 + $0x1c0] sm:$0xff]
    %v217 = vld [vmem:[%s3 + $0x1c8] sm:$0xff]
    %v218 = vld [vmem:[%s3 + $0x1d0] sm:$0xff]
    %v219 = vld [vmem:[%s3 + $0x1d8] sm:$0xff]
    %v220 = vld [vmem:[%s3 + $0x1e0] sm:$0xff]
    %v221 = vld [vmem:[%s3 + $0x1e8] sm:$0xff]
    %v222 = vld [vmem:[%s3 + $0x1f0] sm:$0xff]
    %v223 = vld [vmem:[%s3 + $0x1f8] sm:$0xff]
    %v224 = vld [vmem:[%s3 + $0x200] sm:$0xff]
    %v225 = vld [vmem:[%s3 + $0x208] sm:$0xff]
    %v226 = vld [vmem:[%s3 + $0x210] sm:$0xff]
    %v227 = vld [vmem:[%s3 + $0x218] sm:$0xff]
    %v228 = vld [vmem:[%s3 + $0x220] sm:$0xff]
    %v229 = vld [vmem:[%s3 + $0x228] sm:$0xff]
    %v230 = vld [vmem:[%s3 + $0x230] sm:$0xff]
    %v231 = vld [vmem:[%s3 + $0x238] sm:$0xff]
    %v232 = vld [vmem:[%s3 + $0x240] sm:$0xff]
    %v233 = vld [vmem:[%s3 + $0x248] sm:$0xff]
    %v234 = vld [vmem:[%s3 + $0x250] sm:$0xff]
    %v235 = vld [vmem:[%s3 + $0x258] sm:$0xff]
    %v236 = vld [vmem:[%s3 + $0x260] sm:$0xff]
    %v237 = vld [vmem:[%s3 + $0x268] sm:$0xff]
    %v238 = vld [vmem:[%s3 + $0x270] sm:$0xff]
    %v239 = vld [vmem:[%s3 + $0x278] sm:$0xff]
    %v240 = vld [vmem:[%s3 + $0x280] sm:$0xff]
    %v241 = vld [vmem:[%s3 + $0x288] sm:$0xff]
    %v242 = vld [vmem:[%s3 + $0x290] sm:$0xff]
    %v243 = vld [vmem:[%s3 + $0x298] sm:$0xff]
    %v244 = vld [vmem:[%s3 + $0x2a0] sm:$0xff]
    %v245 = vld [vmem:[%s3 + $0x2a8] sm:$0xff]
    %v246 = vld [vmem:[%s3 + $0x2b0] sm:$0xff]
    %v247 = vld [vmem:[%s3 + $0x2b8] sm:$0xff]
    %v248 = vld [vmem:[%s3 + $0x2c0] sm:$0xff]
    %v249 = vld [vmem:[%s3 + $0x2c8] sm:$0xff]
    %v250 = vld [vmem:[%s3 + $0x2d0] sm:$0xff]
    %v251 = vld [vmem:[%s3 + $0x2d8] sm:$0xff]
    %v252 = vld [vmem:[%s3 + $0x2e0] sm:$0xff]
    %v253 = vld [vmem:[%s3 + $0x2e8] sm:$0xff]
    %v254 = vld [vmem:[%s3 + $0x2f0] sm:$0xff]
    %v255 = vld [vmem:[%s3 + $0x2f8] sm:$0xff]
    %v256 = vld [vmem:[%s3 + $0x300] sm:$0xff]
    %v257 = vld [vmem:[%s3 + $0x308] sm:$0xff]
    %v258 = vld [vmem:[%s3 + $0x310] sm:$0xff]
    %v259 = vld [vmem:[%s3 + $0x318] sm:$0xff]
    %v260 = vld [vmem:[%s3 + $0x320] sm:$0xff]
    %v261 = vld [vmem:[%s3 + $0x328] sm:$0xff]
    %v262 = vld [vmem:[%s3 + $0x330] sm:$0xff]
    %v263 = vld [vmem:[%s3 + $0x338] sm:$0xff]
    %v264 = vld [vmem:[%s3 + $0x340] sm:$0xff]
    %v265 = vld [vmem:[%s3 + $0x348] sm:$0xff]
    %v266 = vld [vmem:[%s3 + $0x350] sm:$0xff]
    %v267 = vld [vmem:[%s3 + $0x358] sm:$0xff]
    %v268 = vld [vmem:[%s3 + $0x360] sm:$0xff]
    %v269 = vld [vmem:[%s3 + $0x368] sm:$0xff]
    %v270 = vld [vmem:[%s3 + $0x370] sm:$0xff]
    %v271 = vld [vmem:[%s3 + $0x378] sm:$0xff]
    %v272 = vld [vmem:[%s3 + $0x380] sm:$0xff]
    %v273 = vld [vmem:[%s3 + $0x388] sm:$0xff]
    %v274 = vld [vmem:[%s3 + $0x390] sm:$0xff]
    %v275 = vld [vmem:[%s3 + $0x398] sm:$0xff]
    %v276 = vld [vmem:[%s3 + $0x3a0] sm:$0xff]
    %v277 = vld [vmem:[%s3 + $0x3a8] sm:$0xff]
    %v278 = vld [vmem:[%s3 + $0x3b0] sm:$0xff]
    %v279 = vld [vmem:[%s3 + $0x3b8] sm:$0xff]
    %v280 = vld [vmem:[%s3 + $0x3c0] sm:$0xff]
    %v281 = vld [vmem:[%s3 + $0x3c8] sm:$0xff]
    %v282 = vld [vmem:[%s3 + $0x3d0] sm:$0xff]
    %v283 = vld [vmem:[%s3 + $0x3d8] sm:$0xff]
    %v284 = vld [vmem:[%s3 + $0x3e0] sm:$0xff]
    %v285 = vld [vmem:[%s3 + $0x3e8] sm:$0xff]
    %v286 = vld [vmem:[%s3 + $0x3f0] sm:$0xff]
    %v287 = vld [vmem:[%s3 + $0x3f8] sm:$0xff]
    %v288 = vld [vmem:[%s3 + $0x400] sm:$0xff]
    %v289 = vld [vmem:[%s3 + $0x408] sm:$0xff]
    %v290 = vld [vmem:[%s3 + $0x410] sm:$0xff]
    %v291 = vld [vmem:[%s3 + $0x418] sm:$0xff]
    %v292 = vld [vmem:[%s3 + $0x420] sm:$0xff]
    %v293 = vld [vmem:[%s3 + $0x428] sm:$0xff]
    %v294 = vld [vmem:[%s3 + $0x430] sm:$0xff]
    %v295 = vld [vmem:[%s3 + $0x438] sm:$0xff]
    %v296 = vld [vmem:[%s3 + $0x440] sm:$0xff]
    %v297 = vld [vmem:[%s3 + $0x448] sm:$0xff]
    %v298 = vld [vmem:[%s3 + $0x450] sm:$0xff]
    %v299 = vld [vmem:[%s3 + $0x458] sm:$0xff]
    %v300 = vld [vmem:[%s3 + $0x460] sm:$0xff]
    %v301 = vld [vmem:[%s3 + $0x468] sm:$0xff]
    %v302 = vld [vmem:[%s3 + $0x470] sm:$0xff]
    %v303 = vld [vmem:[%s3 + $0x478] sm:$0xff]
    %v304 = vld [vmem:[%s4] sm:$0x7]
    %v305 = vld [vmem:[#allocation3] sm:$0xff]
    %v306 = vld [vmem:[#allocation3 + $0x8] sm:$0xff]
    %v307 = vld [vmem:[#allocation3 + $0x10] sm:$0xff]
    %v308 = vld [vmem:[#allocation3 + $0x18] sm:$0xff]
    %v309 = vld [vmem:[#allocation3 + $0x20] sm:$0xff]
    %v310 = vld [vmem:[#allocation3 + $0x28] sm:$0xff]
    %v311 = vld [vmem:[#allocation3 + $0x30] sm:$0xff]
    %v312 = vld [vmem:[#allocation3 + $0x38] sm:$0xff]
    %v313 = vld [vmem:[#allocation3 + $0x40] sm:$0xff]
    %v314 = vld [vmem:[#allocation3 + $0x48] sm:$0xff]
    %v315 = vld [vmem:[#allocation3 + $0x50] sm:$0xff]
    %v316 = vld [vmem:[#allocation3 + $0x58] sm:$0xff]
    %v317 = vld [vmem:[#allocation3 + $0x60] sm:$0xff]
    %v318 = vld [vmem:[#allocation3 + $0x68] sm:$0xff]
    %v319 = vld [vmem:[#allocation3 + $0x70] sm:$0xff]
    %v320 = vld [vmem:[#allocation3 + $0x78] sm:$0xff]
    %v321 = vld [vmem:[#allocation3 + $0x80] sm:$0xff]
    %v322 = vld [vmem:[#allocation3 + $0x88] sm:$0xff]
    %v323 = vld [vmem:[#allocation3 + $0x90] sm:$0xff]
    %v324 = vld [vmem:[#allocation3 + $0x98] sm:$0xff]
    %v325 = vld [vmem:[#allocation3 + $0xa0] sm:$0xff]
    %v326 = vld [vmem:[#allocation3 + $0xa8] sm:$0xff]
    %v327 = vld [vmem:[#allocation3 + $0xb0] sm:$0xff]
    %v328 = vld [vmem:[#allocation3 + $0xb8] sm:$0xff]
    %v329 = vld [vmem:[#allocation3 + $0xc0] sm:$0xff]
    %v330 = vld [vmem:[#allocation3 + $0xc8] sm:$0xff]
    %v331 = vld [vmem:[#allocation3 + $0xd0] sm:$0xff]
    %v332 = vld [vmem:[#allocation3 + $0xd8] sm:$0xff]
    %v333 = vld [vmem:[#allocation3 + $0xe0] sm:$0xff]
    %v334 = vld [vmem:[#allocation3 + $0xe8] sm:$0xff]
    %v335 = vld [vmem:[#allocation3 + $0xf0] sm:$0xff]
    %v336 = vld [vmem:[#allocation3 + $0xf8] sm:$0xff]
    %v337 = vld [vmem:[#allocation3 + $0x100] sm:$0xff]
    %v338 = vld [vmem:[#allocation3 + $0x108] sm:$0xff]
    %v339 = vld [vmem:[#allocation3 + $0x110] sm:$0xff]
    %v340 = vld [vmem:[#allocation3 + $0x118] sm:$0xff]
    %v341 = vld [vmem:[#allocation3 + $0x120] sm:$0xff]
    %v342 = vld [vmem:[#allocation3 + $0x128] sm:$0xff]
    %v343 = vld [vmem:[#allocation3 + $0x130] sm:$0xff]
    %v344 = vld [vmem:[#allocation3 + $0x138] sm:$0xff]
    %v345 = vld [vmem:[#allocation3 + $0x140] sm:$0xff]
    %v346 = vld [vmem:[#allocation3 + $0x148] sm:$0xff]
    %v347 = vld [vmem:[#allocation3 + $0x150] sm:$0xff]
    %v348 = vld [vmem:[#allocation3 + $0x158] sm:$0xff]
    %v349 = vld [vmem:[#allocation3 + $0x160] sm:$0xff]
    %v350 = vld [vmem:[#allocation3 + $0x168] sm:$0xff]
    %v351 = vld [vmem:[#allocation3 + $0x170] sm:$0xff]
    %v352 = vld [vmem:[#allocation3 + $0x178] sm:$0xff]
    %v353 = vld [vmem:[#allocation3 + $0x180] sm:$0xff]
    %v354 = vld [vmem:[#allocation3 + $0x188] sm:$0xff]
    %v355 = vld [vmem:[#allocation3 + $0x190] sm:$0xff]
    %v356 = vld [vmem:[#allocation3 + $0x198] sm:$0xff]
    %v357 = vld [vmem:[#allocation3 + $0x1a0] sm:$0xff]
    %v358 = vld [vmem:[#allocation3 + $0x1a8] sm:$0xff]
    %v359 = vld [vmem:[#allocation3 + $0x1b0] sm:$0xff]
    %v360 = vld [vmem:[#allocation3 + $0x1b8] sm:$0xff]
    %v361 = vld [vmem:[#allocation3 + $0x1c0] sm:$0xff]
    %v362 = vld [vmem:[#allocation3 + $0x1c8] sm:$0xff]
    %v363 = vld [vmem:[#allocation3 + $0x1d0] sm:$0xff]
    %v364 = vld [vmem:[#allocation3 + $0x1d8] sm:$0xff]
    %v365 = vld [vmem:[#allocation3 + $0x1e0] sm:$0xff]
    %v366 = vld [vmem:[#allocation3 + $0x1e8] sm:$0xff]
    %v367 = vld [vmem:[#allocation3 + $0x1f0] sm:$0xff]
    %v368 = vld [vmem:[#allocation3 + $0x1f8] sm:$0xff]
    %v369 = vld [vmem:[#allocation3 + $0x200] sm:$0xff]
    %v370 = vld [vmem:[#allocation3 + $0x208] sm:$0xff]
    %v371 = vld [vmem:[#allocation3 + $0x210] sm:$0xff]
    %v372 = vld [vmem:[#allocation3 + $0x218] sm:$0xff]
    %v373 = vld [vmem:[#allocation3 + $0x220] sm:$0xff]
    %v374 = vld [vmem:[#allocation3 + $0x228] sm:$0xff]
    %v375 = vld [vmem:[#allocation3 + $0x230] sm:$0xff]
    %v376 = vld [vmem:[#allocation3 + $0x238] sm:$0xff]
    %v377 = vld [vmem:[#allocation3 + $0x240] sm:$0xff]
    %v378 = vld [vmem:[#allocation3 + $0x248] sm:$0xff]
    %v379 = vld [vmem:[#allocation3 + $0x250] sm:$0xff]
    %v380 = vld [vmem:[#allocation3 + $0x258] sm:$0xff]
    %v381 = vld [vmem:[#allocation3 + $0x260] sm:$0xff]
    %v382 = vld [vmem:[#allocation3 + $0x268] sm:$0xff]
    %v383 = vld [vmem:[#allocation3 + $0x270] sm:$0xff]
    %v384 = vld [vmem:[#allocation3 + $0x278] sm:$0xff]
    %v385 = vld [vmem:[#allocation3 + $0x280] sm:$0xff]
    %v386 = vld [vmem:[#allocation3 + $0x288] sm:$0xff]
    %v387 = vld [vmem:[#allocation3 + $0x290] sm:$0xff]
    %v388 = vld [vmem:[#allocation3 + $0x298] sm:$0xff]
    %v389 = vld [vmem:[#allocation3 + $0x2a0] sm:$0xff]
    %v390 = vld [vmem:[#allocation3 + $0x2a8] sm:$0xff]
    %v391 = vld [vmem:[#allocation3 + $0x2b0] sm:$0xff]
    %v392 = vld [vmem:[#allocation3 + $0x2b8] sm:$0xff]
    %v393 = vld [vmem:[#allocation3 + $0x2c0] sm:$0xff]
    %v394 = vld [vmem:[#allocation3 + $0x2c8] sm:$0xff]
    %v395 = vld [vmem:[#allocation3 + $0x2d0] sm:$0xff]
    %v396 = vld [vmem:[#allocation3 + $0x2d8] sm:$0xff]
    %v397 = vld [vmem:[#allocation3 + $0x2e0] sm:$0xff]
    %v398 = vld [vmem:[#allocation3 + $0x2e8] sm:$0xff]
    %v399 = vld [vmem:[#allocation3 + $0x2f0] sm:$0xff]
    %v400 = vld [vmem:[#allocation3 + $0x2f8] sm:$0xff]
    %v401 = vld [vmem:[%s6] sm:$0x3]
    %v402 = vld [vmem:[#allocation2] sm:$0xf]
    %v405 = vunpack.c.l.s4 1983009808
    %v406 = vunpack.c.0.s8 %v405
    %v407 = vlaneseq
    %v408 = vshrl.u32 %v407, 7
    %v409 = vsub.s32 %v406, %v408
    %v410 = vrot.slane %v402, %v409
    %v411 = vcombine.high %v410, %v410
    loop: start=0, step=1, limit=8
    $region38: #{model_map_predict.3} parent=1 // loop_pre_header
      _
    $region39: #{model_map_predict.3} parent=1 // loop_header
      %s415 = sphi 0, %s419
      %p416 = scmp.ge.s32.totalorder %s415, 8
      %v420 = vphi %v410, %v1059
      %v421 = vphi %v411, %v1061
    $region40: #{model_map_predict.3} parent=1 // loop_header_branch
      %418 = sbr.rel (%p416) target = $region44
    $region41: #{model_map_predict.3} parent=1 // loop_body
      %s422 = smul.u32 %s415, 3
      %s423 = smul.addr %s422, 2
      %s424 = scalar_lea.vmem %s0, %s423
      %v425 = vld [vmem:[%s424] sm:$0x3f]
      %426 = vmatprep.subr.mxu0 %v110
      %427 = vmatpush1.msra.mxu0 %v109
      %428 = vmatprep.subr.mxu0 %v107
      %429 = vmatpush1.msra.mxu0 %v106
      %430 = vmatprep.subr.mxu0 %v104
      %431 = vmatpush1.msra.mxu0 %v103
      %432 = vmatprep.subr.mxu0 %v101
      %433 = vmatpush1.msra.mxu0 %v100
      %434 = vmatprep.subr.mxu0 %v98
      %435 = vmatpush1.msra.mxu0 %v97
      %436 = vmatprep.subr.mxu0 %v95
      %437 = vmatpush1.msra.mxu0 %v94
      %438 = vmatprep.subr.mxu0 %v92
      %439 = vmatpush1.msra.mxu0 %v91
      %440 = vmatprep.subr.mxu0 %v89
      %441 = vmatpush1.msra.mxu0 %v88
      %442 = vmatprep.subr.mxu0 %v86
      %443 = vmatpush1.msra.mxu0 %v85
      %444 = vmatprep.subr.mxu0 %v83
      %445 = vmatpush1.msra.mxu0 %v82
      %446 = vmatprep.subr.mxu0 %v80
      %447 = vmatpush1.msra.mxu0 %v79
      %448 = vmatprep.subr.mxu0 %v77
      %449 = vmatpush1.msra.mxu0 %v76
      %450 = vmatprep.subr.mxu0 %v74
      %451 = vmatpush1.msra.mxu0 %v73
      %452 = vmatprep.subr.mxu0 %v71
      %453 = vmatpush1.msra.mxu0 %v70
      %454 = vmatprep.subr.mxu0 %v68
      %455 = vmatpush1.msra.mxu0 %v67
      %456 = vmatprep.subr.mxu0 %v65
      %457 = vmatpush1.msra.mxu0 %v64
      %458 = vmatprep.subr.mxu0 %v158
      %459 = vmatpush2.msra.mxu0 %v157
      %460 = vmatprep.subr.mxu0 %v155
      %461 = vmatpush2.msra.mxu0 %v154
      %462 = vmatprep.subr.mxu0 %v152
      %463 = vmatpush2.msra.mxu0 %v151
      %464 = vmatprep.subr.mxu0 %v149
      %465 = vmatpush2.msra.mxu0 %v148
      %466 = vmatprep.subr.mxu0 %v146
      %467 = vmatpush2.msra.mxu0 %v145
      %468 = vmatprep.subr.mxu0 %v143
      %469 = vmatpush2.msra.mxu0 %v142
      %470 = vmatprep.subr.mxu0 %v140
      %471 = vmatpush2.msra.mxu0 %v139
      %472 = vmatprep.subr.mxu0 %v137
      %473 = vmatpush2.msra.mxu0 %v136
      %474 = vmatprep.subr.mxu0 %v134
      %475 = vmatpush2.msra.mxu0 %v133
      %476 = vmatprep.subr.mxu0 %v131
      %477 = vmatpush2.msra.mxu0 %v130
      %478 = vmatprep.subr.mxu0 %v128
      %479 = vmatpush2.msra.mxu0 %v127
      %480 = vmatprep.subr.mxu0 %v125
      %481 = vmatpush2.msra.mxu0 %v124
      %482 = vmatprep.subr.mxu0 %v122
      %483 = vmatpush2.msra.mxu0 %v121
      %484 = vmatprep.subr.mxu0 %v119
      %485 = vmatpush2.msra.mxu0 %v118
      %486 = vmatprep.subr.mxu0 %v116
      %487 = vmatpush2.msra.mxu0 %v115
      %488 = vmatprep.subr.mxu0 %v113
      %489 = vmatpush2.msra.mxu0 %v112
      %490 = vmatprep.mubr.f32.mxu0 %v421
      %491 = vmatmul.mubr.f32.gmra.mxu0 %v420
      %v492 = vpop.f32.mrf.mxu0
      %v493 = vadd.f32 0.0, %v492
      %v494 = vpop.f32.mrf.mxu0
      %v495 = vadd.f32 0.0, %v494
      %496 = vdwg.mxu0
      %497 = vmatprep.subr.mxu0 0.0
      %498 = vmatpush1.msra.mxu0 %v111
      %499 = vmatprep.subr.mxu0 0.0
      %500 = vmatpush1.msra.mxu0 %v108
      %501 = vmatprep.subr.mxu0 0.0
      %502 = vmatpush1.msra.mxu0 %v105
      %503 = vmatprep.subr.mxu0 0.0
      %504 = vmatpush1.msra.mxu0 %v102
      %505 = vmatprep.subr.mxu0 0.0
      %506 = vmatpush1.msra.mxu0 %v99
      %507 = vmatprep.subr.mxu0 0.0
      %508 = vmatpush1.msra.mxu0 %v96
      %509 = vmatprep.subr.mxu0 0.0
      %510 = vmatpush1.msra.mxu0 %v93
      %511 = vmatprep.subr.mxu0 0.0
      %512 = vmatpush1.msra.mxu0 %v90
      %513 = vmatprep.subr.mxu0 0.0
      %514 = vmatpush1.msra.mxu0 %v87
      %515 = vmatprep.subr.mxu0 0.0
      %516 = vmatpush1.msra.mxu0 %v84
      %517 = vmatprep.subr.mxu0 0.0
      %518 = vmatpush1.msra.mxu0 %v81
      %519 = vmatprep.subr.mxu0 0.0
      %520 = vmatpush1.msra.mxu0 %v78
      %521 = vmatprep.subr.mxu0 0.0
      %522 = vmatpush1.msra.mxu0 %v75
      %523 = vmatprep.subr.mxu0 0.0
      %524 = vmatpush1.msra.mxu0 %v72
      %525 = vmatprep.subr.mxu0 0.0
      %526 = vmatpush1.msra.mxu0 %v69
      %527 = vmatprep.subr.mxu0 0.0
      %528 = vmatpush1.msra.mxu0 %v66
      %529 = vmatprep.subr.mxu0 0.0
      %530 = vmatpush2.msra.mxu0 %v159
      %531 = vmatprep.subr.mxu0 0.0
      %532 = vmatpush2.msra.mxu0 %v156
      %533 = vmatprep.subr.mxu0 0.0
      %534 = vmatpush2.msra.mxu0 %v153
      %535 = vmatprep.subr.mxu0 0.0
      %536 = vmatpush2.msra.mxu0 %v150
      %537 = vmatprep.subr.mxu0 0.0
      %538 = vmatpush2.msra.mxu0 %v147
      %539 = vmatprep.subr.mxu0 0.0
      %540 = vmatpush2.msra.mxu0 %v144
      %541 = vmatprep.subr.mxu0 0.0
      %542 = vmatpush2.msra.mxu0 %v141
      %543 = vmatprep.subr.mxu0 0.0
      %544 = vmatpush2.msra.mxu0 %v138
      %545 = vmatprep.subr.mxu0 0.0
      %546 = vmatpush2.msra.mxu0 %v135
      %547 = vmatprep.subr.mxu0 0.0
      %548 = vmatpush2.msra.mxu0 %v132
      %549 = vmatprep.subr.mxu0 0.0
      %550 = vmatpush2.msra.mxu0 %v129
      %551 = vmatprep.subr.mxu0 0.0
      %552 = vmatpush2.msra.mxu0 %v126
      %553 = vmatprep.subr.mxu0 0.0
      %554 = vmatpush2.msra.mxu0 %v123
      %555 = vmatprep.subr.mxu0 0.0
      %556 = vmatpush2.msra.mxu0 %v120
      %557 = vmatprep.subr.mxu0 0.0
      %558 = vmatpush2.msra.mxu0 %v117
      %559 = vmatprep.subr.mxu0 0.0
      %560 = vmatpush2.msra.mxu0 %v114
      %561 = vmatprep.mubr.f32.mxu0 %v421
      %562 = vmatmul.mubr.f32.gmra.mxu0 %v420
      %v563 = vpop.f32.mrf.mxu0
      %v564 = vadd.f32 0.0, %v563
      %v565 = vpop.f32.mrf.mxu0
      %566 = vdwg.mxu0
      %v570 = vcombine.low %v493, %v495
      %v572 = vunpack.c.l.s4 1983009808
      %v573 = vunpack.c.0.s8 %v572
      %v574 = vlaneseq
      %v575 = vshrl.u32 %v574, 7
      %v576 = vsub.s32 %v573, %v575
      %v577 = vrot.slane %v570, %v576
      %v579 = vunpack.c.l.s4 1983009808
      %v580 = vunpack.c.0.s8 %v579
      %v581 = vlaneseq
      %v582 = vshrl.u32 %v581, 7
      %v583 = vsub.s32 %v580, %v582
      %v584 = vrot.slane %v564, %v583
      %v585 = vcombine.low %v577, %v584
      %v587 = vadd.f32 %v425, %v585
      %v588 = vmax.f32 %v587, 0.0
      %v590 = vlaneseq
      %v591 = vshrl.u32 %v590, 7
      %v592 = vsub.s32 0, %v591
      %v593 = vrot.slane %v304, %v592
      %v594 = vlaneseq
      %v595 = vshrl.u32 %v594, 7
      %v596 = vsub.s32 1, %v595
      %v597 = vrot.slane %v304, %v596
      %v598 = vlaneseq
      %v599 = vshrl.u32 %v598, 7
      %v600 = vsub.s32 2, %v599
      %v601 = vrot.slane %v304, %v600
      %v606 = vcombine.high %v588, %v588
      %v608 = vunpack.c.l.s4 1983009808
      %v609 = vunpack.c.0.s8 %v608
      %v610 = vlaneseq
      %v611 = vshrl.u32 %v610, 7
      %v612 = vsub.s32 %v609, %v611
      %v613 = vrot.slane %v588, %v612
      %v615 = vunpack.c.l.s4 1983009808
      %v616 = vunpack.c.0.s8 %v615
      %v617 = vlaneseq
      %v618 = vshrl.u32 %v617, 7
      %v619 = vsub.s32 %v616, %v618
      %v620 = vrot.slane %v606, %v619
      %v621 = vcombine.high %v613, %v613
      %625 = vmatprep.subr.mxu0 %v206
      %626 = vmatpush1.msra.mxu0 %v205
      %627 = vmatprep.subr.mxu0 %v203
      %628 = vmatpush1.msra.mxu0 %v202
      %629 = vmatprep.subr.mxu0 %v200
      %630 = vmatpush1.msra.mxu0 %v199
      %631 = vmatprep.subr.mxu0 %v197
      %632 = vmatpush1.msra.mxu0 %v196
      %633 = vmatprep.subr.mxu0 %v194
      %634 = vmatpush1.msra.mxu0 %v193
      %635 = vmatprep.subr.mxu0 %v191
      %636 = vmatpush1.msra.mxu0 %v190
      %637 = vmatprep.subr.mxu0 %v188
      %638 = vmatpush1.msra.mxu0 %v187
      %639 = vmatprep.subr.mxu0 %v185
      %640 = vmatpush1.msra.mxu0 %v184
      %641 = vmatprep.subr.mxu0 %v182
      %642 = vmatpush1.msra.mxu0 %v181
      %643 = vmatprep.subr.mxu0 %v179
      %644 = vmatpush1.msra.mxu0 %v178
      %645 = vmatprep.subr.mxu0 %v176
      %646 = vmatpush1.msra.mxu0 %v175
      %647 = vmatprep.subr.mxu0 %v173
      %648 = vmatpush1.msra.mxu0 %v172
      %649 = vmatprep.subr.mxu0 %v170
      %650 = vmatpush1.msra.mxu0 %v169
      %651 = vmatprep.subr.mxu0 %v167
      %652 = vmatpush1.msra.mxu0 %v166
      %653 = vmatprep.subr.mxu0 %v164
      %654 = vmatpush1.msra.mxu0 %v163
      %655 = vmatprep.subr.mxu0 %v161
      %656 = vmatpush1.msra.mxu0 %v160
      %657 = vmatprep.subr.mxu0 %v254
      %658 = vmatpush2.msra.mxu0 %v253
      %659 = vmatprep.subr.mxu0 %v251
      %660 = vmatpush2.msra.mxu0 %v250
      %661 = vmatprep.subr.mxu0 %v248
      %662 = vmatpush2.msra.mxu0 %v247
      %663 = vmatprep.subr.mxu0 %v245
      %664 = vmatpush2.msra.mxu0 %v244
      %665 = vmatprep.subr.mxu0 %v242
      %666 = vmatpush2.msra.mxu0 %v241
      %667 = vmatprep.subr.mxu0 %v239
      %668 = vmatpush2.msra.mxu0 %v238
      %669 = vmatprep.subr.mxu0 %v236
      %670 = vmatpush2.msra.mxu0 %v235
      %671 = vmatprep.subr.mxu0 %v233
      %672 = vmatpush2.msra.mxu0 %v232
      %673 = vmatprep.subr.mxu0 %v230
      %674 = vmatpush2.msra.mxu0 %v229
      %675 = vmatprep.subr.mxu0 %v227
      %676 = vmatpush2.msra.mxu0 %v226
      %677 = vmatprep.subr.mxu0 %v224
      %678 = vmatpush2.msra.mxu0 %v223
      %679 = vmatprep.subr.mxu0 %v221
      %680 = vmatpush2.msra.mxu0 %v220
      %681 = vmatprep.subr.mxu0 %v218
      %682 = vmatpush2.msra.mxu0 %v217
      %683 = vmatprep.subr.mxu0 %v215
      %684 = vmatpush2.msra.mxu0 %v214
      %685 = vmatprep.subr.mxu0 %v212
      %686 = vmatpush2.msra.mxu0 %v211
      %687 = vmatprep.subr.mxu0 %v209
      %688 = vmatpush2.msra.mxu0 %v208
      %689 = vmatprep.mubr.f32.mxu0 %v621
      %690 = vmatmul.mubr.f32.gmra.mxu0 %v613
      %v691 = vpop.f32.mrf.mxu0
      %v692 = vadd.f32 %v593, %v691
      %v693 = vpop.f32.mrf.mxu0
      %v694 = vadd.f32 %v597, %v693
      %695 = vdwg.mxu0
      %696 = vmatprep.subr.mxu0 %v302
      %697 = vmatpush1.msra.mxu0 %v301
      %698 = vmatprep.subr.mxu0 %v299
      %699 = vmatpush1.msra.mxu0 %v298
      %700 = vmatprep.subr.mxu0 %v296
      %701 = vmatpush1.msra.mxu0 %v295
      %702 = vmatprep.subr.mxu0 %v293
      %703 = vmatpush1.msra.mxu0 %v292
      %704 = vmatprep.subr.mxu0 %v290
      %705 = vmatpush1.msra.mxu0 %v289
      %706 = vmatprep.subr.mxu0 %v287
      %707 = vmatpush1.msra.mxu0 %v286
      %708 = vmatprep.subr.mxu0 %v284
      %709 = vmatpush1.msra.mxu0 %v283
      %710 = vmatprep.subr.mxu0 %v281
      %711 = vmatpush1.msra.mxu0 %v280
      %712 = vmatprep.subr.mxu0 %v278
      %713 = vmatpush1.msra.mxu0 %v277
      %714 = vmatprep.subr.mxu0 %v275
      %715 = vmatpush1.msra.mxu0 %v274
      %716 = vmatprep.subr.mxu0 %v272
      %717 = vmatpush1.msra.mxu0 %v271
      %718 = vmatprep.subr.mxu0 %v269
      %719 = vmatpush1.msra.mxu0 %v268
      %720 = vmatprep.subr.mxu0 %v266
      %721 = vmatpush1.msra.mxu0 %v265
      %722 = vmatprep.subr.mxu0 %v263
      %723 = vmatpush1.msra.mxu0 %v262
      %724 = vmatprep.subr.mxu0 %v260
      %725 = vmatpush1.msra.mxu0 %v259
      %726 = vmatprep.subr.mxu0 %v257
      %727 = vmatpush1.msra.mxu0 %v256
      %728 = vmatprep.subr.mxu0 0.0
      %729 = vmatpush2.msra.mxu0 0.0
      %730 = vmatprep.subr.mxu0 0.0
      %731 = vmatpush2.msra.mxu0 0.0
      %732 = vmatprep.subr.mxu0 0.0
      %733 = vmatpush2.msra.mxu0 0.0
      %734 = vmatprep.subr.mxu0 0.0
      %735 = vmatpush2.msra.mxu0 0.0
      %736 = vmatprep.subr.mxu0 0.0
      %737 = vmatpush2.msra.mxu0 0.0
      %738 = vmatprep.subr.mxu0 0.0
      %739 = vmatpush2.msra.mxu0 0.0
      %740 = vmatprep.subr.mxu0 0.0
      %741 = vmatpush2.msra.mxu0 0.0
      %742 = vmatprep.subr.mxu0 0.0
      %743 = vmatpush2.msra.mxu0 0.0
      %744 = vmatprep.subr.mxu0 0.0
      %745 = vmatpush2.msra.mxu0 0.0
      %746 = vmatprep.subr.mxu0 0.0
      %747 = vmatpush2.msra.mxu0 0.0
      %748 = vmatprep.subr.mxu0 0.0
      %749 = vmatpush2.msra.mxu0 0.0
      %750 = vmatprep.subr.mxu0 0.0
      %751 = vmatpush2.msra.mxu0 0.0
      %752 = vmatprep.subr.mxu0 0.0
      %753 = vmatpush2.msra.mxu0 0.0
      %754 = vmatprep.subr.mxu0 0.0
      %755 = vmatpush2.msra.mxu0 0.0
      %756 = vmatprep.subr.mxu0 0.0
      %757 = vmatpush2.msra.mxu0 0.0
      %758 = vmatprep.subr.mxu0 0.0
      %759 = vmatpush2.msra.mxu0 0.0
      %760 = vmatprep.mubr.f32.mxu0 0.0
      %761 = vmatmul.mubr.f32.gmra.mxu0 %v620
      %v762 = vpop.f32.mrf.mxu0
      %v763 = vadd.f32 %v692, %v762
      %v764 = vpop.f32.mrf.mxu0
      %v765 = vadd.f32 %v694, %v764
      %766 = vdwg.mxu0
      %767 = vmatprep.subr.mxu0 0.0
      %768 = vmatpush1.msra.mxu0 %v207
      %769 = vmatprep.subr.mxu0 0.0
      %770 = vmatpush1.msra.mxu0 %v204
      %771 = vmatprep.subr.mxu0 0.0
      %772 = vmatpush1.msra.mxu0 %v201
      %773 = vmatprep.subr.mxu0 0.0
      %774 = vmatpush1.msra.mxu0 %v198
      %775 = vmatprep.subr.mxu0 0.0
      %776 = vmatpush1.msra.mxu0 %v195
      %777 = vmatprep.subr.mxu0 0.0
      %778 = vmatpush1.msra.mxu0 %v192
      %779 = vmatprep.subr.mxu0 0.0
      %780 = vmatpush1.msra.mxu0 %v189
      %781 = vmatprep.subr.mxu0 0.0
      %782 = vmatpush1.msra.mxu0 %v186
      %783 = vmatprep.subr.mxu0 0.0
      %784 = vmatpush1.msra.mxu0 %v183
      %785 = vmatprep.subr.mxu0 0.0
      %786 = vmatpush1.msra.mxu0 %v180
      %787 = vmatprep.subr.mxu0 0.0
      %788 = vmatpush1.msra.mxu0 %v177
      %789 = vmatprep.subr.mxu0 0.0
      %790 = vmatpush1.msra.mxu0 %v174
      %791 = vmatprep.subr.mxu0 0.0
      %792 = vmatpush1.msra.mxu0 %v171
      %793 = vmatprep.subr.mxu0 0.0
      %794 = vmatpush1.msra.mxu0 %v168
      %795 = vmatprep.subr.mxu0 0.0
      %796 = vmatpush1.msra.mxu0 %v165
      %797 = vmatprep.subr.mxu0 0.0
      %798 = vmatpush1.msra.mxu0 %v162
      %799 = vmatprep.subr.mxu0 0.0
      %800 = vmatpush2.msra.mxu0 %v255
      %801 = vmatprep.subr.mxu0 0.0
      %802 = vmatpush2.msra.mxu0 %v252
      %803 = vmatprep.subr.mxu0 0.0
      %804 = vmatpush2.msra.mxu0 %v249
      %805 = vmatprep.subr.mxu0 0.0
      %806 = vmatpush2.msra.mxu0 %v246
      %807 = vmatprep.subr.mxu0 0.0
      %808 = vmatpush2.msra.mxu0 %v243
      %809 = vmatprep.subr.mxu0 0.0
      %810 = vmatpush2.msra.mxu0 %v240
      %811 = vmatprep.subr.mxu0 0.0
      %812 = vmatpush2.msra.mxu0 %v237
      %813 = vmatprep.subr.mxu0 0.0
      %814 = vmatpush2.msra.mxu0 %v234
      %815 = vmatprep.subr.mxu0 0.0
      %816 = vmatpush2.msra.mxu0 %v231
      %817 = vmatprep.subr.mxu0 0.0
      %818 = vmatpush2.msra.mxu0 %v228
      %819 = vmatprep.subr.mxu0 0.0
      %820 = vmatpush2.msra.mxu0 %v225
      %821 = vmatprep.subr.mxu0 0.0
      %822 = vmatpush2.msra.mxu0 %v222
      %823 = vmatprep.subr.mxu0 0.0
      %824 = vmatpush2.msra.mxu0 %v219
      %825 = vmatprep.subr.mxu0 0.0
      %826 = vmatpush2.msra.mxu0 %v216
      %827 = vmatprep.subr.mxu0 0.0
      %828 = vmatpush2.msra.mxu0 %v213
      %829 = vmatprep.subr.mxu0 0.0
      %830 = vmatpush2.msra.mxu0 %v210
      %831 = vmatprep.mubr.f32.mxu0 %v621
      %832 = vmatmul.mubr.f32.gmra.mxu0 %v613
      %v833 = vpop.f32.mrf.mxu0
      %v834 = vadd.f32 %v601, %v833
      %v835 = vpop.f32.mrf.mxu0
      %836 = vdwg.mxu0
      %837 = vmatprep.subr.mxu0 0.0
      %838 = vmatpush1.msra.mxu0 %v303
      %839 = vmatprep.subr.mxu0 0.0
      %840 = vmatpush1.msra.mxu0 %v300
      %841 = vmatprep.subr.mxu0 0.0
      %842 = vmatpush1.msra.mxu0 %v297
      %843 = vmatprep.subr.mxu0 0.0
      %844 = vmatpush1.msra.mxu0 %v294
      %845 = vmatprep.subr.mxu0 0.0
      %846 = vmatpush1.msra.mxu0 %v291
      %847 = vmatprep.subr.mxu0 0.0
      %848 = vmatpush1.msra.mxu0 %v288
      %849 = vmatprep.subr.mxu0 0.0
      %850 = vmatpush1.msra.mxu0 %v285
      %851 = vmatprep.subr.mxu0 0.0
      %852 = vmatpush1.msra.mxu0 %v282
      %853 = vmatprep.subr.mxu0 0.0
      %854 = vmatpush1.msra.mxu0 %v279
      %855 = vmatprep.subr.mxu0 0.0
      %856 = vmatpush1.msra.mxu0 %v276
      %857 = vmatprep.subr.mxu0 0.0
      %858 = vmatpush1.msra.mxu0 %v273
      %859 = vmatprep.subr.mxu0 0.0
      %860 = vmatpush1.msra.mxu0 %v270
      %861 = vmatprep.subr.mxu0 0.0
      %862 = vmatpush1.msra.mxu0 %v267
      %863 = vmatprep.subr.mxu0 0.0
      %864 = vmatpush1.msra.mxu0 %v264
      %865 = vmatprep.subr.mxu0 0.0
      %866 = vmatpush1.msra.mxu0 %v261
      %867 = vmatprep.subr.mxu0 0.0
      %868 = vmatpush1.msra.mxu0 %v258
      %869 = vmatprep.subr.mxu0 0.0
      %870 = vmatpush2.msra.mxu0 0.0
      %871 = vmatprep.subr.mxu0 0.0
      %872 = vmatpush2.msra.mxu0 0.0
      %873 = vmatprep.subr.mxu0 0.0
      %874 = vmatpush2.msra.mxu0 0.0
      %875 = vmatprep.subr.mxu0 0.0
      %876 = vmatpush2.msra.mxu0 0.0
      %877 = vmatprep.subr.mxu0 0.0
      %878 = vmatpush2.msra.mxu0 0.0
      %879 = vmatprep.subr.mxu0 0.0
      %880 = vmatpush2.msra.mxu0 0.0
      %881 = vmatprep.subr.mxu0 0.0
      %882 = vmatpush2.msra.mxu0 0.0
      %883 = vmatprep.subr.mxu0 0.0
      %884 = vmatpush2.msra.mxu0 0.0
      %885 = vmatprep.subr.mxu0 0.0
      %886 = vmatpush2.msra.mxu0 0.0
      %887 = vmatprep.subr.mxu0 0.0
      %888 = vmatpush2.msra.mxu0 0.0
      %889 = vmatprep.subr.mxu0 0.0
      %890 = vmatpush2.msra.mxu0 0.0
      %891 = vmatprep.subr.mxu0 0.0
      %892 = vmatpush2.msra.mxu0 0.0
      %893 = vmatprep.subr.mxu0 0.0
      %894 = vmatpush2.msra.mxu0 0.0
      %895 = vmatprep.subr.mxu0 0.0
      %896 = vmatpush2.msra.mxu0 0.0
      %897 = vmatprep.subr.mxu0 0.0
      %898 = vmatpush2.msra.mxu0 0.0
      %899 = vmatprep.subr.mxu0 0.0
      %900 = vmatpush2.msra.mxu0 0.0
      %901 = vmatprep.mubr.f32.mxu0 0.0
      %902 = vmatmul.mubr.f32.gmra.mxu0 %v620
      %v903 = vpop.f32.mrf.mxu0
      %v904 = vadd.f32 %v834, %v903
      %v905 = vpop.f32.mrf.mxu0
      %906 = vdwg.mxu0
      %v907 = vmax.f32 %v763, 0.0
      %v908 = vmax.f32 %v765, 0.0
      %v909 = vmax.f32 %v904, 0.0
      %v911 = vlaneseq
      %v912 = vshrl.u32 %v911, 7
      %v913 = vsub.s32 0, %v912
      %v914 = vrot.slane %v401, %v913
      %v915 = vlaneseq
      %v916 = vshrl.u32 %v915, 7
      %v917 = vsub.s32 1, %v916
      %v918 = vrot.slane %v401, %v917
      %921 = vmatprep.subr.mxu0 %v336
      %922 = vmatpush1.msra.mxu0 %v335
      %923 = vmatprep.subr.mxu0 %v334
      %924 = vmatpush1.msra.mxu0 %v333
      %925 = vmatprep.subr.mxu0 %v332
      %926 = vmatpush1.msra.mxu0 %v331
      %927 = vmatprep.subr.mxu0 %v330
      %928 = vmatpush1.msra.mxu0 %v329
      %929 = vmatprep.subr.mxu0 %v328
      %930 = vmatpush1.msra.mxu0 %v327
      %931 = vmatprep.subr.mxu0 %v326
      %932 = vmatpush1.msra.mxu0 %v325
      %933 = vmatprep.subr.mxu0 %v324
      %934 = vmatpush1.msra.mxu0 %v323
      %935 = vmatprep.subr.mxu0 %v322
      %936 = vmatpush1.msra.mxu0 %v321
      %937 = vmatprep.subr.mxu0 %v320
      %938 = vmatpush1.msra.mxu0 %v319
      %939 = vmatprep.subr.mxu0 %v318
      %940 = vmatpush1.msra.mxu0 %v317
      %941 = vmatprep.subr.mxu0 %v316
      %942 = vmatpush1.msra.mxu0 %v315
      %943 = vmatprep.subr.mxu0 %v314
      %944 = vmatpush1.msra.mxu0 %v313
      %945 = vmatprep.subr.mxu0 %v312
      %946 = vmatpush1.msra.mxu0 %v311
      %947 = vmatprep.subr.mxu0 %v310
      %948 = vmatpush1.msra.mxu0 %v309
      %949 = vmatprep.subr.mxu0 %v308
      %950 = vmatpush1.msra.mxu0 %v307
      %951 = vmatprep.subr.mxu0 %v306
      %952 = vmatpush1.msra.mxu0 %v305
      %953 = vmatprep.subr.mxu0 %v368
      %954 = vmatpush2.msra.mxu0 %v367
      %955 = vmatprep.subr.mxu0 %v366
      %956 = vmatpush2.msra.mxu0 %v365
      %957 = vmatprep.subr.mxu0 %v364
      %958 = vmatpush2.msra.mxu0 %v363
      %959 = vmatprep.subr.mxu0 %v362
      %960 = vmatpush2.msra.mxu0 %v361
      %961 = vmatprep.subr.mxu0 %v360
      %962 = vmatpush2.msra.mxu0 %v359
      %963 = vmatprep.subr.mxu0 %v358
      %964 = vmatpush2.msra.mxu0 %v357
      %965 = vmatprep.subr.mxu0 %v356
      %966 = vmatpush2.msra.mxu0 %v355
      %967 = vmatprep.subr.mxu0 %v354
      %968 = vmatpush2.msra.mxu0 %v353
      %969 = vmatprep.subr.mxu0 %v352
      %970 = vmatpush2.msra.mxu0 %v351
      %971 = vmatprep.subr.mxu0 %v350
      %972 = vmatpush2.msra.mxu0 %v349
      %973 = vmatprep.subr.mxu0 %v348
      %974 = vmatpush2.msra.mxu0 %v347
      %975 = vmatprep.subr.mxu0 %v346
      %976 = vmatpush2.msra.mxu0 %v345
      %977 = vmatprep.subr.mxu0 %v344
      %978 = vmatpush2.msra.mxu0 %v343
      %979 = vmatprep.subr.mxu0 %v342
      %980 = vmatpush2.msra.mxu0 %v341
      %981 = vmatprep.subr.mxu0 %v340
      %982 = vmatpush2.msra.mxu0 %v339
      %983 = vmatprep.subr.mxu0 %v338
      %984 = vmatpush2.msra.mxu0 %v337
      %985 = vmatprep.mubr.f32.mxu0 %v908
      %986 = vmatmul.mubr.f32.gmra.mxu0 %v907
      %v987 = vpop.f32.mrf.mxu0
      %v988 = vadd.f32 %v914, %v987
      %v989 = vpop.f32.mrf.mxu0
      %v990 = vadd.f32 %v918, %v989
      %991 = vdwg.mxu0
      %992 = vmatprep.subr.mxu0 %v400
      %993 = vmatpush1.msra.mxu0 %v399
      %994 = vmatprep.subr.mxu0 %v398
      %995 = vmatpush1.msra.mxu0 %v397
      %996 = vmatprep.subr.mxu0 %v396
      %997 = vmatpush1.msra.mxu0 %v395
      %998 = vmatprep.subr.mxu0 %v394
      %999 = vmatpush1.msra.mxu0 %v393
      %1000 = vmatprep.subr.mxu0 %v392
      %1001 = vmatpush1.msra.mxu0 %v391
      %1002 = vmatprep.subr.mxu0 %v390
      %1003 = vmatpush1.msra.mxu0 %v389
      %1004 = vmatprep.subr.mxu0 %v388
      %1005 = vmatpush1.msra.mxu0 %v387
      %1006 = vmatprep.subr.mxu0 %v386
      %1007 = vmatpush1.msra.mxu0 %v385
      %1008 = vmatprep.subr.mxu0 %v384
      %1009 = vmatpush1.msra.mxu0 %v383
      %1010 = vmatprep.subr.mxu0 %v382
      %1011 = vmatpush1.msra.mxu0 %v381
      %1012 = vmatprep.subr.mxu0 %v380
      %1013 = vmatpush1.msra.mxu0 %v379
      %1014 = vmatprep.subr.mxu0 %v378
      %1015 = vmatpush1.msra.mxu0 %v377
      %1016 = vmatprep.subr.mxu0 %v376
      %1017 = vmatpush1.msra.mxu0 %v375
      %1018 = vmatprep.subr.mxu0 %v374
      %1019 = vmatpush1.msra.mxu0 %v373
      %1020 = vmatprep.subr.mxu0 %v372
      %1021 = vmatpush1.msra.mxu0 %v371
      %1022 = vmatprep.subr.mxu0 %v370
      %1023 = vmatpush1.msra.mxu0 %v369
      %1024 = vmatprep.subr.mxu0 0.0
      %1025 = vmatpush2.msra.mxu0 0.0
      %1026 = vmatprep.subr.mxu0 0.0
      %1027 = vmatpush2.msra.mxu0 0.0
      %1028 = vmatprep.subr.mxu0 0.0
      %1029 = vmatpush2.msra.mxu0 0.0
      %1030 = vmatprep.subr.mxu0 0.0
      %1031 = vmatpush2.msra.mxu0 0.0
      %1032 = vmatprep.subr.mxu0 0.0
      %1033 = vmatpush2.msra.mxu0 0.0
      %1034 = vmatprep.subr.mxu0 0.0
      %1035 = vmatpush2.msra.mxu0 0.0
      %1036 = vmatprep.subr.mxu0 0.0
      %1037 = vmatpush2.msra.mxu0 0.0
      %1038 = vmatprep.subr.mxu0 0.0
      %1039 = vmatpush2.msra.mxu0 0.0
      %1040 = vmatprep.subr.mxu0 0.0
      %1041 = vmatpush2.msra.mxu0 0.0
      %1042 = vmatprep.subr.mxu0 0.0
      %1043 = vmatpush2.msra.mxu0 0.0
      %1044 = vmatprep.subr.mxu0 0.0
      %1045 = vmatpush2.msra.mxu0 0.0
      %1046 = vmatprep.subr.mxu0 0.0
      %1047 = vmatpush2.msra.mxu0 0.0
      %1048 = vmatprep.subr.mxu0 0.0
      %1049 = vmatpush2.msra.mxu0 0.0
      %1050 = vmatprep.subr.mxu0 0.0
      %1051 = vmatpush2.msra.mxu0 0.0
      %1052 = vmatprep.subr.mxu0 0.0
      %1053 = vmatpush2.msra.mxu0 0.0
      %1054 = vmatprep.subr.mxu0 0.0
      %1055 = vmatpush2.msra.mxu0 0.0
      %1056 = vmatprep.mubr.f32.mxu0 0.0
      %1057 = vmatmul.mubr.f32.gmra.mxu0 %v909
      %v1058 = vpop.f32.mrf.mxu0
      %v1059 = vadd.f32 %v988, %v1058
      %v1060 = vpop.f32.mrf.mxu0
      %v1061 = vadd.f32 %v990, %v1060
      %1062 = vdwg.mxu0
      %v1065 = vcombine.low %v1059, %v1061
      %v1067 = vunpack.c.l.s4 1983009808
      %v1068 = vunpack.c.0.s8 %v1067
      %v1069 = vlaneseq
      %v1070 = vshrl.u32 %v1069, 7
      %v1071 = vsub.s32 %v1068, %v1070
      %v1072 = vrot.slane %v1065, %v1071
      %s1074 = smul.u32 %s415, 2
      %s1075 = smul.addr %s1074, 2
      %s1076 = scalar_lea.vmem %s7, %s1075
      %1077 = vst [vmem:[%s1076] sm:$0xf] %v1072
    $region42: #{model_map_predict.3} parent=1 // loop_footer
      %s419 = sadd.s32 1, %s415
    $region43: #{model_map_predict.3} parent=1 // loop_footer_branch
      %414 = sbr.rel target = $region39
    $region44: #{model_map_predict.3} parent=1 // loop_exit
      _
    %v1080 = vcombine.low %v420, %v421
    %v1082 = vunpack.c.l.s4 1983009808
    %v1083 = vunpack.c.0.s8 %v1082
    %v1084 = vlaneseq
    %v1085 = vshrl.u32 %v1084, 7
    %v1086 = vsub.s32 %v1083, %v1085
    %v1087 = vrot.slane %v1080, %v1086
    %1089 = vst [vmem:[#allocation2] sm:$0xf] %v1087
    // Predicated region
    $region45: #{model_map_predict.3} parent=1 // pred_check
      _
    $region46: #{model_map_predict.3} parent=1 // pred_check_branch
      %1091 = sbr.rel (0) target = $region48
    $region47: #{model_map_predict.3} parent=1 // pred_region
      _
    $region48: #{model_map_predict.3} parent=1 // pred_fallthru
      _
    // Predicated region
    $region49: #{model_map_predict.3} parent=1 // pred_check
      _
    $region50: #{model_map_predict.3} parent=1 // pred_check_branch
      %1093 = sbr.rel (0) target = $region52
    $region51: #{model_map_predict.3} parent=1 // pred_region
      _
    $region52: #{model_map_predict.3} parent=1 // pred_fallthru
      _
    %1094 = vsyncpa [#allocation4], 1

</llo_original>
